<compile_context>
chip_gen: v7x
topology: tpu7x:2x2x1
jax: 0.10.0
libtpu: 0.0.40
codegen_flags: <defaults>
</compile_context>

<pallas_src>
import functools

import jax
import jax.numpy as jnp
from jax.experimental import pallas as pl
from jax.experimental.pallas import tpu as pltpu


LANE = 128
MAX_BLOCK_BS = 512


def _round_up(n, m):
    return ((n + m - 1) // m) * m


def _cdiv(a, b):
    return (a + b - 1) // b


# --------------------------------------------------------------------------
# Kernel
# --------------------------------------------------------------------------
def _vae_kernel(max_action,
                in_ref,                       # (Bb, 2*LANE): [state|action|0 || eps|0]
                w_e1_ref, b_e1_ref,
                w_e2_ref, b_e2_ref,
                w_head_ref, b_head_ref,
                w_d1_ref, b_d1_ref,
                w_d2_ref, b_d2_ref,
                w_d3_ref, b_d3_ref,
                out_ref):
    f32 = jnp.float32
    bf16 = jnp.bfloat16
    Lp = LANE                                  # padded latent width
    Ap = w_d3_ref.shape[-1]                    # padded action width

    xin = in_ref[...]                          # one lane-dense load
    sa = xin[:, :LANE]                         # state|action|0   (f32)
    eps = xin[:, LANE:]                        # eps|0            (f32)
    sab = sa.astype(bf16)

    # ----- encoder -----
    h = jnp.dot(sab, w_e1_ref[...], preferred_element_type=f32) + b_e1_ref[...]
    h = jnp.maximum(h, 0.0)                    # relu(e1)

    h = jnp.dot(h.astype(bf16), w_e2_ref[...],
                preferred_element_type=f32) + b_e2_ref[...]
    h = jnp.maximum(h, 0.0)                    # relu(e2)

    # fused mean / log_std head: one [H, 2*Lp] matmul, 128-aligned slices
    heads = jnp.dot(h.astype(bf16), w_head_ref[...],
                    preferred_element_type=f32) + b_head_ref[...]
    mean = heads[:, :Lp]
    log_std = jnp.clip(heads[:, Lp:], -4.0, 15.0)      # .clamp(-4, 15)
    std = jnp.exp(log_std)

    # ----- reparameterize (eps precomputed in wrapper) -----
    z = mean + std * eps                       # dead lanes: 0 + 1*0 = 0 (exact)

    # ----- decoder: fused K=256 first layer -----
    # lanes [0:128) carry state|action (action lanes hit zero weight rows),
    # lanes [128:256) carry z — one 256-deep MXU push on v6e/v7x.
    dec_in = jnp.concatenate([sab, z.astype(bf16)], axis=1)
    d = jnp.dot(dec_in, w_d1_ref[...],
                preferred_element_type=f32) + b_d1_ref[...]
    d = jnp.maximum(d, 0.0)                    # relu(d1)

    d = jnp.dot(d.astype(bf16), w_d2_ref[...],
                preferred_element_type=f32) + b_d2_ref[...]
    d = jnp.maximum(d, 0.0)                    # relu(d2)

    u = jnp.dot(d.astype(bf16), w_d3_ref[...],
                preferred_element_type=f32) + b_d3_ref[...]
    u = max_action * jnp.tanh(u)

    # packed lane-dense output: [u | mean | std], each slice 128-aligned
    out_ref[:, :Ap] = u
    out_ref[:, Ap:Ap + Lp] = mean
    out_ref[:, Ap + Lp:] = std


# --------------------------------------------------------------------------
# Parameter preparation (pad + bf16 cast, done once)
# --------------------------------------------------------------------------
def prepare_vae_params(params, state_dim, action_dim, latent_dim):
    assert state_dim + action_dim <= LANE, "packed input assumes S+A <= 128"
    assert latent_dim <= LANE, "packed input assumes latent_dim <= 128"

    h_raw = params["w_e2"].shape[0]           # 750
    H = _round_up(h_raw, LANE)                # 768
    Lp = LANE                                 # padded latent width
    Ap = _round_up(action_dim, LANE)          # 128
    f32, bf16 = jnp.float32, jnp.bfloat16

    def wpad(w, rows, cols):
        r, c = w.shape
        return jnp.pad(w.astype(f32), ((0, rows - r), (0, cols - c))).astype(bf16)

    def bpad(b, cols):
        b = b.astype(f32).reshape(1, -1)
        return jnp.pad(b, ((0, 0), (0, cols - b.shape[1])))

    p = {}
    # encoder first layer: rows 0..S+A align with packed [state|action] lanes
    p["w_e1"] = wpad(params["w_e1"], LANE, H)
    p["b_e1"] = bpad(params["b_e1"], H)
    p["w_e2"] = wpad(params["w_e2"], H, H)
    p["b_e2"] = bpad(params["b_e2"], H)

    # fused mean / log_std head: [H, 2*Lp]
    w_head = jnp.zeros((H, 2 * Lp), f32)
    w_head = w_head.at[:h_raw, :latent_dim].set(params["w_mean"].astype(f32))
    w_head = w_head.at[:h_raw, Lp:Lp + latent_dim].set(params["w_log_std"].astype(f32))
    p["w_head"] = w_head.astype(bf16)
    b_head = jnp.zeros((1, 2 * Lp), f32)
    b_head = b_head.at[0, :latent_dim].set(params["b_mean"].astype(f32))
    b_head = b_head.at[0, Lp:Lp + latent_dim].set(params["b_log_std"].astype(f32))
    p["b_head"] = b_head

    # decoder first layer fused to K=256:
    #   rows [0:S)        -> state part of d1
    #   rows [S:128)      -> zero (action + pad lanes of the packed input)
    #   rows [128:128+L)  -> latent part of d1
    #   rows [128+L:256)  -> zero
    w_d1 = jnp.zeros((2 * LANE, H), f32)
    w_d1 = w_d1.at[:state_dim, :h_raw].set(params["w_d1"][:state_dim].astype(f32))
    w_d1 = w_d1.at[LANE:LANE + latent_dim, :h_raw].set(
        params["w_d1"][state_dim:].astype(f32))
    p["w_d1"] = w_d1.astype(bf16)
    p["b_d1"] = bpad(params["b_d1"], H)

    p["w_d2"] = wpad(params["w_d2"], H, H)
    p["b_d2"] = bpad(params["b_d2"], H)
    p["w_d3"] = wpad(params["w_d3"], H, Ap)
    p["b_d3"] = bpad(params["b_d3"], Ap)

    dims = dict(state_dim=state_dim, action_dim=action_dim,
                latent_dim=latent_dim, hidden=H, Lp=Lp, Ap=Ap)
    return p, dims


# --------------------------------------------------------------------------
# Forward wrapper
# --------------------------------------------------------------------------
def vae_forward(prepped, dims, state, action, eps, *, max_action):
    B = state.shape[0]
    S, A, L = dims["state_dim"], dims["action_dim"], dims["latent_dim"]
    H, Lp, Ap = dims["hidden"], dims["Lp"], dims["Ap"]
    f32 = jnp.float32

    # Batch blocking: bound per-step overhead (big blocks), bound pad waste
    # (even split of B), and force >= 2 grid steps on mid/large batches so the
    # "parallel" axis can be sharded across v7x's two TensorCores.
    num_blocks = _cdiv(B, MAX_BLOCK_BS)
    if B > 64:
        num_blocks = max(num_blocks, 2)
    block_bs = max(16, _round_up(_cdiv(B, num_blocks), 16))
    Bp = block_bs * num_blocks

    # one lane-dense input slab: [state | action | 0 ... || eps | 0 ...]
    slab = jnp.zeros((Bp, 2 * LANE), f32)
    slab = slab.at[:B, :S].set(state.astype(f32))
    slab = slab.at[:B, S:S + A].set(action.astype(f32))
    slab = slab.at[:B, LANE:LANE + L].set(eps.astype(f32))

    out_w = Ap + 2 * Lp

    weight_names = ["w_e1", "b_e1", "w_e2", "b_e2", "w_head", "b_head",
                    "w_d1", "b_d1", "w_d2", "b_d2", "w_d3", "b_d3"]
    weights = [prepped[n] for n in weight_names]

    in_specs = ([pl.BlockSpec((block_bs, 2 * LANE), lambda i: (i, 0))]
                + [pl.BlockSpec(w.shape, lambda i: (0, 0)) for w in weights])
    out_specs = pl.BlockSpec((block_bs, out_w), lambda i: (i, 0))

    flops = 2 * Bp * (LANE * H + H * H + H * 2 * Lp
                      + 2 * LANE * H + H * H + H * Ap)
    transcendentals = Bp * (Lp + Ap)            # exp + tanh
    weight_bytes = sum(int(w.size) * w.dtype.itemsize for w in weights)
    # weights counted once: constant block index -> DMA'd once, VMEM-resident
    bytes_accessed = weight_bytes + 4 * int(slab.size + Bp * out_w)

    # scale the VMEM cap with the batch block (review: 16 MiB @ <=256, 32 @ 512)
    vmem_limit = (32 << 20) if block_bs > 256 else (16 << 20)

    kernel = functools.partial(_vae_kernel, float(max_action))
    out = pl.pallas_call(
        kernel,
        out_shape=jax.ShapeDtypeStruct((Bp, out_w), jnp.float32),
        grid_spec=pltpu.PrefetchScalarGridSpec(
            num_scalar_prefetch=0,
            grid=(num_blocks,),
            in_specs=in_specs,
            out_specs=out_specs),
        compiler_params=pltpu.CompilerParams(
            dimension_semantics=("parallel",),
            vmem_limit_bytes=vmem_limit),
        cost_estimate=pl.CostEstimate(flops=flops,
                                      transcendentals=transcendentals,
                                      bytes_accessed=bytes_accessed),
    )(slab, *weights)

    u = out[:B, :A]
    mean = out[:B, Ap:Ap + L]
    std = out[:B, Ap + Lp:Ap + Lp + L]
    return u, mean, std


# --------------------------------------------------------------------------
# Init + pure-JAX reference
# --------------------------------------------------------------------------
def init_vae_params(key, state_dim, action_dim, latent_dim, hidden=750):
    def linear(k, fan_in, fan_out):
        kw, kb = jax.random.split(k)
        bound = 1.0 / jnp.sqrt(fan_in)
        w = jax.random.uniform(kw, (fan_in, fan_out), jnp.float32, -bound, bound)
        b = jax.random.uniform(kb, (fan_out,), jnp.float32, -bound, bound)
        return w, b

    keys = jax.random.split(key, 7)
    p = {}
    p["w_e1"], p["b_e1"] = linear(keys[0], state_dim + action_dim, hidden)
    p["w_e2"], p["b_e2"] = linear(keys[1], hidden, hidden)
    p["w_mean"], p["b_mean"] = linear(keys[2], hidden, latent_dim)
    p["w_log_std"], p["b_log_std"] = linear(keys[3], hidden, latent_dim)
    p["w_d1"], p["b_d1"] = linear(keys[4], state_dim + latent_dim, hidden)
    p["w_d2"], p["b_d2"] = linear(keys[5], hidden, hidden)
    p["w_d3"], p["b_d3"] = linear(keys[6], hidden, action_dim)
    return p


def vae_forward_ref(params, state, action, eps, *, max_action):
    x = jnp.concatenate([state, action], axis=1)
    h = jax.nn.relu(x @ params["w_e1"] + params["b_e1"])
    h = jax.nn.relu(h @ params["w_e2"] + params["b_e2"])
    mean = h @ params["w_mean"] + params["b_mean"]
    log_std = jnp.clip(h @ params["w_log_std"] + params["b_log_std"], -4.0, 15.0)
    std = jnp.exp(log_std)
    z = mean + std * eps
    d = jnp.concatenate([state, z], axis=1)
    a = jax.nn.relu(d @ params["w_d1"] + params["b_d1"])
    a = jax.nn.relu(a @ params["w_d2"] + params["b_d2"])
    u = max_action * jnp.tanh(a @ params["w_d3"] + params["b_d3"])
    return u, mean, std


def _check(params, prepped, dims, state, action, eps, max_action):
    u, mean, std = vae_forward(prepped, dims, state, action, eps,
                               max_action=max_action)
    jax.block_until_ready((u, mean, std))
    u_r, mean_r, std_r = vae_forward_ref(params, state, action, eps,
                                         max_action=max_action)
    # bf16 weights -> loosened tolerances vs the f32 reference
    assert jnp.allclose(u, u_r, atol=5e-2, rtol=5e-2)
    assert jnp.allclose(mean, mean_r, atol=5e-2, rtol=5e-2)
    assert jnp.allclose(std, std_r, atol=5e-2, rtol=5e-2)
    assert bool(jnp.all(jnp.isfinite(u)) & jnp.all(jnp.isfinite(mean))
                & jnp.all(jnp.isfinite(std)))


if __name__ == "__main__":
    state_dim, action_dim, latent_dim = 16, 8, 8
    max_action = 1.0

    root = jax.random.PRNGKey(0)
    k_param, k_data = jax.random.split(root)
    params = init_vae_params(k_param, state_dim, action_dim, latent_dim)
    prepped, dims = prepare_vae_params(params, state_dim, action_dim, latent_dim)

    # small batch (single grid step) and a mid batch (exercises the >=2-block
    # path that keeps both v7x TensorCores busy)
    for B in (8, 96):
        k_state, k_action, k_eps, k_data = jax.random.split(k_data, 4)
        state = jax.random.normal(k_state, (B, state_dim), jnp.float32)
        action = jax.random.normal(k_action, (B, action_dim), jnp.float32)
        eps = jax.random.normal(k_eps, (B, latent_dim), jnp.float32)  # randn_like(std)
        _check(params, prepped, dims, state, action, eps, max_action)

    # TODO(synk): small-batch weight-DMA lever (int8 on v5e/v6e, fp8 or
    # cross-call weight residency on v7x) left out; needs per-channel scales.
    print("KERNEL_OK")
</pallas_src>

<mosaic_0001>
module attributes {stable_mosaic.version = 11 : i64} {
  func.func @_vae_kernel(%arg0: i32, %arg1: memref<16x256xf32, #tpu.memory_space<vmem>>, %arg2: memref<128x768xbf16, #tpu.memory_space<vmem>>, %arg3: memref<1x768xf32, #tpu.memory_space<vmem>>, %arg4: memref<768x768xbf16, #tpu.memory_space<vmem>>, %arg5: memref<1x768xf32, #tpu.memory_space<vmem>>, %arg6: memref<768x256xbf16, #tpu.memory_space<vmem>>, %arg7: memref<1x256xf32, #tpu.memory_space<vmem>>, %arg8: memref<256x768xbf16, #tpu.memory_space<vmem>>, %arg9: memref<1x768xf32, #tpu.memory_space<vmem>>, %arg10: memref<768x768xbf16, #tpu.memory_space<vmem>>, %arg11: memref<1x768xf32, #tpu.memory_space<vmem>>, %arg12: memref<768x128xbf16, #tpu.memory_space<vmem>>, %arg13: memref<1x128xf32, #tpu.memory_space<vmem>>, %arg14: memref<16x384xf32, #tpu.memory_space<vmem>>) attributes {dimension_semantics = [#tpu.dimension_semantics<parallel>], iteration_bounds = array<i64: 1>, scalar_prefetch = 0 : i64, scratch_operands = 0 : i64, tpu.core_type = #tpu.core_type<tc>, window_params = [{transform_indices = @transform_0, window_bounds = array<i64: 16, 256>}, {pipeline_mode = #tpu.pipeline_mode<synchronous>, transform_indices = @transform_1, window_bounds = array<i64: 128, 768>}, {pipeline_mode = #tpu.pipeline_mode<synchronous>, transform_indices = @transform_2, window_bounds = array<i64: 1, 768>}, {pipeline_mode = #tpu.pipeline_mode<synchronous>, transform_indices = @transform_3, window_bounds = array<i64: 768, 768>}, {pipeline_mode = #tpu.pipeline_mode<synchronous>, transform_indices = @transform_4, window_bounds = array<i64: 1, 768>}, {pipeline_mode = #tpu.pipeline_mode<synchronous>, transform_indices = @transform_5, window_bounds = array<i64: 768, 256>}, {pipeline_mode = #tpu.pipeline_mode<synchronous>, transform_indices = @transform_6, window_bounds = array<i64: 1, 256>}, {pipeline_mode = #tpu.pipeline_mode<synchronous>, transform_indices = @transform_7, window_bounds = array<i64: 256, 768>}, {pipeline_mode = #tpu.pipeline_mode<synchronous>, transform_indices = @transform_8, window_bounds = array<i64: 1, 768>}, {pipeline_mode = #tpu.pipeline_mode<synchronous>, transform_indices = @transform_9, window_bounds = array<i64: 768, 768>}, {pipeline_mode = #tpu.pipeline_mode<synchronous>, transform_indices = @transform_10, window_bounds = array<i64: 1, 768>}, {pipeline_mode = #tpu.pipeline_mode<synchronous>, transform_indices = @transform_11, window_bounds = array<i64: 768, 128>}, {pipeline_mode = #tpu.pipeline_mode<synchronous>, transform_indices = @transform_12, window_bounds = array<i64: 1, 128>}, {transform_indices = @transform_13, window_bounds = array<i64: 16, 384>}]} {
    %c0 = arith.constant 0 : index
    %c0_0 = arith.constant 0 : index
    %0 = vector.load %arg1[%c0, %c0_0] : memref<16x256xf32, #tpu.memory_space<vmem>>, vector<16x256xf32>
    %1 = vector.extract_strided_slice %0 {offsets = [0, 0], sizes = [16, 128], strides = [1, 1]} : vector<16x256xf32> to vector<16x128xf32>
    %2 = vector.extract_strided_slice %0 {offsets = [0, 128], sizes = [16, 128], strides = [1, 1]} : vector<16x256xf32> to vector<16x128xf32>
    %3 = arith.truncf %1 : vector<16x128xf32> to vector<16x128xbf16>
    %c0_1 = arith.constant 0 : index
    %c0_2 = arith.constant 0 : index
    %4 = vector.load %arg2[%c0_1, %c0_2] : memref<128x768xbf16, #tpu.memory_space<vmem>>, vector<128x768xbf16>
    %cst = arith.constant dense<0.000000e+00> : vector<16x768xf32>
    %5 = tpu.matmul %3, %4, %cst {dimension_numbers = #tpu.dot_dimension_numbers<[1], [0], [0], [1], [0, 0, 1, 1], [], []>} : vector<16x128xbf16>, vector<128x768xbf16>, vector<16x768xf32> -> vector<16x768xf32>
    %c0_3 = arith.constant 0 : index
    %c0_4 = arith.constant 0 : index
    %6 = vector.load %arg3[%c0_3, %c0_4] : memref<1x768xf32, #tpu.memory_space<vmem>>, vector<1x768xf32>
    %7 = vector.broadcast %6 : vector<1x768xf32> to vector<16x768xf32>
    %8 = arith.addf %5, %7 : vector<16x768xf32>
    %cst_5 = arith.constant 0.000000e+00 : f32
    %9 = vector.broadcast %cst_5 : f32 to vector<16x768xf32>
    %10 = arith.maximumf %8, %9 : vector<16x768xf32>
    %11 = arith.truncf %10 : vector<16x768xf32> to vector<16x768xbf16>
    %c0_6 = arith.constant 0 : index
    %c0_7 = arith.constant 0 : index
    %12 = vector.load %arg4[%c0_6, %c0_7] : memref<768x768xbf16, #tpu.memory_space<vmem>>, vector<768x768xbf16>
    %cst_8 = arith.constant dense<0.000000e+00> : vector<16x768xf32>
    %13 = tpu.matmul %11, %12, %cst_8 {dimension_numbers = #tpu.dot_dimension_numbers<[1], [0], [0], [1], [0, 0, 1, 1], [], []>} : vector<16x768xbf16>, vector<768x768xbf16>, vector<16x768xf32> -> vector<16x768xf32>
    %c0_9 = arith.constant 0 : index
    %c0_10 = arith.constant 0 : index
    %14 = vector.load %arg5[%c0_9, %c0_10] : memref<1x768xf32, #tpu.memory_space<vmem>>, vector<1x768xf32>
    %15 = vector.broadcast %14 : vector<1x768xf32> to vector<16x768xf32>
    %16 = arith.addf %13, %15 : vector<16x768xf32>
    %cst_11 = arith.constant 0.000000e+00 : f32
    %17 = vector.broadcast %cst_11 : f32 to vector<16x768xf32>
    %18 = arith.maximumf %16, %17 : vector<16x768xf32>
    %19 = arith.truncf %18 : vector<16x768xf32> to vector<16x768xbf16>
    %c0_12 = arith.constant 0 : index
    %c0_13 = arith.constant 0 : index
    %20 = vector.load %arg6[%c0_12, %c0_13] : memref<768x256xbf16, #tpu.memory_space<vmem>>, vector<768x256xbf16>
    %cst_14 = arith.constant dense<0.000000e+00> : vector<16x256xf32>
    %21 = tpu.matmul %19, %20, %cst_14 {dimension_numbers = #tpu.dot_dimension_numbers<[1], [0], [0], [1], [0, 0, 1, 1], [], []>} : vector<16x768xbf16>, vector<768x256xbf16>, vector<16x256xf32> -> vector<16x256xf32>
    %c0_15 = arith.constant 0 : index
    %c0_16 = arith.constant 0 : index
    %22 = vector.load %arg7[%c0_15, %c0_16] : memref<1x256xf32, #tpu.memory_space<vmem>>, vector<1x256xf32>
    %23 = vector.broadcast %22 : vector<1x256xf32> to vector<16x256xf32>
    %24 = arith.addf %21, %23 : vector<16x256xf32>
    %25 = vector.extract_strided_slice %24 {offsets = [0, 0], sizes = [16, 128], strides = [1, 1]} : vector<16x256xf32> to vector<16x128xf32>
    %26 = vector.extract_strided_slice %24 {offsets = [0, 128], sizes = [16, 128], strides = [1, 1]} : vector<16x256xf32> to vector<16x128xf32>
    %cst_17 = arith.constant -4.000000e+00 : f32
    %cst_18 = arith.constant 1.500000e+01 : f32
    %27 = vector.broadcast %cst_17 : f32 to vector<16x128xf32>
    %28 = arith.maximumf %27, %26 : vector<16x128xf32>
    %29 = vector.broadcast %cst_18 : f32 to vector<16x128xf32>
    %30 = arith.minimumf %29, %28 : vector<16x128xf32>
    %31 = math.exp %30 : vector<16x128xf32>
    %32 = arith.mulf %31, %2 : vector<16x128xf32>
    %33 = arith.addf %25, %32 : vector<16x128xf32>
    %34 = arith.truncf %33 : vector<16x128xf32> to vector<16x128xbf16>
    %35 = tpu.concatenate %3, %34 in 1 : vector<16x128xbf16>, vector<16x128xbf16> -> vector<16x256xbf16>
    %c0_19 = arith.constant 0 : index
    %c0_20 = arith.constant 0 : index
    %36 = vector.load %arg8[%c0_19, %c0_20] : memref<256x768xbf16, #tpu.memory_space<vmem>>, vector<256x768xbf16>
    %cst_21 = arith.constant dense<0.000000e+00> : vector<16x768xf32>
    %37 = tpu.matmul %35, %36, %cst_21 {dimension_numbers = #tpu.dot_dimension_numbers<[1], [0], [0], [1], [0, 0, 1, 1], [], []>} : vector<16x256xbf16>, vector<256x768xbf16>, vector<16x768xf32> -> vector<16x768xf32>
    %c0_22 = arith.constant 0 : index
    %c0_23 = arith.constant 0 : index
    %38 = vector.load %arg9[%c0_22, %c0_23] : memref<1x768xf32, #tpu.memory_space<vmem>>, vector<1x768xf32>
    %39 = vector.broadcast %38 : vector<1x768xf32> to vector<16x768xf32>
    %40 = arith.addf %37, %39 : vector<16x768xf32>
    %cst_24 = arith.constant 0.000000e+00 : f32
    %41 = vector.broadcast %cst_24 : f32 to vector<16x768xf32>
    %42 = arith.maximumf %40, %41 : vector<16x768xf32>
    %43 = arith.truncf %42 : vector<16x768xf32> to vector<16x768xbf16>
    %c0_25 = arith.constant 0 : index
    %c0_26 = arith.constant 0 : index
    %44 = vector.load %arg10[%c0_25, %c0_26] : memref<768x768xbf16, #tpu.memory_space<vmem>>, vector<768x768xbf16>
    %cst_27 = arith.constant dense<0.000000e+00> : vector<16x768xf32>
    %45 = tpu.matmul %43, %44, %cst_27 {dimension_numbers = #tpu.dot_dimension_numbers<[1], [0], [0], [1], [0, 0, 1, 1], [], []>} : vector<16x768xbf16>, vector<768x768xbf16>, vector<16x768xf32> -> vector<16x768xf32>
    %c0_28 = arith.constant 0 : index
    %c0_29 = arith.constant 0 : index
    %46 = vector.load %arg11[%c0_28, %c0_29] : memref<1x768xf32, #tpu.memory_space<vmem>>, vector<1x768xf32>
    %47 = vector.broadcast %46 : vector<1x768xf32> to vector<16x768xf32>
    %48 = arith.addf %45, %47 : vector<16x768xf32>
    %cst_30 = arith.constant 0.000000e+00 : f32
    %49 = vector.broadcast %cst_30 : f32 to vector<16x768xf32>
    %50 = arith.maximumf %48, %49 : vector<16x768xf32>
    %51 = arith.truncf %50 : vector<16x768xf32> to vector<16x768xbf16>
    %c0_31 = arith.constant 0 : index
    %c0_32 = arith.constant 0 : index
    %52 = vector.load %arg12[%c0_31, %c0_32] : memref<768x128xbf16, #tpu.memory_space<vmem>>, vector<768x128xbf16>
    %cst_33 = arith.constant dense<0.000000e+00> : vector<16x128xf32>
    %53 = tpu.matmul %51, %52, %cst_33 {dimension_numbers = #tpu.dot_dimension_numbers<[1], [0], [0], [1], [0, 0, 1, 1], [], []>} : vector<16x768xbf16>, vector<768x128xbf16>, vector<16x128xf32> -> vector<16x128xf32>
    %c0_34 = arith.constant 0 : index
    %c0_35 = arith.constant 0 : index
    %54 = vector.load %arg13[%c0_34, %c0_35] : memref<1x128xf32, #tpu.memory_space<vmem>>, vector<1x128xf32>
    %55 = vector.broadcast %54 : vector<1x128xf32> to vector<16x128xf32>
    %56 = arith.addf %53, %55 : vector<16x128xf32>
    %57 = math.tanh %56 : vector<16x128xf32>
    %cst_36 = arith.constant 1.000000e+00 : f32
    %58 = vector.broadcast %cst_36 : f32 to vector<16x128xf32>
    %59 = arith.mulf %58, %57 : vector<16x128xf32>
    %c0_37 = arith.constant 0 : index
    %c0_38 = arith.constant 0 : index
    %60 = vector.load %arg14[%c0_37, %c0_38] : memref<16x384xf32, #tpu.memory_space<vmem>>, vector<16x128xf32>
    tpu.vector_store %arg14[%c0_37, %c0_38], %59 {strides = array<i32>} : memref<16x384xf32, #tpu.memory_space<vmem>>, vector<16x128xf32>,
    %c0_39 = arith.constant 0 : index
    %c128 = arith.constant 128 : index
    %61 = vector.load %arg14[%c0_39, %c128] : memref<16x384xf32, #tpu.memory_space<vmem>>, vector<16x128xf32>
    tpu.vector_store %arg14[%c0_39, %c128], %25 {strides = array<i32>} : memref<16x384xf32, #tpu.memory_space<vmem>>, vector<16x128xf32>,
    %c0_40 = arith.constant 0 : index
    %c256 = arith.constant 256 : index
    %62 = vector.load %arg14[%c0_40, %c256] : memref<16x384xf32, #tpu.memory_space<vmem>>, vector<16x128xf32>
    tpu.vector_store %arg14[%c0_40, %c256], %31 {strides = array<i32>} : memref<16x384xf32, #tpu.memory_space<vmem>>, vector<16x128xf32>,
    return
  }
  func.func @transform_0(%arg0: i32) -> (i32, i32) {
    %c0_i32 = arith.constant 0 : i32
    %c0_i32_0 = arith.constant 0 : i32
    return %arg0, %c0_i32 : i32, i32
  }
  func.func @transform_1(%arg0: i32) -> (i32, i32) {
    %c0_i32 = arith.constant 0 : i32
    %c0_i32_0 = arith.constant 0 : i32
    %c0_i32_1 = arith.constant 0 : i32
    return %c0_i32, %c0_i32_0 : i32, i32
  }
  func.func @transform_2(%arg0: i32) -> (i32, i32) {
    %c0_i32 = arith.constant 0 : i32
    %c0_i32_0 = arith.constant 0 : i32
    %c0_i32_1 = arith.constant 0 : i32
    return %c0_i32, %c0_i32_0 : i32, i32
  }
  func.func @transform_3(%arg0: i32) -> (i32, i32) {
    %c0_i32 = arith.constant 0 : i32
    %c0_i32_0 = arith.constant 0 : i32
    %c0_i32_1 = arith.constant 0 : i32
    return %c0_i32, %c0_i32_0 : i32, i32
  }
  func.func @transform_4(%arg0: i32) -> (i32, i32) {
    %c0_i32 = arith.constant 0 : i32
    %c0_i32_0 = arith.constant 0 : i32
    %c0_i32_1 = arith.constant 0 : i32
    return %c0_i32, %c0_i32_0 : i32, i32
  }
  func.func @transform_5(%arg0: i32) -> (i32, i32) {
    %c0_i32 = arith.constant 0 : i32
    %c0_i32_0 = arith.constant 0 : i32
    %c0_i32_1 = arith.constant 0 : i32
    return %c0_i32, %c0_i32_0 : i32, i32
  }
  func.func @transform_6(%arg0: i32) -> (i32, i32) {
    %c0_i32 = arith.constant 0 : i32
    %c0_i32_0 = arith.constant 0 : i32
    %c0_i32_1 = arith.constant 0 : i32
    return %c0_i32, %c0_i32_0 : i32, i32
  }
  func.func @transform_7(%arg0: i32) -> (i32, i32) {
    %c0_i32 = arith.constant 0 : i32
    %c0_i32_0 = arith.constant 0 : i32
    %c0_i32_1 = arith.constant 0 : i32
    return %c0_i32, %c0_i32_0 : i32, i32
  }
  func.func @transform_8(%arg0: i32) -> (i32, i32) {
    %c0_i32 = arith.constant 0 : i32
    %c0_i32_0 = arith.constant 0 : i32
    %c0_i32_1 = arith.constant 0 : i32
    return %c0_i32, %c0_i32_0 : i32, i32
  }
  func.func @transform_9(%arg0: i32) -> (i32, i32) {
    %c0_i32 = arith.constant 0 : i32
    %c0_i32_0 = arith.constant 0 : i32
    %c0_i32_1 = arith.constant 0 : i32
    return %c0_i32, %c0_i32_0 : i32, i32
  }
  func.func @transform_10(%arg0: i32) -> (i32, i32) {
    %c0_i32 = arith.constant 0 : i32
    %c0_i32_0 = arith.constant 0 : i32
    %c0_i32_1 = arith.constant 0 : i32
    return %c0_i32, %c0_i32_0 : i32, i32
  }
  func.func @transform_11(%arg0: i32) -> (i32, i32) {
    %c0_i32 = arith.constant 0 : i32
    %c0_i32_0 = arith.constant 0 : i32
    %c0_i32_1 = arith.constant 0 : i32
    return %c0_i32, %c0_i32_0 : i32, i32
  }
  func.func @transform_12(%arg0: i32) -> (i32, i32) {
    %c0_i32 = arith.constant 0 : i32
    %c0_i32_0 = arith.constant 0 : i32
    %c0_i32_1 = arith.constant 0 : i32
    return %c0_i32, %c0_i32_0 : i32, i32
  }
  func.func @transform_13(%arg0: i32) -> (i32, i32) {
    %c0_i32 = arith.constant 0 : i32
    %c0_i32_0 = arith.constant 0 : i32
    return %arg0, %c0_i32 : i32, i32
  }
}

</mosaic_0001>

<llo_original>
// kernel: tpu_custom_call.1
$region0: #{tpu_custom_call.1}
  #allocation0 [shape = 'u32[]', space=smem, size = 0x4, offset = 0x4, fixed_abs, tag = 'smem constant byte address 0x4 - core index']
  #allocation1 [shape = 'u32[144,128]{1,0:T(1,128)}', space=vmem, size = 0x12000, scoped, tag = 'internal scratch']
  %s0 = inlined_call_operand.hbm [shape: f32[16,256], index: 0, kind: input, shape index: {}]
  %s1 = inlined_call_operand.hbm [shape: bf16[128,768], index: 1, kind: input, shape index: {}]
  %s2 = inlined_call_operand.hbm [shape: f32[1,768], index: 2, kind: input, shape index: {}]
  %s3 = inlined_call_operand.hbm [shape: bf16[768,768], index: 3, kind: input, shape index: {}]
  %s4 = inlined_call_operand.hbm [shape: f32[1,768], index: 4, kind: input, shape index: {}]
  %s5 = inlined_call_operand.hbm [shape: bf16[768,256], index: 5, kind: input, shape index: {}]
  %s6 = inlined_call_operand.hbm [shape: f32[1,256], index: 6, kind: input, shape index: {}]
  %s7 = inlined_call_operand.hbm [shape: bf16[256,768], index: 7, kind: input, shape index: {}]
  %s8 = inlined_call_operand.hbm [shape: f32[1,768], index: 8, kind: input, shape index: {}]
  %s9 = inlined_call_operand.hbm [shape: bf16[768,768], index: 9, kind: input, shape index: {}]
  %s10 = inlined_call_operand.hbm [shape: f32[1,768], index: 10, kind: input, shape index: {}]
  %s11 = inlined_call_operand.hbm [shape: bf16[768,128], index: 11, kind: input, shape index: {}]
  %s12 = inlined_call_operand.hbm [shape: f32[1,128], index: 12, kind: input, shape index: {}]
  %s13 = inlined_call_operand.hbm [shape: f32[16,384], index: 13, kind: output, shape index: {}]
  %s14 = sld [smem:[#allocation0]]
  $region114: #{tpu_custom_call.1} parent=0
    _
  %s16 = ssub.s32 1, %s14
  %s17 = scalar_select 0, %s16, %s14
  $region1: #{tpu_custom_call.1} parent=0
    #allocation2 [shape = 'u8[16384]{0}', space=vmem, size = 0x4000, scoped, tag = 'input window, operand 0, single buffered']
    #allocation3 [shape = 's32[1]{0}', space=sflag, size = 0x4, scoped, tag = 'scoped memory for tpu_custom_call.1']
    #allocation4 [shape = 's32[1]{0}', space=sflag, size = 0x4, scoped, tag = 'scoped memory for tpu_custom_call.1']
    #allocation5 [shape = 'u8[196608]{0}', space=vmem, size = 0x30000, scoped, tag = 'input window, operand 1, single buffered']
    #allocation6 [shape = 's32[1]{0}', space=sflag, size = 0x4, scoped, tag = 'scoped memory for tpu_custom_call.1']
    #allocation7 [shape = 'u8[3072]{0}', space=vmem, size = 0xc00, scoped, tag = 'input window, operand 2, single buffered']
    #allocation8 [shape = 'u8[1179648]{0}', space=vmem, size = 0x120000, scoped, tag = 'input window, operand 3, single buffered']
    #allocation9 [shape = 's32[1]{0}', space=sflag, size = 0x4, scoped, tag = 'scoped memory for tpu_custom_call.1']
    #allocation10 [shape = 'u8[3072]{0}', space=vmem, size = 0xc00, scoped, tag = 'input window, operand 4, single buffered']
    #allocation11 [shape = 'u8[393216]{0}', space=vmem, size = 0x60000, scoped, tag = 'input window, operand 5, single buffered']
    #allocation12 [shape = 's32[1]{0}', space=sflag, size = 0x4, scoped, tag = 'scoped memory for tpu_custom_call.1']
    #allocation13 [shape = 'u8[1024]{0}', space=vmem, size = 0x400, scoped, tag = 'input window, operand 6, single buffered']
    #allocation14 [shape = 'u8[393216]{0}', space=vmem, size = 0x60000, scoped, tag = 'input window, operand 7, single buffered']
    #allocation15 [shape = 's32[1]{0}', space=sflag, size = 0x4, scoped, tag = 'scoped memory for tpu_custom_call.1']
    #allocation16 [shape = 'u8[3072]{0}', space=vmem, size = 0xc00, scoped, tag = 'input window, operand 8, single buffered']
    #allocation17 [shape = 'u8[1179648]{0}', space=vmem, size = 0x120000, scoped, tag = 'input window, operand 9, single buffered']
    #allocation18 [shape = 's32[1]{0}', space=sflag, size = 0x4, scoped, tag = 'scoped memory for tpu_custom_call.1']
    #allocation19 [shape = 'u8[3072]{0}', space=vmem, size = 0xc00, scoped, tag = 'input window, operand 10, single buffered']
    #allocation20 [shape = 'u8[196608]{0}', space=vmem, size = 0x30000, scoped, tag = 'input window, operand 11, single buffered']
    #allocation21 [shape = 's32[1]{0}', space=sflag, size = 0x4, scoped, tag = 'scoped memory for tpu_custom_call.1']
    #allocation22 [shape = 'u8[512]{0}', space=vmem, size = 0x400, scoped, tag = 'input window, operand 12, single buffered']
    #allocation23 [shape = 'u8[24576]{0}', space=vmem, size = 0x6000, scoped, tag = 'output window, operand 0, single buffered']
    %18 = vsyncpa [#allocation3], 0
    %19 = vsyncpa [#allocation6], 0
    %20 = vsyncpa [#allocation9], 0
    %21 = vsyncpa [#allocation12], 0
    %22 = vsyncpa [#allocation15], 0
    %23 = vsyncpa [#allocation18], 0
    %24 = vsyncpa [#allocation21], 0
    %25 = vsyncpa [#allocation4], 0
    // Predicated region
    $region2: #{tpu_custom_call.1} parent=1 // pred_check
      _
    $region3: #{tpu_custom_call.1} parent=1 // pred_check_branch
      %27 = sbr.rel (0) target = $region5
    $region4: #{tpu_custom_call.1} parent=1 // pred_region
      %s29 = ssub.s32 512, 512
      %30 = vsyncadd [#allocation3], %s29
      %s31 = sshll.u32 [#allocation2], 4
      %s32 = int_to_ptr.vmem [resolvable:$true] %s31
      %37 = dma.hbm_to_vmem [thread:$0]  %s0, 512, %s32, [#allocation3], 256, 256, 16
    $region5: #{tpu_custom_call.1} parent=1 // pred_fallthru
      _
    // Predicated region
    $region6: #{tpu_custom_call.1} parent=1 // pred_check
      _
    $region7: #{tpu_custom_call.1} parent=1 // pred_check_branch
      %39 = sbr.rel (0) target = $region9
    $region8: #{tpu_custom_call.1} parent=1 // pred_region
      %s41 = ssub.s32 6144, 6144
      %42 = vsyncadd [#allocation6], %s41
      %s43 = sshll.u32 [#allocation5], 4
      %s44 = int_to_ptr.vmem [resolvable:$true] %s43
      %49 = dma.hbm_to_vmem [thread:$0]  %s1, 6144, %s44, [#allocation6], 384, 384, 24
    $region9: #{tpu_custom_call.1} parent=1 // pred_fallthru
      _
    // Predicated region
    $region10: #{tpu_custom_call.1} parent=1 // pred_check
      _
    $region11: #{tpu_custom_call.1} parent=1 // pred_check_branch
      %51 = sbr.rel (0) target = $region13
    $region12: #{tpu_custom_call.1} parent=1 // pred_region
      %s53 = ssub.s32 96, 96
      %54 = vsyncadd [#allocation6], %s53
      %s56 = sshll.u32 [#allocation7], 4
      %s57 = int_to_ptr.vmem [resolvable:$true] %s56
      %59 = dma.hbm_to_vmem [thread:$0]  %s2, 96, %s57, [#allocation6]
    $region13: #{tpu_custom_call.1} parent=1 // pred_fallthru
      _
    // Predicated region
    $region14: #{tpu_custom_call.1} parent=1 // pred_check
      _
    $region15: #{tpu_custom_call.1} parent=1 // pred_check_branch
      %61 = sbr.rel (0) target = $region17
    $region16: #{tpu_custom_call.1} parent=1 // pred_region
      %s63 = ssub.s32 36864, 36864
      %64 = vsyncadd [#allocation9], %s63
      %s65 = sshll.u32 [#allocation8], 4
      %s66 = int_to_ptr.vmem [resolvable:$true] %s65
      %71 = dma.hbm_to_vmem [thread:$0]  %s3, 36864, %s66, [#allocation9], 384, 384, 24
    $region17: #{tpu_custom_call.1} parent=1 // pred_fallthru
      _
    // Predicated region
    $region18: #{tpu_custom_call.1} parent=1 // pred_check
      _
    $region19: #{tpu_custom_call.1} parent=1 // pred_check_branch
      %73 = sbr.rel (0) target = $region21
    $region20: #{tpu_custom_call.1} parent=1 // pred_region
      %s75 = ssub.s32 96, 96
      %76 = vsyncadd [#allocation9], %s75
      %s78 = sshll.u32 [#allocation10], 4
      %s79 = int_to_ptr.vmem [resolvable:$true] %s78
      %81 = dma.hbm_to_vmem [thread:$0]  %s4, 96, %s79, [#allocation9]
    $region21: #{tpu_custom_call.1} parent=1 // pred_fallthru
      _
    // Predicated region
    $region22: #{tpu_custom_call.1} parent=1 // pred_check
      _
    $region23: #{tpu_custom_call.1} parent=1 // pred_check_branch
      %83 = sbr.rel (0) target = $region25
    $region24: #{tpu_custom_call.1} parent=1 // pred_region
      %s85 = ssub.s32 12288, 12288
      %86 = vsyncadd [#allocation12], %s85
      %s87 = sshll.u32 [#allocation11], 4
      %s88 = int_to_ptr.vmem [resolvable:$true] %s87
      %93 = dma.hbm_to_vmem [thread:$0]  %s5, 12288, %s88, [#allocation12], 128, 128, 8
    $region25: #{tpu_custom_call.1} parent=1 // pred_fallthru
      _
    // Predicated region
    $region26: #{tpu_custom_call.1} parent=1 // pred_check
      _
    $region27: #{tpu_custom_call.1} parent=1 // pred_check_branch
      %95 = sbr.rel (0) target = $region29
    $region28: #{tpu_custom_call.1} parent=1 // pred_region
      %s97 = ssub.s32 32, 32
      %98 = vsyncadd [#allocation12], %s97
      %s100 = sshll.u32 [#allocation13], 4
      %s101 = int_to_ptr.vmem [resolvable:$true] %s100
      %103 = dma.hbm_to_vmem [thread:$0]  %s6, 32, %s101, [#allocation12]
    $region29: #{tpu_custom_call.1} parent=1 // pred_fallthru
      _
    // Predicated region
    $region30: #{tpu_custom_call.1} parent=1 // pred_check
      _
    $region31: #{tpu_custom_call.1} parent=1 // pred_check_branch
      %105 = sbr.rel (0) target = $region33
    $region32: #{tpu_custom_call.1} parent=1 // pred_region
      %s107 = ssub.s32 12288, 12288
      %108 = vsyncadd [#allocation15], %s107
      %s109 = sshll.u32 [#allocation14], 4
      %s110 = int_to_ptr.vmem [resolvable:$true] %s109
      %115 = dma.hbm_to_vmem [thread:$0]  %s7, 12288, %s110, [#allocation15], 384, 384, 24
    $region33: #{tpu_custom_call.1} parent=1 // pred_fallthru
      _
    // Predicated region
    $region34: #{tpu_custom_call.1} parent=1 // pred_check
      _
    $region35: #{tpu_custom_call.1} parent=1 // pred_check_branch
      %117 = sbr.rel (0) target = $region37
    $region36: #{tpu_custom_call.1} parent=1 // pred_region
      %s119 = ssub.s32 96, 96
      %120 = vsyncadd [#allocation15], %s119
      %s122 = sshll.u32 [#allocation16], 4
      %s123 = int_to_ptr.vmem [resolvable:$true] %s122
      %125 = dma.hbm_to_vmem [thread:$0]  %s8, 96, %s123, [#allocation15]
    $region37: #{tpu_custom_call.1} parent=1 // pred_fallthru
      _
    // Predicated region
    $region38: #{tpu_custom_call.1} parent=1 // pred_check
      _
    $region39: #{tpu_custom_call.1} parent=1 // pred_check_branch
      %127 = sbr.rel (0) target = $region41
    $region40: #{tpu_custom_call.1} parent=1 // pred_region
      %s129 = ssub.s32 36864, 36864
      %130 = vsyncadd [#allocation18], %s129
      %s131 = sshll.u32 [#allocation17], 4
      %s132 = int_to_ptr.vmem [resolvable:$true] %s131
      %137 = dma.hbm_to_vmem [thread:$0]  %s9, 36864, %s132, [#allocation18], 384, 384, 24
    $region41: #{tpu_custom_call.1} parent=1 // pred_fallthru
      _
    // Predicated region
    $region42: #{tpu_custom_call.1} parent=1 // pred_check
      _
    $region43: #{tpu_custom_call.1} parent=1 // pred_check_branch
      %139 = sbr.rel (0) target = $region45
    $region44: #{tpu_custom_call.1} parent=1 // pred_region
      %s141 = ssub.s32 96, 96
      %142 = vsyncadd [#allocation18], %s141
      %s144 = sshll.u32 [#allocation19], 4
      %s145 = int_to_ptr.vmem [resolvable:$true] %s144
      %147 = dma.hbm_to_vmem [thread:$0]  %s10, 96, %s145, [#allocation18]
    $region45: #{tpu_custom_call.1} parent=1 // pred_fallthru
      _
    // Predicated region
    $region46: #{tpu_custom_call.1} parent=1 // pred_check
      _
    $region47: #{tpu_custom_call.1} parent=1 // pred_check_branch
      %149 = sbr.rel (0) target = $region49
    $region48: #{tpu_custom_call.1} parent=1 // pred_region
      %s151 = ssub.s32 6144, 6144
      %152 = vsyncadd [#allocation21], %s151
      %s153 = sshll.u32 [#allocation20], 4
      %s154 = int_to_ptr.vmem [resolvable:$true] %s153
      %159 = dma.hbm_to_vmem [thread:$0]  %s11, 6144, %s154, [#allocation21], 64, 64, 4
    $region49: #{tpu_custom_call.1} parent=1 // pred_fallthru
      _
    // Predicated region
    $region50: #{tpu_custom_call.1} parent=1 // pred_check
      _
    $region51: #{tpu_custom_call.1} parent=1 // pred_check_branch
      %161 = sbr.rel (0) target = $region53
    $region52: #{tpu_custom_call.1} parent=1 // pred_region
      %s163 = ssub.s32 16, 16
      %164 = vsyncadd [#allocation21], %s163
      %s166 = sshll.u32 [#allocation22], 4
      %s167 = int_to_ptr.vmem [resolvable:$true] %s166
      %169 = dma.hbm_to_vmem [thread:$0]  %s12, 16, %s167, [#allocation21]
    $region53: #{tpu_custom_call.1} parent=1 // pred_fallthru
      _
    // Predicated region
    $region54: #{tpu_custom_call.1} parent=1 // pred_check
      _
    $region55: #{tpu_custom_call.1} parent=1 // pred_check_branch
      %171 = sbr.rel (0) target = $region57
    $region56: #{tpu_custom_call.1} parent=1 // pred_region
      %172 = dma.done [#allocation3], 512
    $region57: #{tpu_custom_call.1} parent=1 // pred_fallthru
      _
    // Predicated region
    $region58: #{tpu_custom_call.1} parent=1 // pred_check
      _
    $region59: #{tpu_custom_call.1} parent=1 // pred_check_branch
      %174 = sbr.rel (0) target = $region61
    $region60: #{tpu_custom_call.1} parent=1 // pred_region
      %175 = dma.done [#allocation6], 6144
    $region61: #{tpu_custom_call.1} parent=1 // pred_fallthru
      _
    // Predicated region
    $region62: #{tpu_custom_call.1} parent=1 // pred_check
      _
    $region63: #{tpu_custom_call.1} parent=1 // pred_check_branch
      %177 = sbr.rel (0) target = $region65
    $region64: #{tpu_custom_call.1} parent=1 // pred_region
      %178 = dma.done [#allocation6], 96
    $region65: #{tpu_custom_call.1} parent=1 // pred_fallthru
      _
    // Predicated region
    $region66: #{tpu_custom_call.1} parent=1 // pred_check
      _
    $region67: #{tpu_custom_call.1} parent=1 // pred_check_branch
      %180 = sbr.rel (0) target = $region69
    $region68: #{tpu_custom_call.1} parent=1 // pred_region
      %181 = dma.done [#allocation9], 36864
    $region69: #{tpu_custom_call.1} parent=1 // pred_fallthru
      _
    // Predicated region
    $region70: #{tpu_custom_call.1} parent=1 // pred_check
      _
    $region71: #{tpu_custom_call.1} parent=1 // pred_check_branch
      %183 = sbr.rel (0) target = $region73
    $region72: #{tpu_custom_call.1} parent=1 // pred_region
      %184 = dma.done [#allocation9], 96
    $region73: #{tpu_custom_call.1} parent=1 // pred_fallthru
      _
    // Predicated region
    $region74: #{tpu_custom_call.1} parent=1 // pred_check
      _
    $region75: #{tpu_custom_call.1} parent=1 // pred_check_branch
      %186 = sbr.rel (0) target = $region77
    $region76: #{tpu_custom_call.1} parent=1 // pred_region
      %187 = dma.done [#allocation12], 12288
    $region77: #{tpu_custom_call.1} parent=1 // pred_fallthru
      _
    // Predicated region
    $region78: #{tpu_custom_call.1} parent=1 // pred_check
      _
    $region79: #{tpu_custom_call.1} parent=1 // pred_check_branch
      %189 = sbr.rel (0) target = $region81
    $region80: #{tpu_custom_call.1} parent=1 // pred_region
      %190 = dma.done [#allocation12], 32
    $region81: #{tpu_custom_call.1} parent=1 // pred_fallthru
      _
    // Predicated region
    $region82: #{tpu_custom_call.1} parent=1 // pred_check
      _
    $region83: #{tpu_custom_call.1} parent=1 // pred_check_branch
      %192 = sbr.rel (0) target = $region85
    $region84: #{tpu_custom_call.1} parent=1 // pred_region
      %193 = dma.done [#allocation15], 12288
    $region85: #{tpu_custom_call.1} parent=1 // pred_fallthru
      _
    // Predicated region
    $region86: #{tpu_custom_call.1} parent=1 // pred_check
      _
    $region87: #{tpu_custom_call.1} parent=1 // pred_check_branch
      %195 = sbr.rel (0) target = $region89
    $region88: #{tpu_custom_call.1} parent=1 // pred_region
      %196 = dma.done [#allocation15], 96
    $region89: #{tpu_custom_call.1} parent=1 // pred_fallthru
      _
    // Predicated region
    $region90: #{tpu_custom_call.1} parent=1 // pred_check
      _
    $region91: #{tpu_custom_call.1} parent=1 // pred_check_branch
      %198 = sbr.rel (0) target = $region93
    $region92: #{tpu_custom_call.1} parent=1 // pred_region
      %199 = dma.done [#allocation18], 36864
    $region93: #{tpu_custom_call.1} parent=1 // pred_fallthru
      _
    // Predicated region
    $region94: #{tpu_custom_call.1} parent=1 // pred_check
      _
    $region95: #{tpu_custom_call.1} parent=1 // pred_check_branch
      %201 = sbr.rel (0) target = $region97
    $region96: #{tpu_custom_call.1} parent=1 // pred_region
      %202 = dma.done [#allocation18], 96
    $region97: #{tpu_custom_call.1} parent=1 // pred_fallthru
      _
    // Predicated region
    $region98: #{tpu_custom_call.1} parent=1 // pred_check
      _
    $region99: #{tpu_custom_call.1} parent=1 // pred_check_branch
      %204 = sbr.rel (0) target = $region101
    $region100: #{tpu_custom_call.1} parent=1 // pred_region
      %205 = dma.done [#allocation21], 6144
    $region101: #{tpu_custom_call.1} parent=1 // pred_fallthru
      _
    // Predicated region
    $region102: #{tpu_custom_call.1} parent=1 // pred_check
      _
    $region103: #{tpu_custom_call.1} parent=1 // pred_check_branch
      %207 = sbr.rel (0) target = $region105
    $region104: #{tpu_custom_call.1} parent=1 // pred_region
      %208 = dma.done [#allocation21], 16
    $region105: #{tpu_custom_call.1} parent=1 // pred_fallthru
      _
    %v210 = vld [vmem:[#allocation2] sm:$0xff]
    %v211 = vld [vmem:[#allocation2 + $0x8] sm:$0xff]
    %v212 = vld [vmem:[#allocation2 + $0x10] sm:$0xff]
    %v213 = vld [vmem:[#allocation2 + $0x18] sm:$0xff]
    %v214 = vpack.c.bf16 %v212, %v210
    %v215 = vld [vmem:[#allocation5] sm:$0xff]
    %v216 = vld [vmem:[#allocation5 + $0x8] sm:$0xff]
    %v217 = vld [vmem:[#allocation5 + $0x10] sm:$0xff]
    %v218 = vld [vmem:[#allocation5 + $0x18] sm:$0xff]
    %v219 = vld [vmem:[#allocation5 + $0x20] sm:$0xff]
    %v220 = vld [vmem:[#allocation5 + $0x28] sm:$0xff]
    %v221 = vld [vmem:[#allocation5 + $0x30] sm:$0xff]
    %v222 = vld [vmem:[#allocation5 + $0x38] sm:$0xff]
    %v223 = vld [vmem:[#allocation5 + $0x40] sm:$0xff]
    %v224 = vld [vmem:[#allocation5 + $0x48] sm:$0xff]
    %v225 = vld [vmem:[#allocation5 + $0x50] sm:$0xff]
    %v226 = vld [vmem:[#allocation5 + $0x58] sm:$0xff]
    %v227 = vld [vmem:[#allocation5 + $0x60] sm:$0xff]
    %v228 = vld [vmem:[#allocation5 + $0x68] sm:$0xff]
    %v229 = vld [vmem:[#allocation5 + $0x70] sm:$0xff]
    %v230 = vld [vmem:[#allocation5 + $0x78] sm:$0xff]
    %v231 = vld [vmem:[#allocation5 + $0x80] sm:$0xff]
    %v232 = vld [vmem:[#allocation5 + $0x88] sm:$0xff]
    %v233 = vld [vmem:[#allocation5 + $0x90] sm:$0xff]
    %v234 = vld [vmem:[#allocation5 + $0x98] sm:$0xff]
    %v235 = vld [vmem:[#allocation5 + $0xa0] sm:$0xff]
    %v236 = vld [vmem:[#allocation5 + $0xa8] sm:$0xff]
    %v237 = vld [vmem:[#allocation5 + $0xb0] sm:$0xff]
    %v238 = vld [vmem:[#allocation5 + $0xb8] sm:$0xff]
    %v239 = vld [vmem:[#allocation5 + $0xc0] sm:$0xff]
    %v240 = vld [vmem:[#allocation5 + $0xc8] sm:$0xff]
    %v241 = vld [vmem:[#allocation5 + $0xd0] sm:$0xff]
    %v242 = vld [vmem:[#allocation5 + $0xd8] sm:$0xff]
    %v243 = vld [vmem:[#allocation5 + $0xe0] sm:$0xff]
    %v244 = vld [vmem:[#allocation5 + $0xe8] sm:$0xff]
    %v245 = vld [vmem:[#allocation5 + $0xf0] sm:$0xff]
    %v246 = vld [vmem:[#allocation5 + $0xf8] sm:$0xff]
    %v247 = vld [vmem:[#allocation5 + $0x100] sm:$0xff]
    %v248 = vld [vmem:[#allocation5 + $0x108] sm:$0xff]
    %v249 = vld [vmem:[#allocation5 + $0x110] sm:$0xff]
    %v250 = vld [vmem:[#allocation5 + $0x118] sm:$0xff]
    %v251 = vld [vmem:[#allocation5 + $0x120] sm:$0xff]
    %v252 = vld [vmem:[#allocation5 + $0x128] sm:$0xff]
    %v253 = vld [vmem:[#allocation5 + $0x130] sm:$0xff]
    %v254 = vld [vmem:[#allocation5 + $0x138] sm:$0xff]
    %v255 = vld [vmem:[#allocation5 + $0x140] sm:$0xff]
    %v256 = vld [vmem:[#allocation5 + $0x148] sm:$0xff]
    %v257 = vld [vmem:[#allocation5 + $0x150] sm:$0xff]
    %v258 = vld [vmem:[#allocation5 + $0x158] sm:$0xff]
    %v259 = vld [vmem:[#allocation5 + $0x160] sm:$0xff]
    %v260 = vld [vmem:[#allocation5 + $0x168] sm:$0xff]
    %v261 = vld [vmem:[#allocation5 + $0x170] sm:$0xff]
    %v262 = vld [vmem:[#allocation5 + $0x178] sm:$0xff]
    %v263 = vld [vmem:[#allocation7] sm:$0x3f]
    %v265 = vlaneseq
    %v266 = vshrl.u32 %v265, 7
    %v267 = vsub.s32 0, %v266
    %v268 = vrot.slane %v263, %v267
    %v269 = vlaneseq
    %v270 = vshrl.u32 %v269, 7
    %v271 = vsub.s32 1, %v270
    %v272 = vrot.slane %v263, %v271
    %v273 = vlaneseq
    %v274 = vshrl.u32 %v273, 7
    %v275 = vsub.s32 2, %v274
    %v276 = vrot.slane %v263, %v275
    %v277 = vlaneseq
    %v278 = vshrl.u32 %v277, 7
    %v279 = vsub.s32 3, %v278
    %v280 = vrot.slane %v263, %v279
    %v281 = vlaneseq
    %v282 = vshrl.u32 %v281, 7
    %v283 = vsub.s32 4, %v282
    %v284 = vrot.slane %v263, %v283
    %v285 = vlaneseq
    %v286 = vshrl.u32 %v285, 7
    %v287 = vsub.s32 5, %v286
    %v288 = vrot.slane %v263, %v287
    %v343 = vunpack.c.l.b16 %v215
    %v344 = vunpack.c.h.b16 %v215
    %v345 = vunpack.c.l.b16 %v216
    %v346 = vunpack.c.h.b16 %v216
    %v347 = vunpack.c.l.b16 %v217
    %v348 = vunpack.c.h.b16 %v217
    %v349 = vunpack.c.l.b16 %v218
    %v350 = vunpack.c.h.b16 %v218
    %v351 = vunpack.c.l.b16 %v219
    %v352 = vunpack.c.h.b16 %v219
    %v353 = vunpack.c.l.b16 %v220
    %v354 = vunpack.c.h.b16 %v220
    %v355 = vunpack.c.l.b16 %v221
    %v356 = vunpack.c.h.b16 %v221
    %v357 = vunpack.c.l.b16 %v222
    %v358 = vunpack.c.h.b16 %v222
    %v359 = vunpack.c.l.b16 %v223
    %v360 = vunpack.c.h.b16 %v223
    %v361 = vunpack.c.l.b16 %v224
    %v362 = vunpack.c.h.b16 %v224
    %v363 = vunpack.c.l.b16 %v225
    %v364 = vunpack.c.h.b16 %v225
    %v365 = vunpack.c.l.b16 %v226
    %v366 = vunpack.c.h.b16 %v226
    %v367 = vunpack.c.l.b16 %v227
    %v368 = vunpack.c.h.b16 %v227
    %v369 = vunpack.c.l.b16 %v228
    %v370 = vunpack.c.h.b16 %v228
    %v371 = vunpack.c.l.b16 %v229
    %v372 = vunpack.c.h.b16 %v229
    %v373 = vunpack.c.l.b16 %v230
    %v374 = vunpack.c.h.b16 %v230
    %v375 = vunpack.c.l.b16 %v231
    %v376 = vunpack.c.h.b16 %v231
    %v377 = vunpack.c.l.b16 %v232
    %v378 = vunpack.c.h.b16 %v232
    %v379 = vunpack.c.l.b16 %v233
    %v380 = vunpack.c.h.b16 %v233
    %v381 = vunpack.c.l.b16 %v234
    %v382 = vunpack.c.h.b16 %v234
    %v383 = vunpack.c.l.b16 %v235
    %v384 = vunpack.c.h.b16 %v235
    %v385 = vunpack.c.l.b16 %v236
    %v386 = vunpack.c.h.b16 %v236
    %v387 = vunpack.c.l.b16 %v237
    %v388 = vunpack.c.h.b16 %v237
    %v389 = vunpack.c.l.b16 %v238
    %v390 = vunpack.c.h.b16 %v238
    %v391 = vunpack.c.l.b16 %v239
    %v392 = vunpack.c.h.b16 %v239
    %v393 = vunpack.c.l.b16 %v240
    %v394 = vunpack.c.h.b16 %v240
    %v395 = vunpack.c.l.b16 %v241
    %v396 = vunpack.c.h.b16 %v241
    %v397 = vunpack.c.l.b16 %v242
    %v398 = vunpack.c.h.b16 %v242
    %v399 = vunpack.c.l.b16 %v243
    %v400 = vunpack.c.h.b16 %v243
    %v401 = vunpack.c.l.b16 %v244
    %v402 = vunpack.c.h.b16 %v244
    %v403 = vunpack.c.l.b16 %v245
    %v404 = vunpack.c.h.b16 %v245
    %v405 = vunpack.c.l.b16 %v246
    %v406 = vunpack.c.h.b16 %v246
    %v407 = vunpack.c.l.b16 %v247
    %v408 = vunpack.c.h.b16 %v247
    %v409 = vunpack.c.l.b16 %v248
    %v410 = vunpack.c.h.b16 %v248
    %v411 = vunpack.c.l.b16 %v249
    %v412 = vunpack.c.h.b16 %v249
    %v413 = vunpack.c.l.b16 %v250
    %v414 = vunpack.c.h.b16 %v250
    %v415 = vunpack.c.l.b16 %v251
    %v416 = vunpack.c.h.b16 %v251
    %v417 = vunpack.c.l.b16 %v252
    %v418 = vunpack.c.h.b16 %v252
    %v419 = vunpack.c.l.b16 %v253
    %v420 = vunpack.c.h.b16 %v253
    %v421 = vunpack.c.l.b16 %v254
    %v422 = vunpack.c.h.b16 %v254
    %v423 = vunpack.c.l.b16 %v255
    %v424 = vunpack.c.h.b16 %v255
    %v425 = vunpack.c.l.b16 %v256
    %v426 = vunpack.c.h.b16 %v256
    %v427 = vunpack.c.l.b16 %v257
    %v428 = vunpack.c.h.b16 %v257
    %v429 = vunpack.c.l.b16 %v258
    %v430 = vunpack.c.h.b16 %v258
    %v431 = vunpack.c.l.b16 %v259
    %v432 = vunpack.c.h.b16 %v259
    %v433 = vunpack.c.l.b16 %v260
    %v434 = vunpack.c.h.b16 %v260
    %v435 = vunpack.c.l.b16 %v261
    %v436 = vunpack.c.h.b16 %v261
    %v437 = vunpack.c.l.b16 %v262
    %v438 = vunpack.c.h.b16 %v262
    %v439 = vpack.c.b16 %v349, %v343
    %v440 = vpack.c.b16 %v350, %v344
    %v441 = vpack.c.b16 %v351, %v345
    %v442 = vpack.c.b16 %v352, %v346
    %v443 = vpack.c.b16 %v353, %v347
    %v444 = vpack.c.b16 %v354, %v348
    %v445 = vpack.c.b16 %v361, %v355
    %v446 = vpack.c.b16 %v362, %v356
    %v447 = vpack.c.b16 %v363, %v357
    %v448 = vpack.c.b16 %v364, %v358
    %v449 = vpack.c.b16 %v365, %v359
    %v450 = vpack.c.b16 %v366, %v360
    %v451 = vpack.c.b16 %v373, %v367
    %v452 = vpack.c.b16 %v374, %v368
    %v453 = vpack.c.b16 %v375, %v369
    %v454 = vpack.c.b16 %v376, %v370
    %v455 = vpack.c.b16 %v377, %v371
    %v456 = vpack.c.b16 %v378, %v372
    %v457 = vpack.c.b16 %v385, %v379
    %v458 = vpack.c.b16 %v386, %v380
    %v459 = vpack.c.b16 %v387, %v381
    %v460 = vpack.c.b16 %v388, %v382
    %v461 = vpack.c.b16 %v389, %v383
    %v462 = vpack.c.b16 %v390, %v384
    %v463 = vpack.c.b16 %v397, %v391
    %v464 = vpack.c.b16 %v398, %v392
    %v465 = vpack.c.b16 %v399, %v393
    %v466 = vpack.c.b16 %v400, %v394
    %v467 = vpack.c.b16 %v401, %v395
    %v468 = vpack.c.b16 %v402, %v396
    %v469 = vpack.c.b16 %v409, %v403
    %v470 = vpack.c.b16 %v410, %v404
    %v471 = vpack.c.b16 %v411, %v405
    %v472 = vpack.c.b16 %v412, %v406
    %v473 = vpack.c.b16 %v413, %v407
    %v474 = vpack.c.b16 %v414, %v408
    %v475 = vpack.c.b16 %v421, %v415
    %v476 = vpack.c.b16 %v422, %v416
    %v477 = vpack.c.b16 %v423, %v417
    %v478 = vpack.c.b16 %v424, %v418
    %v479 = vpack.c.b16 %v425, %v419
    %v480 = vpack.c.b16 %v426, %v420
    %v481 = vpack.c.b16 %v433, %v427
    %v482 = vpack.c.b16 %v434, %v428
    %v483 = vpack.c.b16 %v435, %v429
    %v484 = vpack.c.b16 %v436, %v430
    %v485 = vpack.c.b16 %v437, %v431
    %v486 = vpack.c.b16 %v438, %v432
    %535 = vmatprep.subr.bf16.mxu0 %v440
    %536 = vmatpush1.bf16.msra.mxu0 %v439
    %537 = vmatprep.subr.bf16.mxu0 %v446
    %538 = vmatpush1.bf16.msra.mxu0 %v445
    %539 = vmatprep.subr.bf16.mxu0 %v452
    %540 = vmatpush1.bf16.msra.mxu0 %v451
    %541 = vmatprep.subr.bf16.mxu0 %v458
    %542 = vmatpush1.bf16.msra.mxu0 %v457
    %543 = vmatprep.subr.bf16.mxu0 %v464
    %544 = vmatpush1.bf16.msra.mxu0 %v463
    %545 = vmatprep.subr.bf16.mxu0 %v470
    %546 = vmatpush1.bf16.msra.mxu0 %v469
    %547 = vmatprep.subr.bf16.mxu0 %v476
    %548 = vmatpush1.bf16.msra.mxu0 %v475
    %549 = vmatprep.subr.bf16.mxu0 %v482
    %550 = vmatpush1.bf16.msra.mxu0 %v481
    %551 = vmatprep.subr.bf16.mxu0 0
    %552 = vmatpush1.bf16.msra.mxu0 0
    %553 = vmatprep.subr.bf16.mxu0 0
    %554 = vmatpush1.bf16.msra.mxu0 0
    %555 = vmatprep.subr.bf16.mxu0 0
    %556 = vmatpush1.bf16.msra.mxu0 0
    %557 = vmatprep.subr.bf16.mxu0 0
    %558 = vmatpush1.bf16.msra.mxu0 0
    %559 = vmatprep.subr.bf16.mxu0 0
    %560 = vmatpush1.bf16.msra.mxu0 0
    %561 = vmatprep.subr.bf16.mxu0 0
    %562 = vmatpush1.bf16.msra.mxu0 0
    %563 = vmatprep.subr.bf16.mxu0 0
    %564 = vmatpush1.bf16.msra.mxu0 0
    %565 = vmatprep.subr.bf16.mxu0 0
    %566 = vmatpush1.bf16.msra.mxu0 0
    %567 = vmatprep.mubr.bf16.mxu0 0
    %568 = vmatmul.mubr.bf16.gmra.mrb[0].mxu0 %v214
    %v569 = vpop.f32.mrb[0].mxu0
    %v570 = vadd.f32 %v268, %v569
    %v571 = vpop.f32.mrb[0].mxu0
    %v572 = vadd.f32 %v272, %v571
    %v573 = vpop.f32.mrb[0].mxu0
    %v574 = vadd.f32 %v268, %v573
    %v575 = vpop.f32.mrb[0].mxu0
    %v576 = vadd.f32 %v272, %v575
    %577 = vdwg.mxu0
    %578 = vmatprep.subr.bf16.mxu0 %v442
    %579 = vmatpush1.bf16.msra.mxu0 %v441
    %580 = vmatprep.subr.bf16.mxu0 %v448
    %581 = vmatpush1.bf16.msra.mxu0 %v447
    %582 = vmatprep.subr.bf16.mxu0 %v454
    %583 = vmatpush1.bf16.msra.mxu0 %v453
    %584 = vmatprep.subr.bf16.mxu0 %v460
    %585 = vmatpush1.bf16.msra.mxu0 %v459
    %586 = vmatprep.subr.bf16.mxu0 %v466
    %587 = vmatpush1.bf16.msra.mxu0 %v465
    %588 = vmatprep.subr.bf16.mxu0 %v472
    %589 = vmatpush1.bf16.msra.mxu0 %v471
    %590 = vmatprep.subr.bf16.mxu0 %v478
    %591 = vmatpush1.bf16.msra.mxu0 %v477
    %592 = vmatprep.subr.bf16.mxu0 %v484
    %593 = vmatpush1.bf16.msra.mxu0 %v483
    %594 = vmatprep.subr.bf16.mxu0 0
    %595 = vmatpush1.bf16.msra.mxu0 0
    %596 = vmatprep.subr.bf16.mxu0 0
    %597 = vmatpush1.bf16.msra.mxu0 0
    %598 = vmatprep.subr.bf16.mxu0 0
    %599 = vmatpush1.bf16.msra.mxu0 0
    %600 = vmatprep.subr.bf16.mxu0 0
    %601 = vmatpush1.bf16.msra.mxu0 0
    %602 = vmatprep.subr.bf16.mxu0 0
    %603 = vmatpush1.bf16.msra.mxu0 0
    %604 = vmatprep.subr.bf16.mxu0 0
    %605 = vmatpush1.bf16.msra.mxu0 0
    %606 = vmatprep.subr.bf16.mxu0 0
    %607 = vmatpush1.bf16.msra.mxu0 0
    %608 = vmatprep.subr.bf16.mxu0 0
    %609 = vmatpush1.bf16.msra.mxu0 0
    %610 = vmatprep.mubr.bf16.mxu0 0
    %611 = vmatmul.mubr.bf16.gmra.mrb[0].mxu0 %v214
    %v612 = vpop.f32.mrb[0].mxu0
    %v613 = vadd.f32 %v276, %v612
    %v614 = vpop.f32.mrb[0].mxu0
    %v615 = vadd.f32 %v280, %v614
    %v616 = vpop.f32.mrb[0].mxu0
    %v617 = vadd.f32 %v276, %v616
    %v618 = vpop.f32.mrb[0].mxu0
    %v619 = vadd.f32 %v280, %v618
    %620 = vdwg.mxu0
    %621 = vmatprep.subr.bf16.mxu0 %v444
    %622 = vmatpush1.bf16.msra.mxu0 %v443
    %623 = vmatprep.subr.bf16.mxu0 %v450
    %624 = vmatpush1.bf16.msra.mxu0 %v449
    %625 = vmatprep.subr.bf16.mxu0 %v456
    %626 = vmatpush1.bf16.msra.mxu0 %v455
    %627 = vmatprep.subr.bf16.mxu0 %v462
    %628 = vmatpush1.bf16.msra.mxu0 %v461
    %629 = vmatprep.subr.bf16.mxu0 %v468
    %630 = vmatpush1.bf16.msra.mxu0 %v467
    %631 = vmatprep.subr.bf16.mxu0 %v474
    %632 = vmatpush1.bf16.msra.mxu0 %v473
    %633 = vmatprep.subr.bf16.mxu0 %v480
    %634 = vmatpush1.bf16.msra.mxu0 %v479
    %635 = vmatprep.subr.bf16.mxu0 %v486
    %636 = vmatpush1.bf16.msra.mxu0 %v485
    %637 = vmatprep.subr.bf16.mxu0 0
    %638 = vmatpush1.bf16.msra.mxu0 0
    %639 = vmatprep.subr.bf16.mxu0 0
    %640 = vmatpush1.bf16.msra.mxu0 0
    %641 = vmatprep.subr.bf16.mxu0 0
    %642 = vmatpush1.bf16.msra.mxu0 0
    %643 = vmatprep.subr.bf16.mxu0 0
    %644 = vmatpush1.bf16.msra.mxu0 0
    %645 = vmatprep.subr.bf16.mxu0 0
    %646 = vmatpush1.bf16.msra.mxu0 0
    %647 = vmatprep.subr.bf16.mxu0 0
    %648 = vmatpush1.bf16.msra.mxu0 0
    %649 = vmatprep.subr.bf16.mxu0 0
    %650 = vmatpush1.bf16.msra.mxu0 0
    %651 = vmatprep.subr.bf16.mxu0 0
    %652 = vmatpush1.bf16.msra.mxu0 0
    %653 = vmatprep.mubr.bf16.mxu0 0
    %654 = vmatmul.mubr.bf16.gmra.mrb[0].mxu0 %v214
    %v655 = vpop.f32.mrb[0].mxu0
    %v656 = vadd.f32 %v284, %v655
    %v657 = vpop.f32.mrb[0].mxu0
    %v658 = vadd.f32 %v288, %v657
    %v659 = vpop.f32.mrb[0].mxu0
    %v660 = vadd.f32 %v284, %v659
    %v661 = vpop.f32.mrb[0].mxu0
    %v662 = vadd.f32 %v288, %v661
    %663 = vdwg.mxu0
    %v664 = vmax.f32 %v570, 0.0
    %v665 = vmax.f32 %v572, 0.0
    %v666 = vmax.f32 %v613, 0.0
    %v667 = vmax.f32 %v615, 0.0
    %v668 = vmax.f32 %v656, 0.0
    %v669 = vmax.f32 %v658, 0.0
    %v670 = vmax.f32 %v574, 0.0
    %v671 = vmax.f32 %v576, 0.0
    %v672 = vmax.f32 %v617, 0.0
    %v673 = vmax.f32 %v619, 0.0
    %v674 = vmax.f32 %v660, 0.0
    %v675 = vmax.f32 %v662, 0.0
    %v676 = vpack.c.bf16 %v670, %v664
    %v677 = vpack.c.bf16 %v671, %v665
    %v678 = vpack.c.bf16 %v672, %v666
    %v679 = vpack.c.bf16 %v673, %v667
    %v680 = vpack.c.bf16 %v674, %v668
    %v681 = vpack.c.bf16 %v675, %v669
    %v682 = vld [vmem:[#allocation8] sm:$0xff]
    %v683 = vld [vmem:[#allocation8 + $0x8] sm:$0xff]
    %v684 = vld [vmem:[#allocation8 + $0x10] sm:$0xff]
    %v685 = vld [vmem:[#allocation8 + $0x18] sm:$0xff]
    %v686 = vld [vmem:[#allocation8 + $0x20] sm:$0xff]
    %v687 = vld [vmem:[#allocation8 + $0x28] sm:$0xff]
    %v688 = vld [vmem:[#allocation8 + $0x30] sm:$0xff]
    %v689 = vld [vmem:[#allocation8 + $0x38] sm:$0xff]
    %v690 = vld [vmem:[#allocation8 + $0x40] sm:$0xff]
    %v691 = vld [vmem:[#allocation8 + $0x48] sm:$0xff]
    %v692 = vld [vmem:[#allocation8 + $0x50] sm:$0xff]
    %v693 = vld [vmem:[#allocation8 + $0x58] sm:$0xff]
    %v694 = vld [vmem:[#allocation8 + $0x60] sm:$0xff]
    %v695 = vld [vmem:[#allocation8 + $0x68] sm:$0xff]
    %v696 = vld [vmem:[#allocation8 + $0x70] sm:$0xff]
    %v697 = vld [vmem:[#allocation8 + $0x78] sm:$0xff]
    %v698 = vld [vmem:[#allocation8 + $0x80] sm:$0xff]
    %v699 = vld [vmem:[#allocation8 + $0x88] sm:$0xff]
    %v700 = vld [vmem:[#allocation8 + $0x90] sm:$0xff]
    %v701 = vld [vmem:[#allocation8 + $0x98] sm:$0xff]
    %v702 = vld [vmem:[#allocation8 + $0xa0] sm:$0xff]
    %v703 = vld [vmem:[#allocation8 + $0xa8] sm:$0xff]
    %v704 = vld [vmem:[#allocation8 + $0xb0] sm:$0xff]
    %v705 = vld [vmem:[#allocation8 + $0xb8] sm:$0xff]
    %v706 = vld [vmem:[#allocation8 + $0xc0] sm:$0xff]
    %v707 = vld [vmem:[#allocation8 + $0xc8] sm:$0xff]
    %v708 = vld [vmem:[#allocation8 + $0xd0] sm:$0xff]
    %v709 = vld [vmem:[#allocation8 + $0xd8] sm:$0xff]
    %v710 = vld [vmem:[#allocation8 + $0xe0] sm:$0xff]
    %v711 = vld [vmem:[#allocation8 + $0xe8] sm:$0xff]
    %v712 = vld [vmem:[#allocation8 + $0xf0] sm:$0xff]
    %v713 = vld [vmem:[#allocation8 + $0xf8] sm:$0xff]
    %v714 = vld [vmem:[#allocation8 + $0x100] sm:$0xff]
    %v715 = vld [vmem:[#allocation8 + $0x108] sm:$0xff]
    %v716 = vld [vmem:[#allocation8 + $0x110] sm:$0xff]
    %v717 = vld [vmem:[#allocation8 + $0x118] sm:$0xff]
    %v718 = vld [vmem:[#allocation8 + $0x120] sm:$0xff]
    %v719 = vld [vmem:[#allocation8 + $0x128] sm:$0xff]
    %v720 = vld [vmem:[#allocation8 + $0x130] sm:$0xff]
    %v721 = vld [vmem:[#allocation8 + $0x138] sm:$0xff]
    %v722 = vld [vmem:[#allocation8 + $0x140] sm:$0xff]
    %v723 = vld [vmem:[#allocation8 + $0x148] sm:$0xff]
    %v724 = vld [vmem:[#allocation8 + $0x150] sm:$0xff]
    %v725 = vld [vmem:[#allocation8 + $0x158] sm:$0xff]
    %v726 = vld [vmem:[#allocation8 + $0x160] sm:$0xff]
    %v727 = vld [vmem:[#allocation8 + $0x168] sm:$0xff]
    %v728 = vld [vmem:[#allocation8 + $0x170] sm:$0xff]
    %v729 = vld [vmem:[#allocation8 + $0x178] sm:$0xff]
    %v730 = vld [vmem:[#allocation8 + $0x180] sm:$0xff]
    %v731 = vld [vmem:[#allocation8 + $0x188] sm:$0xff]
    %v732 = vld [vmem:[#allocation8 + $0x190] sm:$0xff]
    %v733 = vld [vmem:[#allocation8 + $0x198] sm:$0xff]
    %v734 = vld [vmem:[#allocation8 + $0x1a0] sm:$0xff]
    %v735 = vld [vmem:[#allocation8 + $0x1a8] sm:$0xff]
    %v736 = vld [vmem:[#allocation8 + $0x1b0] sm:$0xff]
    %v737 = vld [vmem:[#allocation8 + $0x1b8] sm:$0xff]
    %v738 = vld [vmem:[#allocation8 + $0x1c0] sm:$0xff]
    %v739 = vld [vmem:[#allocation8 + $0x1c8] sm:$0xff]
    %v740 = vld [vmem:[#allocation8 + $0x1d0] sm:$0xff]
    %v741 = vld [vmem:[#allocation8 + $0x1d8] sm:$0xff]
    %v742 = vld [vmem:[#allocation8 + $0x1e0] sm:$0xff]
    %v743 = vld [vmem:[#allocation8 + $0x1e8] sm:$0xff]
    %v744 = vld [vmem:[#allocation8 + $0x1f0] sm:$0xff]
    %v745 = vld [vmem:[#allocation8 + $0x1f8] sm:$0xff]
    %v746 = vld [vmem:[#allocation8 + $0x200] sm:$0xff]
    %v747 = vld [vmem:[#allocation8 + $0x208] sm:$0xff]
    %v748 = vld [vmem:[#allocation8 + $0x210] sm:$0xff]
    %v749 = vld [vmem:[#allocation8 + $0x218] sm:$0xff]
    %v750 = vld [vmem:[#allocation8 + $0x220] sm:$0xff]
    %v751 = vld [vmem:[#allocation8 + $0x228] sm:$0xff]
    %v752 = vld [vmem:[#allocation8 + $0x230] sm:$0xff]
    %v753 = vld [vmem:[#allocation8 + $0x238] sm:$0xff]
    %v754 = vld [vmem:[#allocation8 + $0x240] sm:$0xff]
    %v755 = vld [vmem:[#allocation8 + $0x248] sm:$0xff]
    %v756 = vld [vmem:[#allocation8 + $0x250] sm:$0xff]
    %v757 = vld [vmem:[#allocation8 + $0x258] sm:$0xff]
    %v758 = vld [vmem:[#allocation8 + $0x260] sm:$0xff]
    %v759 = vld [vmem:[#allocation8 + $0x268] sm:$0xff]
    %v760 = vld [vmem:[#allocation8 + $0x270] sm:$0xff]
    %v761 = vld [vmem:[#allocation8 + $0x278] sm:$0xff]
    %v762 = vld [vmem:[#allocation8 + $0x280] sm:$0xff]
    %v763 = vld [vmem:[#allocation8 + $0x288] sm:$0xff]
    %v764 = vld [vmem:[#allocation8 + $0x290] sm:$0xff]
    %v765 = vld [vmem:[#allocation8 + $0x298] sm:$0xff]
    %v766 = vld [vmem:[#allocation8 + $0x2a0] sm:$0xff]
    %v767 = vld [vmem:[#allocation8 + $0x2a8] sm:$0xff]
    %v768 = vld [vmem:[#allocation8 + $0x2b0] sm:$0xff]
    %v769 = vld [vmem:[#allocation8 + $0x2b8] sm:$0xff]
    %v770 = vld [vmem:[#allocation8 + $0x2c0] sm:$0xff]
    %v771 = vld [vmem:[#allocation8 + $0x2c8] sm:$0xff]
    %v772 = vld [vmem:[#allocation8 + $0x2d0] sm:$0xff]
    %v773 = vld [vmem:[#allocation8 + $0x2d8] sm:$0xff]
    %v774 = vld [vmem:[#allocation8 + $0x2e0] sm:$0xff]
    %v775 = vld [vmem:[#allocation8 + $0x2e8] sm:$0xff]
    %v776 = vld [vmem:[#allocation8 + $0x2f0] sm:$0xff]
    %v777 = vld [vmem:[#allocation8 + $0x2f8] sm:$0xff]
    %v778 = vld [vmem:[#allocation8 + $0x300] sm:$0xff]
    %v779 = vld [vmem:[#allocation8 + $0x308] sm:$0xff]
    %v780 = vld [vmem:[#allocation8 + $0x310] sm:$0xff]
    %v781 = vld [vmem:[#allocation8 + $0x318] sm:$0xff]
    %v782 = vld [vmem:[#allocation8 + $0x320] sm:$0xff]
    %v783 = vld [vmem:[#allocation8 + $0x328] sm:$0xff]
    %v784 = vld [vmem:[#allocation8 + $0x330] sm:$0xff]
    %v785 = vld [vmem:[#allocation8 + $0x338] sm:$0xff]
    %v786 = vld [vmem:[#allocation8 + $0x340] sm:$0xff]
    %v787 = vld [vmem:[#allocation8 + $0x348] sm:$0xff]
    %v788 = vld [vmem:[#allocation8 + $0x350] sm:$0xff]
    %v789 = vld [vmem:[#allocation8 + $0x358] sm:$0xff]
    %v790 = vld [vmem:[#allocation8 + $0x360] sm:$0xff]
    %v791 = vld [vmem:[#allocation8 + $0x368] sm:$0xff]
    %v792 = vld [vmem:[#allocation8 + $0x370] sm:$0xff]
    %v793 = vld [vmem:[#allocation8 + $0x378] sm:$0xff]
    %v794 = vld [vmem:[#allocation8 + $0x380] sm:$0xff]
    %v795 = vld [vmem:[#allocation8 + $0x388] sm:$0xff]
    %v796 = vld [vmem:[#allocation8 + $0x390] sm:$0xff]
    %v797 = vld [vmem:[#allocation8 + $0x398] sm:$0xff]
    %v798 = vld [vmem:[#allocation8 + $0x3a0] sm:$0xff]
    %v799 = vld [vmem:[#allocation8 + $0x3a8] sm:$0xff]
    %v800 = vld [vmem:[#allocation8 + $0x3b0] sm:$0xff]
    %v801 = vld [vmem:[#allocation8 + $0x3b8] sm:$0xff]
    %v802 = vld [vmem:[#allocation8 + $0x3c0] sm:$0xff]
    %v803 = vld [vmem:[#allocation8 + $0x3c8] sm:$0xff]
    %v804 = vld [vmem:[#allocation8 + $0x3d0] sm:$0xff]
    %v805 = vld [vmem:[#allocation8 + $0x3d8] sm:$0xff]
    %v806 = vld [vmem:[#allocation8 + $0x3e0] sm:$0xff]
    %v807 = vld [vmem:[#allocation8 + $0x3e8] sm:$0xff]
    %v808 = vld [vmem:[#allocation8 + $0x3f0] sm:$0xff]
    %v809 = vld [vmem:[#allocation8 + $0x3f8] sm:$0xff]
    %v810 = vld [vmem:[#allocation8 + $0x400] sm:$0xff]
    %v811 = vld [vmem:[#allocation8 + $0x408] sm:$0xff]
    %v812 = vld [vmem:[#allocation8 + $0x410] sm:$0xff]
    %v813 = vld [vmem:[#allocation8 + $0x418] sm:$0xff]
    %v814 = vld [vmem:[#allocation8 + $0x420] sm:$0xff]
    %v815 = vld [vmem:[#allocation8 + $0x428] sm:$0xff]
    %v816 = vld [vmem:[#allocation8 + $0x430] sm:$0xff]
    %v817 = vld [vmem:[#allocation8 + $0x438] sm:$0xff]
    %v818 = vld [vmem:[#allocation8 + $0x440] sm:$0xff]
    %v819 = vld [vmem:[#allocation8 + $0x448] sm:$0xff]
    %v820 = vld [vmem:[#allocation8 + $0x450] sm:$0xff]
    %v821 = vld [vmem:[#allocation8 + $0x458] sm:$0xff]
    %v822 = vld [vmem:[#allocation8 + $0x460] sm:$0xff]
    %v823 = vld [vmem:[#allocation8 + $0x468] sm:$0xff]
    %v824 = vld [vmem:[#allocation8 + $0x470] sm:$0xff]
    %v825 = vld [vmem:[#allocation8 + $0x478] sm:$0xff]
    %v826 = vld [vmem:[#allocation8 + $0x480] sm:$0xff]
    %v827 = vld [vmem:[#allocation8 + $0x488] sm:$0xff]
    %v828 = vld [vmem:[#allocation8 + $0x490] sm:$0xff]
    %v829 = vld [vmem:[#allocation8 + $0x498] sm:$0xff]
    %v830 = vld [vmem:[#allocation8 + $0x4a0] sm:$0xff]
    %v831 = vld [vmem:[#allocation8 + $0x4a8] sm:$0xff]
    %v832 = vld [vmem:[#allocation8 + $0x4b0] sm:$0xff]
    %v833 = vld [vmem:[#allocation8 + $0x4b8] sm:$0xff]
    %v834 = vld [vmem:[#allocation8 + $0x4c0] sm:$0xff]
    %v835 = vld [vmem:[#allocation8 + $0x4c8] sm:$0xff]
    %v836 = vld [vmem:[#allocation8 + $0x4d0] sm:$0xff]
    %v837 = vld [vmem:[#allocation8 + $0x4d8] sm:$0xff]
    %v838 = vld [vmem:[#allocation8 + $0x4e0] sm:$0xff]
    %v839 = vld [vmem:[#allocation8 + $0x4e8] sm:$0xff]
    %v840 = vld [vmem:[#allocation8 + $0x4f0] sm:$0xff]
    %v841 = vld [vmem:[#allocation8 + $0x4f8] sm:$0xff]
    %v842 = vld [vmem:[#allocation8 + $0x500] sm:$0xff]
    %v843 = vld [vmem:[#allocation8 + $0x508] sm:$0xff]
    %v844 = vld [vmem:[#allocation8 + $0x510] sm:$0xff]
    %v845 = vld [vmem:[#allocation8 + $0x518] sm:$0xff]
    %v846 = vld [vmem:[#allocation8 + $0x520] sm:$0xff]
    %v847 = vld [vmem:[#allocation8 + $0x528] sm:$0xff]
    %v848 = vld [vmem:[#allocation8 + $0x530] sm:$0xff]
    %v849 = vld [vmem:[#allocation8 + $0x538] sm:$0xff]
    %v850 = vld [vmem:[#allocation8 + $0x540] sm:$0xff]
    %v851 = vld [vmem:[#allocation8 + $0x548] sm:$0xff]
    %v852 = vld [vmem:[#allocation8 + $0x550] sm:$0xff]
    %v853 = vld [vmem:[#allocation8 + $0x558] sm:$0xff]
    %v854 = vld [vmem:[#allocation8 + $0x560] sm:$0xff]
    %v855 = vld [vmem:[#allocation8 + $0x568] sm:$0xff]
    %v856 = vld [vmem:[#allocation8 + $0x570] sm:$0xff]
    %v857 = vld [vmem:[#allocation8 + $0x578] sm:$0xff]
    %v858 = vld [vmem:[#allocation8 + $0x580] sm:$0xff]
    %v859 = vld [vmem:[#allocation8 + $0x588] sm:$0xff]
    %v860 = vld [vmem:[#allocation8 + $0x590] sm:$0xff]
    %v861 = vld [vmem:[#allocation8 + $0x598] sm:$0xff]
    %v862 = vld [vmem:[#allocation8 + $0x5a0] sm:$0xff]
    %v863 = vld [vmem:[#allocation8 + $0x5a8] sm:$0xff]
    %v864 = vld [vmem:[#allocation8 + $0x5b0] sm:$0xff]
    %v865 = vld [vmem:[#allocation8 + $0x5b8] sm:$0xff]
    %v866 = vld [vmem:[#allocation8 + $0x5c0] sm:$0xff]
    %v867 = vld [vmem:[#allocation8 + $0x5c8] sm:$0xff]
    %v868 = vld [vmem:[#allocation8 + $0x5d0] sm:$0xff]
    %v869 = vld [vmem:[#allocation8 + $0x5d8] sm:$0xff]
    %v870 = vld [vmem:[#allocation8 + $0x5e0] sm:$0xff]
    %v871 = vld [vmem:[#allocation8 + $0x5e8] sm:$0xff]
    %v872 = vld [vmem:[#allocation8 + $0x5f0] sm:$0xff]
    %v873 = vld [vmem:[#allocation8 + $0x5f8] sm:$0xff]
    %v874 = vld [vmem:[#allocation8 + $0x600] sm:$0xff]
    %v875 = vld [vmem:[#allocation8 + $0x608] sm:$0xff]
    %v876 = vld [vmem:[#allocation8 + $0x610] sm:$0xff]
    %v877 = vld [vmem:[#allocation8 + $0x618] sm:$0xff]
    %v878 = vld [vmem:[#allocation8 + $0x620] sm:$0xff]
    %v879 = vld [vmem:[#allocation8 + $0x628] sm:$0xff]
    %v880 = vld [vmem:[#allocation8 + $0x630] sm:$0xff]
    %v881 = vld [vmem:[#allocation8 + $0x638] sm:$0xff]
    %v882 = vld [vmem:[#allocation8 + $0x640] sm:$0xff]
    %v883 = vld [vmem:[#allocation8 + $0x648] sm:$0xff]
    %v884 = vld [vmem:[#allocation8 + $0x650] sm:$0xff]
    %v885 = vld [vmem:[#allocation8 + $0x658] sm:$0xff]
    %v886 = vld [vmem:[#allocation8 + $0x660] sm:$0xff]
    %v887 = vld [vmem:[#allocation8 + $0x668] sm:$0xff]
    %v888 = vld [vmem:[#allocation8 + $0x670] sm:$0xff]
    %v889 = vld [vmem:[#allocation8 + $0x678] sm:$0xff]
    %v890 = vld [vmem:[#allocation8 + $0x680] sm:$0xff]
    %v891 = vld [vmem:[#allocation8 + $0x688] sm:$0xff]
    %v892 = vld [vmem:[#allocation8 + $0x690] sm:$0xff]
    %v893 = vld [vmem:[#allocation8 + $0x698] sm:$0xff]
    %v894 = vld [vmem:[#allocation8 + $0x6a0] sm:$0xff]
    %v895 = vld [vmem:[#allocation8 + $0x6a8] sm:$0xff]
    %v896 = vld [vmem:[#allocation8 + $0x6b0] sm:$0xff]
    %v897 = vld [vmem:[#allocation8 + $0x6b8] sm:$0xff]
    %v898 = vld [vmem:[#allocation8 + $0x6c0] sm:$0xff]
    %v899 = vld [vmem:[#allocation8 + $0x6c8] sm:$0xff]
    %v900 = vld [vmem:[#allocation8 + $0x6d0] sm:$0xff]
    %v901 = vld [vmem:[#allocation8 + $0x6d8] sm:$0xff]
    %v902 = vld [vmem:[#allocation8 + $0x6e0] sm:$0xff]
    %v903 = vld [vmem:[#allocation8 + $0x6e8] sm:$0xff]
    %v904 = vld [vmem:[#allocation8 + $0x6f0] sm:$0xff]
    %v905 = vld [vmem:[#allocation8 + $0x6f8] sm:$0xff]
    %v906 = vld [vmem:[#allocation8 + $0x700] sm:$0xff]
    %v907 = vld [vmem:[#allocation8 + $0x708] sm:$0xff]
    %v908 = vld [vmem:[#allocation8 + $0x710] sm:$0xff]
    %v909 = vld [vmem:[#allocation8 + $0x718] sm:$0xff]
    %v910 = vld [vmem:[#allocation8 + $0x720] sm:$0xff]
    %v911 = vld [vmem:[#allocation8 + $0x728] sm:$0xff]
    %v912 = vld [vmem:[#allocation8 + $0x730] sm:$0xff]
    %v913 = vld [vmem:[#allocation8 + $0x738] sm:$0xff]
    %v914 = vld [vmem:[#allocation8 + $0x740] sm:$0xff]
    %v915 = vld [vmem:[#allocation8 + $0x748] sm:$0xff]
    %v916 = vld [vmem:[#allocation8 + $0x750] sm:$0xff]
    %v917 = vld [vmem:[#allocation8 + $0x758] sm:$0xff]
    %v918 = vld [vmem:[#allocation8 + $0x760] sm:$0xff]
    %v919 = vld [vmem:[#allocation8 + $0x768] sm:$0xff]
    %v920 = vld [vmem:[#allocation8 + $0x770] sm:$0xff]
    %v921 = vld [vmem:[#allocation8 + $0x778] sm:$0xff]
    %v922 = vld [vmem:[#allocation8 + $0x780] sm:$0xff]
    %v923 = vld [vmem:[#allocation8 + $0x788] sm:$0xff]
    %v924 = vld [vmem:[#allocation8 + $0x790] sm:$0xff]
    %v925 = vld [vmem:[#allocation8 + $0x798] sm:$0xff]
    %v926 = vld [vmem:[#allocation8 + $0x7a0] sm:$0xff]
    %v927 = vld [vmem:[#allocation8 + $0x7a8] sm:$0xff]
    %v928 = vld [vmem:[#allocation8 + $0x7b0] sm:$0xff]
    %v929 = vld [vmem:[#allocation8 + $0x7b8] sm:$0xff]
    %v930 = vld [vmem:[#allocation8 + $0x7c0] sm:$0xff]
    %v931 = vld [vmem:[#allocation8 + $0x7c8] sm:$0xff]
    %v932 = vld [vmem:[#allocation8 + $0x7d0] sm:$0xff]
    %v933 = vld [vmem:[#allocation8 + $0x7d8] sm:$0xff]
    %v934 = vld [vmem:[#allocation8 + $0x7e0] sm:$0xff]
    %v935 = vld [vmem:[#allocation8 + $0x7e8] sm:$0xff]
    %v936 = vld [vmem:[#allocation8 + $0x7f0] sm:$0xff]
    %v937 = vld [vmem:[#allocation8 + $0x7f8] sm:$0xff]
    %v938 = vld [vmem:[#allocation8 + $0x800] sm:$0xff]
    %v939 = vld [vmem:[#allocation8 + $0x808] sm:$0xff]
    %v940 = vld [vmem:[#allocation8 + $0x810] sm:$0xff]
    %v941 = vld [vmem:[#allocation8 + $0x818] sm:$0xff]
    %v942 = vld [vmem:[#allocation8 + $0x820] sm:$0xff]
    %v943 = vld [vmem:[#allocation8 + $0x828] sm:$0xff]
    %v944 = vld [vmem:[#allocation8 + $0x830] sm:$0xff]
    %v945 = vld [vmem:[#allocation8 + $0x838] sm:$0xff]
    %v946 = vld [vmem:[#allocation8 + $0x840] sm:$0xff]
    %v947 = vld [vmem:[#allocation8 + $0x848] sm:$0xff]
    %v948 = vld [vmem:[#allocation8 + $0x850] sm:$0xff]
    %v949 = vld [vmem:[#allocation8 + $0x858] sm:$0xff]
    %v950 = vld [vmem:[#allocation8 + $0x860] sm:$0xff]
    %v951 = vld [vmem:[#allocation8 + $0x868] sm:$0xff]
    %v952 = vld [vmem:[#allocation8 + $0x870] sm:$0xff]
    %v953 = vld [vmem:[#allocation8 + $0x878] sm:$0xff]
    %v954 = vld [vmem:[#allocation8 + $0x880] sm:$0xff]
    %v955 = vld [vmem:[#allocation8 + $0x888] sm:$0xff]
    %v956 = vld [vmem:[#allocation8 + $0x890] sm:$0xff]
    %v957 = vld [vmem:[#allocation8 + $0x898] sm:$0xff]
    %v958 = vld [vmem:[#allocation8 + $0x8a0] sm:$0xff]
    %v959 = vld [vmem:[#allocation8 + $0x8a8] sm:$0xff]
    %v960 = vld [vmem:[#allocation8 + $0x8b0] sm:$0xff]
    %v961 = vld [vmem:[#allocation8 + $0x8b8] sm:$0xff]
    %v962 = vld [vmem:[#allocation8 + $0x8c0] sm:$0xff]
    %v963 = vld [vmem:[#allocation8 + $0x8c8] sm:$0xff]
    %v964 = vld [vmem:[#allocation8 + $0x8d0] sm:$0xff]
    %v965 = vld [vmem:[#allocation8 + $0x8d8] sm:$0xff]
    %v966 = vld [vmem:[#allocation8 + $0x8e0] sm:$0xff]
    %v967 = vld [vmem:[#allocation8 + $0x8e8] sm:$0xff]
    %v968 = vld [vmem:[#allocation8 + $0x8f0] sm:$0xff]
    %v969 = vld [vmem:[#allocation8 + $0x8f8] sm:$0xff]
    %v970 = vld [vmem:[#allocation10] sm:$0x3f]
    %v972 = vlaneseq
    %v973 = vshrl.u32 %v972, 7
    %v974 = vsub.s32 0, %v973
    %v975 = vrot.slane %v970, %v974
    %v976 = vlaneseq
    %v977 = vshrl.u32 %v976, 7
    %v978 = vsub.s32 1, %v977
    %v979 = vrot.slane %v970, %v978
    %v980 = vlaneseq
    %v981 = vshrl.u32 %v980, 7
    %v982 = vsub.s32 2, %v981
    %v983 = vrot.slane %v970, %v982
    %v984 = vlaneseq
    %v985 = vshrl.u32 %v984, 7
    %v986 = vsub.s32 3, %v985
    %v987 = vrot.slane %v970, %v986
    %v988 = vlaneseq
    %v989 = vshrl.u32 %v988, 7
    %v990 = vsub.s32 4, %v989
    %v991 = vrot.slane %v970, %v990
    %v992 = vlaneseq
    %v993 = vshrl.u32 %v992, 7
    %v994 = vsub.s32 5, %v993
    %v995 = vrot.slane %v970, %v994
    %v1290 = vunpack.c.l.b16 %v682
    %v1291 = vunpack.c.h.b16 %v682
    %v1292 = vunpack.c.l.b16 %v683
    %v1293 = vunpack.c.h.b16 %v683
    %v1294 = vunpack.c.l.b16 %v684
    %v1295 = vunpack.c.h.b16 %v684
    %v1296 = vunpack.c.l.b16 %v685
    %v1297 = vunpack.c.h.b16 %v685
    %v1298 = vunpack.c.l.b16 %v686
    %v1299 = vunpack.c.h.b16 %v686
    %v1300 = vunpack.c.l.b16 %v687
    %v1301 = vunpack.c.h.b16 %v687
    %v1302 = vunpack.c.l.b16 %v688
    %v1303 = vunpack.c.h.b16 %v688
    %v1304 = vunpack.c.l.b16 %v689
    %v1305 = vunpack.c.h.b16 %v689
    %v1306 = vunpack.c.l.b16 %v690
    %v1307 = vunpack.c.h.b16 %v690
    %v1308 = vunpack.c.l.b16 %v691
    %v1309 = vunpack.c.h.b16 %v691
    %v1310 = vunpack.c.l.b16 %v692
    %v1311 = vunpack.c.h.b16 %v692
    %v1312 = vunpack.c.l.b16 %v693
    %v1313 = vunpack.c.h.b16 %v693
    %v1314 = vunpack.c.l.b16 %v694
    %v1315 = vunpack.c.h.b16 %v694
    %v1316 = vunpack.c.l.b16 %v695
    %v1317 = vunpack.c.h.b16 %v695
    %v1318 = vunpack.c.l.b16 %v696
    %v1319 = vunpack.c.h.b16 %v696
    %v1320 = vunpack.c.l.b16 %v697
    %v1321 = vunpack.c.h.b16 %v697
    %v1322 = vunpack.c.l.b16 %v698
    %v1323 = vunpack.c.h.b16 %v698
    %v1324 = vunpack.c.l.b16 %v699
    %v1325 = vunpack.c.h.b16 %v699
    %v1326 = vunpack.c.l.b16 %v700
    %v1327 = vunpack.c.h.b16 %v700
    %v1328 = vunpack.c.l.b16 %v701
    %v1329 = vunpack.c.h.b16 %v701
    %v1330 = vunpack.c.l.b16 %v702
    %v1331 = vunpack.c.h.b16 %v702
    %v1332 = vunpack.c.l.b16 %v703
    %v1333 = vunpack.c.h.b16 %v703
    %v1334 = vunpack.c.l.b16 %v704
    %v1335 = vunpack.c.h.b16 %v704
    %v1336 = vunpack.c.l.b16 %v705
    %v1337 = vunpack.c.h.b16 %v705
    %v1338 = vunpack.c.l.b16 %v706
    %v1339 = vunpack.c.h.b16 %v706
    %v1340 = vunpack.c.l.b16 %v707
    %v1341 = vunpack.c.h.b16 %v707
    %v1342 = vunpack.c.l.b16 %v708
    %v1343 = vunpack.c.h.b16 %v708
    %v1344 = vunpack.c.l.b16 %v709
    %v1345 = vunpack.c.h.b16 %v709
    %v1346 = vunpack.c.l.b16 %v710
    %v1347 = vunpack.c.h.b16 %v710
    %v1348 = vunpack.c.l.b16 %v711
    %v1349 = vunpack.c.h.b16 %v711
    %v1350 = vunpack.c.l.b16 %v712
    %v1351 = vunpack.c.h.b16 %v712
    %v1352 = vunpack.c.l.b16 %v713
    %v1353 = vunpack.c.h.b16 %v713
    %v1354 = vunpack.c.l.b16 %v714
    %v1355 = vunpack.c.h.b16 %v714
    %v1356 = vunpack.c.l.b16 %v715
    %v1357 = vunpack.c.h.b16 %v715
    %v1358 = vunpack.c.l.b16 %v716
    %v1359 = vunpack.c.h.b16 %v716
    %v1360 = vunpack.c.l.b16 %v717
    %v1361 = vunpack.c.h.b16 %v717
    %v1362 = vunpack.c.l.b16 %v718
    %v1363 = vunpack.c.h.b16 %v718
    %v1364 = vunpack.c.l.b16 %v719
    %v1365 = vunpack.c.h.b16 %v719
    %v1366 = vunpack.c.l.b16 %v720
    %v1367 = vunpack.c.h.b16 %v720
    %v1368 = vunpack.c.l.b16 %v721
    %v1369 = vunpack.c.h.b16 %v721
    %v1370 = vunpack.c.l.b16 %v722
    %v1371 = vunpack.c.h.b16 %v722
    %v1372 = vunpack.c.l.b16 %v723
    %v1373 = vunpack.c.h.b16 %v723
    %v1374 = vunpack.c.l.b16 %v724
    %v1375 = vunpack.c.h.b16 %v724
    %v1376 = vunpack.c.l.b16 %v725
    %v1377 = vunpack.c.h.b16 %v725
    %v1378 = vunpack.c.l.b16 %v726
    %v1379 = vunpack.c.h.b16 %v726
    %v1380 = vunpack.c.l.b16 %v727
    %v1381 = vunpack.c.h.b16 %v727
    %v1382 = vunpack.c.l.b16 %v728
    %v1383 = vunpack.c.h.b16 %v728
    %v1384 = vunpack.c.l.b16 %v729
    %v1385 = vunpack.c.h.b16 %v729
    %v1386 = vunpack.c.l.b16 %v730
    %v1387 = vunpack.c.h.b16 %v730
    %v1388 = vunpack.c.l.b16 %v731
    %v1389 = vunpack.c.h.b16 %v731
    %v1390 = vunpack.c.l.b16 %v732
    %v1391 = vunpack.c.h.b16 %v732
    %v1392 = vunpack.c.l.b16 %v733
    %v1393 = vunpack.c.h.b16 %v733
    %v1394 = vunpack.c.l.b16 %v734
    %v1395 = vunpack.c.h.b16 %v734
    %v1396 = vunpack.c.l.b16 %v735
    %v1397 = vunpack.c.h.b16 %v735
    %v1398 = vunpack.c.l.b16 %v736
    %v1399 = vunpack.c.h.b16 %v736
    %v1400 = vunpack.c.l.b16 %v737
    %v1401 = vunpack.c.h.b16 %v737
    %v1402 = vunpack.c.l.b16 %v738
    %v1403 = vunpack.c.h.b16 %v738
    %v1404 = vunpack.c.l.b16 %v739
    %v1405 = vunpack.c.h.b16 %v739
    %v1406 = vunpack.c.l.b16 %v740
    %v1407 = vunpack.c.h.b16 %v740
    %v1408 = vunpack.c.l.b16 %v741
    %v1409 = vunpack.c.h.b16 %v741
    %v1410 = vunpack.c.l.b16 %v742
    %v1411 = vunpack.c.h.b16 %v742
    %v1412 = vunpack.c.l.b16 %v743
    %v1413 = vunpack.c.h.b16 %v743
    %v1414 = vunpack.c.l.b16 %v744
    %v1415 = vunpack.c.h.b16 %v744
    %v1416 = vunpack.c.l.b16 %v745
    %v1417 = vunpack.c.h.b16 %v745
    %v1418 = vunpack.c.l.b16 %v746
    %v1419 = vunpack.c.h.b16 %v746
    %v1420 = vunpack.c.l.b16 %v747
    %v1421 = vunpack.c.h.b16 %v747
    %v1422 = vunpack.c.l.b16 %v748
    %v1423 = vunpack.c.h.b16 %v748
    %v1424 = vunpack.c.l.b16 %v749
    %v1425 = vunpack.c.h.b16 %v749
    %v1426 = vunpack.c.l.b16 %v750
    %v1427 = vunpack.c.h.b16 %v750
    %v1428 = vunpack.c.l.b16 %v751
    %v1429 = vunpack.c.h.b16 %v751
    %v1430 = vunpack.c.l.b16 %v752
    %v1431 = vunpack.c.h.b16 %v752
    %v1432 = vunpack.c.l.b16 %v753
    %v1433 = vunpack.c.h.b16 %v753
    %v1434 = vunpack.c.l.b16 %v754
    %v1435 = vunpack.c.h.b16 %v754
    %v1436 = vunpack.c.l.b16 %v755
    %v1437 = vunpack.c.h.b16 %v755
    %v1438 = vunpack.c.l.b16 %v756
    %v1439 = vunpack.c.h.b16 %v756
    %v1440 = vunpack.c.l.b16 %v757
    %v1441 = vunpack.c.h.b16 %v757
    %v1442 = vunpack.c.l.b16 %v758
    %v1443 = vunpack.c.h.b16 %v758
    %v1444 = vunpack.c.l.b16 %v759
    %v1445 = vunpack.c.h.b16 %v759
    %v1446 = vunpack.c.l.b16 %v760
    %v1447 = vunpack.c.h.b16 %v760
    %v1448 = vunpack.c.l.b16 %v761
    %v1449 = vunpack.c.h.b16 %v761
    %v1450 = vunpack.c.l.b16 %v762
    %v1451 = vunpack.c.h.b16 %v762
    %v1452 = vunpack.c.l.b16 %v763
    %v1453 = vunpack.c.h.b16 %v763
    %v1454 = vunpack.c.l.b16 %v764
    %v1455 = vunpack.c.h.b16 %v764
    %v1456 = vunpack.c.l.b16 %v765
    %v1457 = vunpack.c.h.b16 %v765
    %v1458 = vunpack.c.l.b16 %v766
    %v1459 = vunpack.c.h.b16 %v766
    %v1460 = vunpack.c.l.b16 %v767
    %v1461 = vunpack.c.h.b16 %v767
    %v1462 = vunpack.c.l.b16 %v768
    %v1463 = vunpack.c.h.b16 %v768
    %v1464 = vunpack.c.l.b16 %v769
    %v1465 = vunpack.c.h.b16 %v769
    %v1466 = vunpack.c.l.b16 %v770
    %v1467 = vunpack.c.h.b16 %v770
    %v1468 = vunpack.c.l.b16 %v771
    %v1469 = vunpack.c.h.b16 %v771
    %v1470 = vunpack.c.l.b16 %v772
    %v1471 = vunpack.c.h.b16 %v772
    %v1472 = vunpack.c.l.b16 %v773
    %v1473 = vunpack.c.h.b16 %v773
    %v1474 = vunpack.c.l.b16 %v774
    %v1475 = vunpack.c.h.b16 %v774
    %v1476 = vunpack.c.l.b16 %v775
    %v1477 = vunpack.c.h.b16 %v775
    %v1478 = vunpack.c.l.b16 %v776
    %v1479 = vunpack.c.h.b16 %v776
    %v1480 = vunpack.c.l.b16 %v777
    %v1481 = vunpack.c.h.b16 %v777
    %v1482 = vunpack.c.l.b16 %v778
    %v1483 = vunpack.c.h.b16 %v778
    %v1484 = vunpack.c.l.b16 %v779
    %v1485 = vunpack.c.h.b16 %v779
    %v1486 = vunpack.c.l.b16 %v780
    %v1487 = vunpack.c.h.b16 %v780
    %v1488 = vunpack.c.l.b16 %v781
    %v1489 = vunpack.c.h.b16 %v781
    %v1490 = vunpack.c.l.b16 %v782
    %v1491 = vunpack.c.h.b16 %v782
    %v1492 = vunpack.c.l.b16 %v783
    %v1493 = vunpack.c.h.b16 %v783
    %v1494 = vunpack.c.l.b16 %v784
    %v1495 = vunpack.c.h.b16 %v784
    %v1496 = vunpack.c.l.b16 %v785
    %v1497 = vunpack.c.h.b16 %v785
    %v1498 = vunpack.c.l.b16 %v786
    %v1499 = vunpack.c.h.b16 %v786
    %v1500 = vunpack.c.l.b16 %v787
    %v1501 = vunpack.c.h.b16 %v787
    %v1502 = vunpack.c.l.b16 %v788
    %v1503 = vunpack.c.h.b16 %v788
    %v1504 = vunpack.c.l.b16 %v789
    %v1505 = vunpack.c.h.b16 %v789
    %v1506 = vunpack.c.l.b16 %v790
    %v1507 = vunpack.c.h.b16 %v790
    %v1508 = vunpack.c.l.b16 %v791
    %v1509 = vunpack.c.h.b16 %v791
    %v1510 = vunpack.c.l.b16 %v792
    %v1511 = vunpack.c.h.b16 %v792
    %v1512 = vunpack.c.l.b16 %v793
    %v1513 = vunpack.c.h.b16 %v793
    %v1514 = vunpack.c.l.b16 %v794
    %v1515 = vunpack.c.h.b16 %v794
    %v1516 = vunpack.c.l.b16 %v795
    %v1517 = vunpack.c.h.b16 %v795
    %v1518 = vunpack.c.l.b16 %v796
    %v1519 = vunpack.c.h.b16 %v796
    %v1520 = vunpack.c.l.b16 %v797
    %v1521 = vunpack.c.h.b16 %v797
    %v1522 = vunpack.c.l.b16 %v798
    %v1523 = vunpack.c.h.b16 %v798
    %v1524 = vunpack.c.l.b16 %v799
    %v1525 = vunpack.c.h.b16 %v799
    %v1526 = vunpack.c.l.b16 %v800
    %v1527 = vunpack.c.h.b16 %v800
    %v1528 = vunpack.c.l.b16 %v801
    %v1529 = vunpack.c.h.b16 %v801
    %v1530 = vunpack.c.l.b16 %v802
    %v1531 = vunpack.c.h.b16 %v802
    %v1532 = vunpack.c.l.b16 %v803
    %v1533 = vunpack.c.h.b16 %v803
    %v1534 = vunpack.c.l.b16 %v804
    %v1535 = vunpack.c.h.b16 %v804
    %v1536 = vunpack.c.l.b16 %v805
    %v1537 = vunpack.c.h.b16 %v805
    %v1538 = vunpack.c.l.b16 %v806
    %v1539 = vunpack.c.h.b16 %v806
    %v1540 = vunpack.c.l.b16 %v807
    %v1541 = vunpack.c.h.b16 %v807
    %v1542 = vunpack.c.l.b16 %v808
    %v1543 = vunpack.c.h.b16 %v808
    %v1544 = vunpack.c.l.b16 %v809
    %v1545 = vunpack.c.h.b16 %v809
    %v1546 = vunpack.c.l.b16 %v810
    %v1547 = vunpack.c.h.b16 %v810
    %v1548 = vunpack.c.l.b16 %v811
    %v1549 = vunpack.c.h.b16 %v811
    %v1550 = vunpack.c.l.b16 %v812
    %v1551 = vunpack.c.h.b16 %v812
    %v1552 = vunpack.c.l.b16 %v813
    %v1553 = vunpack.c.h.b16 %v813
    %v1554 = vunpack.c.l.b16 %v814
    %v1555 = vunpack.c.h.b16 %v814
    %v1556 = vunpack.c.l.b16 %v815
    %v1557 = vunpack.c.h.b16 %v815
    %v1558 = vunpack.c.l.b16 %v816
    %v1559 = vunpack.c.h.b16 %v816
    %v1560 = vunpack.c.l.b16 %v817
    %v1561 = vunpack.c.h.b16 %v817
    %v1562 = vunpack.c.l.b16 %v818
    %v1563 = vunpack.c.h.b16 %v818
    %v1564 = vunpack.c.l.b16 %v819
    %v1565 = vunpack.c.h.b16 %v819
    %v1566 = vunpack.c.l.b16 %v820
    %v1567 = vunpack.c.h.b16 %v820
    %v1568 = vunpack.c.l.b16 %v821
    %v1569 = vunpack.c.h.b16 %v821
    %v1570 = vunpack.c.l.b16 %v822
    %v1571 = vunpack.c.h.b16 %v822
    %v1572 = vunpack.c.l.b16 %v823
    %v1573 = vunpack.c.h.b16 %v823
    %v1574 = vunpack.c.l.b16 %v824
    %v1575 = vunpack.c.h.b16 %v824
    %v1576 = vunpack.c.l.b16 %v825
    %v1577 = vunpack.c.h.b16 %v825
    %v1578 = vunpack.c.l.b16 %v826
    %v1579 = vunpack.c.h.b16 %v826
    %v1580 = vunpack.c.l.b16 %v827
    %v1581 = vunpack.c.h.b16 %v827
    %v1582 = vunpack.c.l.b16 %v828
    %v1583 = vunpack.c.h.b16 %v828
    %v1584 = vunpack.c.l.b16 %v829
    %v1585 = vunpack.c.h.b16 %v829
    %v1586 = vunpack.c.l.b16 %v830
    %v1587 = vunpack.c.h.b16 %v830
    %v1588 = vunpack.c.l.b16 %v831
    %v1589 = vunpack.c.h.b16 %v831
    %v1590 = vunpack.c.l.b16 %v832
    %v1591 = vunpack.c.h.b16 %v832
    %v1592 = vunpack.c.l.b16 %v833
    %v1593 = vunpack.c.h.b16 %v833
    %v1594 = vunpack.c.l.b16 %v834
    %v1595 = vunpack.c.h.b16 %v834
    %v1596 = vunpack.c.l.b16 %v835
    %v1597 = vunpack.c.h.b16 %v835
    %v1598 = vunpack.c.l.b16 %v836
    %v1599 = vunpack.c.h.b16 %v836
    %v1600 = vunpack.c.l.b16 %v837
    %v1601 = vunpack.c.h.b16 %v837
    %v1602 = vunpack.c.l.b16 %v838
    %v1603 = vunpack.c.h.b16 %v838
    %v1604 = vunpack.c.l.b16 %v839
    %v1605 = vunpack.c.h.b16 %v839
    %v1606 = vunpack.c.l.b16 %v840
    %v1607 = vunpack.c.h.b16 %v840
    %v1608 = vunpack.c.l.b16 %v841
    %v1609 = vunpack.c.h.b16 %v841
    %v1610 = vunpack.c.l.b16 %v842
    %v1611 = vunpack.c.h.b16 %v842
    %v1612 = vunpack.c.l.b16 %v843
    %v1613 = vunpack.c.h.b16 %v843
    %v1614 = vunpack.c.l.b16 %v844
    %v1615 = vunpack.c.h.b16 %v844
    %v1616 = vunpack.c.l.b16 %v845
    %v1617 = vunpack.c.h.b16 %v845
    %v1618 = vunpack.c.l.b16 %v846
    %v1619 = vunpack.c.h.b16 %v846
    %v1620 = vunpack.c.l.b16 %v847
    %v1621 = vunpack.c.h.b16 %v847
    %v1622 = vunpack.c.l.b16 %v848
    %v1623 = vunpack.c.h.b16 %v848
    %v1624 = vunpack.c.l.b16 %v849
    %v1625 = vunpack.c.h.b16 %v849
    %v1626 = vunpack.c.l.b16 %v850
    %v1627 = vunpack.c.h.b16 %v850
    %v1628 = vunpack.c.l.b16 %v851
    %v1629 = vunpack.c.h.b16 %v851
    %v1630 = vunpack.c.l.b16 %v852
    %v1631 = vunpack.c.h.b16 %v852
    %v1632 = vunpack.c.l.b16 %v853
    %v1633 = vunpack.c.h.b16 %v853
    %v1634 = vunpack.c.l.b16 %v854
    %v1635 = vunpack.c.h.b16 %v854
    %v1636 = vunpack.c.l.b16 %v855
    %v1637 = vunpack.c.h.b16 %v855
    %v1638 = vunpack.c.l.b16 %v856
    %v1639 = vunpack.c.h.b16 %v856
    %v1640 = vunpack.c.l.b16 %v857
    %v1641 = vunpack.c.h.b16 %v857
    %v1642 = vunpack.c.l.b16 %v858
    %v1643 = vunpack.c.h.b16 %v858
    %v1644 = vunpack.c.l.b16 %v859
    %v1645 = vunpack.c.h.b16 %v859
    %v1646 = vunpack.c.l.b16 %v860
    %v1647 = vunpack.c.h.b16 %v860
    %v1648 = vunpack.c.l.b16 %v861
    %v1649 = vunpack.c.h.b16 %v861
    %v1650 = vunpack.c.l.b16 %v862
    %v1651 = vunpack.c.h.b16 %v862
    %v1652 = vunpack.c.l.b16 %v863
    %v1653 = vunpack.c.h.b16 %v863
    %v1654 = vunpack.c.l.b16 %v864
    %v1655 = vunpack.c.h.b16 %v864
    %v1656 = vunpack.c.l.b16 %v865
    %v1657 = vunpack.c.h.b16 %v865
    %v1658 = vunpack.c.l.b16 %v866
    %v1659 = vunpack.c.h.b16 %v866
    %v1660 = vunpack.c.l.b16 %v867
    %v1661 = vunpack.c.h.b16 %v867
    %v1662 = vunpack.c.l.b16 %v868
    %v1663 = vunpack.c.h.b16 %v868
    %v1664 = vunpack.c.l.b16 %v869
    %v1665 = vunpack.c.h.b16 %v869
    %v1666 = vunpack.c.l.b16 %v870
    %v1667 = vunpack.c.h.b16 %v870
    %v1668 = vunpack.c.l.b16 %v871
    %v1669 = vunpack.c.h.b16 %v871
    %v1670 = vunpack.c.l.b16 %v872
    %v1671 = vunpack.c.h.b16 %v872
    %v1672 = vunpack.c.l.b16 %v873
    %v1673 = vunpack.c.h.b16 %v873
    %v1674 = vunpack.c.l.b16 %v874
    %v1675 = vunpack.c.h.b16 %v874
    %v1676 = vunpack.c.l.b16 %v875
    %v1677 = vunpack.c.h.b16 %v875
    %v1678 = vunpack.c.l.b16 %v876
    %v1679 = vunpack.c.h.b16 %v876
    %v1680 = vunpack.c.l.b16 %v877
    %v1681 = vunpack.c.h.b16 %v877
    %v1682 = vunpack.c.l.b16 %v878
    %v1683 = vunpack.c.h.b16 %v878
    %v1684 = vunpack.c.l.b16 %v879
    %v1685 = vunpack.c.h.b16 %v879
    %v1686 = vunpack.c.l.b16 %v880
    %v1687 = vunpack.c.h.b16 %v880
    %v1688 = vunpack.c.l.b16 %v881
    %v1689 = vunpack.c.h.b16 %v881
    %v1690 = vunpack.c.l.b16 %v882
    %v1691 = vunpack.c.h.b16 %v882
    %v1692 = vunpack.c.l.b16 %v883
    %v1693 = vunpack.c.h.b16 %v883
    %v1694 = vunpack.c.l.b16 %v884
    %v1695 = vunpack.c.h.b16 %v884
    %v1696 = vunpack.c.l.b16 %v885
    %v1697 = vunpack.c.h.b16 %v885
    %v1698 = vunpack.c.l.b16 %v886
    %v1699 = vunpack.c.h.b16 %v886
    %v1700 = vunpack.c.l.b16 %v887
    %v1701 = vunpack.c.h.b16 %v887
    %v1702 = vunpack.c.l.b16 %v888
    %v1703 = vunpack.c.h.b16 %v888
    %v1704 = vunpack.c.l.b16 %v889
    %v1705 = vunpack.c.h.b16 %v889
    %v1706 = vunpack.c.l.b16 %v890
    %v1707 = vunpack.c.h.b16 %v890
    %v1708 = vunpack.c.l.b16 %v891
    %v1709 = vunpack.c.h.b16 %v891
    %v1710 = vunpack.c.l.b16 %v892
    %v1711 = vunpack.c.h.b16 %v892
    %v1712 = vunpack.c.l.b16 %v893
    %v1713 = vunpack.c.h.b16 %v893
    %v1714 = vunpack.c.l.b16 %v894
    %v1715 = vunpack.c.h.b16 %v894
    %v1716 = vunpack.c.l.b16 %v895
    %v1717 = vunpack.c.h.b16 %v895
    %v1718 = vunpack.c.l.b16 %v896
    %v1719 = vunpack.c.h.b16 %v896
    %v1720 = vunpack.c.l.b16 %v897
    %v1721 = vunpack.c.h.b16 %v897
    %v1722 = vunpack.c.l.b16 %v898
    %v1723 = vunpack.c.h.b16 %v898
    %v1724 = vunpack.c.l.b16 %v899
    %v1725 = vunpack.c.h.b16 %v899
    %v1726 = vunpack.c.l.b16 %v900
    %v1727 = vunpack.c.h.b16 %v900
    %v1728 = vunpack.c.l.b16 %v901
    %v1729 = vunpack.c.h.b16 %v901
    %v1730 = vunpack.c.l.b16 %v902
    %v1731 = vunpack.c.h.b16 %v902
    %v1732 = vunpack.c.l.b16 %v903
    %v1733 = vunpack.c.h.b16 %v903
    %v1734 = vunpack.c.l.b16 %v904
    %v1735 = vunpack.c.h.b16 %v904
    %v1736 = vunpack.c.l.b16 %v905
    %v1737 = vunpack.c.h.b16 %v905
    %v1738 = vunpack.c.l.b16 %v906
    %v1739 = vunpack.c.h.b16 %v906
    %v1740 = vunpack.c.l.b16 %v907
    %v1741 = vunpack.c.h.b16 %v907
    %v1742 = vunpack.c.l.b16 %v908
    %v1743 = vunpack.c.h.b16 %v908
    %v1744 = vunpack.c.l.b16 %v909
    %v1745 = vunpack.c.h.b16 %v909
    %v1746 = vunpack.c.l.b16 %v910
    %v1747 = vunpack.c.h.b16 %v910
    %v1748 = vunpack.c.l.b16 %v911
    %v1749 = vunpack.c.h.b16 %v911
    %v1750 = vunpack.c.l.b16 %v912
    %v1751 = vunpack.c.h.b16 %v912
    %v1752 = vunpack.c.l.b16 %v913
    %v1753 = vunpack.c.h.b16 %v913
    %v1754 = vunpack.c.l.b16 %v914
    %v1755 = vunpack.c.h.b16 %v914
    %v1756 = vunpack.c.l.b16 %v915
    %v1757 = vunpack.c.h.b16 %v915
    %v1758 = vunpack.c.l.b16 %v916
    %v1759 = vunpack.c.h.b16 %v916
    %v1760 = vunpack.c.l.b16 %v917
    %v1761 = vunpack.c.h.b16 %v917
    %v1762 = vunpack.c.l.b16 %v918
    %v1763 = vunpack.c.h.b16 %v918
    %v1764 = vunpack.c.l.b16 %v919
    %v1765 = vunpack.c.h.b16 %v919
    %v1766 = vunpack.c.l.b16 %v920
    %v1767 = vunpack.c.h.b16 %v920
    %v1768 = vunpack.c.l.b16 %v921
    %v1769 = vunpack.c.h.b16 %v921
    %v1770 = vunpack.c.l.b16 %v922
    %v1771 = vunpack.c.h.b16 %v922
    %v1772 = vunpack.c.l.b16 %v923
    %v1773 = vunpack.c.h.b16 %v923
    %v1774 = vunpack.c.l.b16 %v924
    %v1775 = vunpack.c.h.b16 %v924
    %v1776 = vunpack.c.l.b16 %v925
    %v1777 = vunpack.c.h.b16 %v925
    %v1778 = vunpack.c.l.b16 %v926
    %v1779 = vunpack.c.h.b16 %v926
    %v1780 = vunpack.c.l.b16 %v927
    %v1781 = vunpack.c.h.b16 %v927
    %v1782 = vunpack.c.l.b16 %v928
    %v1783 = vunpack.c.h.b16 %v928
    %v1784 = vunpack.c.l.b16 %v929
    %v1785 = vunpack.c.h.b16 %v929
    %v1786 = vunpack.c.l.b16 %v930
    %v1787 = vunpack.c.h.b16 %v930
    %v1788 = vunpack.c.l.b16 %v931
    %v1789 = vunpack.c.h.b16 %v931
    %v1790 = vunpack.c.l.b16 %v932
    %v1791 = vunpack.c.h.b16 %v932
    %v1792 = vunpack.c.l.b16 %v933
    %v1793 = vunpack.c.h.b16 %v933
    %v1794 = vunpack.c.l.b16 %v934
    %v1795 = vunpack.c.h.b16 %v934
    %v1796 = vunpack.c.l.b16 %v935
    %v1797 = vunpack.c.h.b16 %v935
    %v1798 = vunpack.c.l.b16 %v936
    %v1799 = vunpack.c.h.b16 %v936
    %v1800 = vunpack.c.l.b16 %v937
    %v1801 = vunpack.c.h.b16 %v937
    %v1802 = vunpack.c.l.b16 %v938
    %v1803 = vunpack.c.h.b16 %v938
    %v1804 = vunpack.c.l.b16 %v939
    %v1805 = vunpack.c.h.b16 %v939
    %v1806 = vunpack.c.l.b16 %v940
    %v1807 = vunpack.c.h.b16 %v940
    %v1808 = vunpack.c.l.b16 %v941
    %v1809 = vunpack.c.h.b16 %v941
    %v1810 = vunpack.c.l.b16 %v942
    %v1811 = vunpack.c.h.b16 %v942
    %v1812 = vunpack.c.l.b16 %v943
    %v1813 = vunpack.c.h.b16 %v943
    %v1814 = vunpack.c.l.b16 %v944
    %v1815 = vunpack.c.h.b16 %v944
    %v1816 = vunpack.c.l.b16 %v945
    %v1817 = vunpack.c.h.b16 %v945
    %v1818 = vunpack.c.l.b16 %v946
    %v1819 = vunpack.c.h.b16 %v946
    %v1820 = vunpack.c.l.b16 %v947
    %v1821 = vunpack.c.h.b16 %v947
    %v1822 = vunpack.c.l.b16 %v948
    %v1823 = vunpack.c.h.b16 %v948
    %v1824 = vunpack.c.l.b16 %v949
    %v1825 = vunpack.c.h.b16 %v949
    %v1826 = vunpack.c.l.b16 %v950
    %v1827 = vunpack.c.h.b16 %v950
    %v1828 = vunpack.c.l.b16 %v951
    %v1829 = vunpack.c.h.b16 %v951
    %v1830 = vunpack.c.l.b16 %v952
    %v1831 = vunpack.c.h.b16 %v952
    %v1832 = vunpack.c.l.b16 %v953
    %v1833 = vunpack.c.h.b16 %v953
    %v1834 = vunpack.c.l.b16 %v954
    %v1835 = vunpack.c.h.b16 %v954
    %v1836 = vunpack.c.l.b16 %v955
    %v1837 = vunpack.c.h.b16 %v955
    %v1838 = vunpack.c.l.b16 %v956
    %v1839 = vunpack.c.h.b16 %v956
    %v1840 = vunpack.c.l.b16 %v957
    %v1841 = vunpack.c.h.b16 %v957
    %v1842 = vunpack.c.l.b16 %v958
    %v1843 = vunpack.c.h.b16 %v958
    %v1844 = vunpack.c.l.b16 %v959
    %v1845 = vunpack.c.h.b16 %v959
    %v1846 = vunpack.c.l.b16 %v960
    %v1847 = vunpack.c.h.b16 %v960
    %v1848 = vunpack.c.l.b16 %v961
    %v1849 = vunpack.c.h.b16 %v961
    %v1850 = vunpack.c.l.b16 %v962
    %v1851 = vunpack.c.h.b16 %v962
    %v1852 = vunpack.c.l.b16 %v963
    %v1853 = vunpack.c.h.b16 %v963
    %v1854 = vunpack.c.l.b16 %v964
    %v1855 = vunpack.c.h.b16 %v964
    %v1856 = vunpack.c.l.b16 %v965
    %v1857 = vunpack.c.h.b16 %v965
    %v1858 = vunpack.c.l.b16 %v966
    %v1859 = vunpack.c.h.b16 %v966
    %v1860 = vunpack.c.l.b16 %v967
    %v1861 = vunpack.c.h.b16 %v967
    %v1862 = vunpack.c.l.b16 %v968
    %v1863 = vunpack.c.h.b16 %v968
    %v1864 = vunpack.c.l.b16 %v969
    %v1865 = vunpack.c.h.b16 %v969
    %v1866 = vpack.c.b16 %v1296, %v1290
    %v1867 = vpack.c.b16 %v1297, %v1291
    %v1868 = vpack.c.b16 %v1298, %v1292
    %v1869 = vpack.c.b16 %v1299, %v1293
    %v1870 = vpack.c.b16 %v1300, %v1294
    %v1871 = vpack.c.b16 %v1301, %v1295
    %v1872 = vpack.c.b16 %v1308, %v1302
    %v1873 = vpack.c.b16 %v1309, %v1303
    %v1874 = vpack.c.b16 %v1310, %v1304
    %v1875 = vpack.c.b16 %v1311, %v1305
    %v1876 = vpack.c.b16 %v1312, %v1306
    %v1877 = vpack.c.b16 %v1313, %v1307
    %v1878 = vpack.c.b16 %v1320, %v1314
    %v1879 = vpack.c.b16 %v1321, %v1315
    %v1880 = vpack.c.b16 %v1322, %v1316
    %v1881 = vpack.c.b16 %v1323, %v1317
    %v1882 = vpack.c.b16 %v1324, %v1318
    %v1883 = vpack.c.b16 %v1325, %v1319
    %v1884 = vpack.c.b16 %v1332, %v1326
    %v1885 = vpack.c.b16 %v1333, %v1327
    %v1886 = vpack.c.b16 %v1334, %v1328
    %v1887 = vpack.c.b16 %v1335, %v1329
    %v1888 = vpack.c.b16 %v1336, %v1330
    %v1889 = vpack.c.b16 %v1337, %v1331
    %v1890 = vpack.c.b16 %v1344, %v1338
    %v1891 = vpack.c.b16 %v1345, %v1339
    %v1892 = vpack.c.b16 %v1346, %v1340
    %v1893 = vpack.c.b16 %v1347, %v1341
    %v1894 = vpack.c.b16 %v1348, %v1342
    %v1895 = vpack.c.b16 %v1349, %v1343
    %v1896 = vpack.c.b16 %v1356, %v1350
    %v1897 = vpack.c.b16 %v1357, %v1351
    %v1898 = vpack.c.b16 %v1358, %v1352
    %v1899 = vpack.c.b16 %v1359, %v1353
    %v1900 = vpack.c.b16 %v1360, %v1354
    %v1901 = vpack.c.b16 %v1361, %v1355
    %v1902 = vpack.c.b16 %v1368, %v1362
    %v1903 = vpack.c.b16 %v1369, %v1363
    %v1904 = vpack.c.b16 %v1370, %v1364
    %v1905 = vpack.c.b16 %v1371, %v1365
    %v1906 = vpack.c.b16 %v1372, %v1366
    %v1907 = vpack.c.b16 %v1373, %v1367
    %v1908 = vpack.c.b16 %v1380, %v1374
    %v1909 = vpack.c.b16 %v1381, %v1375
    %v1910 = vpack.c.b16 %v1382, %v1376
    %v1911 = vpack.c.b16 %v1383, %v1377
    %v1912 = vpack.c.b16 %v1384, %v1378
    %v1913 = vpack.c.b16 %v1385, %v1379
    %v1914 = vpack.c.b16 %v1392, %v1386
    %v1915 = vpack.c.b16 %v1393, %v1387
    %v1916 = vpack.c.b16 %v1394, %v1388
    %v1917 = vpack.c.b16 %v1395, %v1389
    %v1918 = vpack.c.b16 %v1396, %v1390
    %v1919 = vpack.c.b16 %v1397, %v1391
    %v1920 = vpack.c.b16 %v1404, %v1398
    %v1921 = vpack.c.b16 %v1405, %v1399
    %v1922 = vpack.c.b16 %v1406, %v1400
    %v1923 = vpack.c.b16 %v1407, %v1401
    %v1924 = vpack.c.b16 %v1408, %v1402
    %v1925 = vpack.c.b16 %v1409, %v1403
    %v1926 = vpack.c.b16 %v1416, %v1410
    %v1927 = vpack.c.b16 %v1417, %v1411
    %v1928 = vpack.c.b16 %v1418, %v1412
    %v1929 = vpack.c.b16 %v1419, %v1413
    %v1930 = vpack.c.b16 %v1420, %v1414
    %v1931 = vpack.c.b16 %v1421, %v1415
    %v1932 = vpack.c.b16 %v1428, %v1422
    %v1933 = vpack.c.b16 %v1429, %v1423
    %v1934 = vpack.c.b16 %v1430, %v1424
    %v1935 = vpack.c.b16 %v1431, %v1425
    %v1936 = vpack.c.b16 %v1432, %v1426
    %v1937 = vpack.c.b16 %v1433, %v1427
    %v1938 = vpack.c.b16 %v1440, %v1434
    %v1939 = vpack.c.b16 %v1441, %v1435
    %v1940 = vpack.c.b16 %v1442, %v1436
    %v1941 = vpack.c.b16 %v1443, %v1437
    %v1942 = vpack.c.b16 %v1444, %v1438
    %v1943 = vpack.c.b16 %v1445, %v1439
    %v1944 = vpack.c.b16 %v1452, %v1446
    %v1945 = vpack.c.b16 %v1453, %v1447
    %v1946 = vpack.c.b16 %v1454, %v1448
    %v1947 = vpack.c.b16 %v1455, %v1449
    %v1948 = vpack.c.b16 %v1456, %v1450
    %v1949 = vpack.c.b16 %v1457, %v1451
    %v1950 = vpack.c.b16 %v1464, %v1458
    %v1951 = vpack.c.b16 %v1465, %v1459
    %v1952 = vpack.c.b16 %v1466, %v1460
    %v1953 = vpack.c.b16 %v1467, %v1461
    %v1954 = vpack.c.b16 %v1468, %v1462
    %v1955 = vpack.c.b16 %v1469, %v1463
    %v1956 = vpack.c.b16 %v1476, %v1470
    %v1957 = vpack.c.b16 %v1477, %v1471
    %v1958 = vpack.c.b16 %v1478, %v1472
    %v1959 = vpack.c.b16 %v1479, %v1473
    %v1960 = vpack.c.b16 %v1480, %v1474
    %v1961 = vpack.c.b16 %v1481, %v1475
    %v1962 = vpack.c.b16 %v1488, %v1482
    %v1963 = vpack.c.b16 %v1489, %v1483
    %v1964 = vpack.c.b16 %v1490, %v1484
    %v1965 = vpack.c.b16 %v1491, %v1485
    %v1966 = vpack.c.b16 %v1492, %v1486
    %v1967 = vpack.c.b16 %v1493, %v1487
    %v1968 = vpack.c.b16 %v1500, %v1494
    %v1969 = vpack.c.b16 %v1501, %v1495
    %v1970 = vpack.c.b16 %v1502, %v1496
    %v1971 = vpack.c.b16 %v1503, %v1497
    %v1972 = vpack.c.b16 %v1504, %v1498
    %v1973 = vpack.c.b16 %v1505, %v1499
    %v1974 = vpack.c.b16 %v1512, %v1506
    %v1975 = vpack.c.b16 %v1513, %v1507
    %v1976 = vpack.c.b16 %v1514, %v1508
    %v1977 = vpack.c.b16 %v1515, %v1509
    %v1978 = vpack.c.b16 %v1516, %v1510
    %v1979 = vpack.c.b16 %v1517, %v1511
    %v1980 = vpack.c.b16 %v1524, %v1518
    %v1981 = vpack.c.b16 %v1525, %v1519
    %v1982 = vpack.c.b16 %v1526, %v1520
    %v1983 = vpack.c.b16 %v1527, %v1521
    %v1984 = vpack.c.b16 %v1528, %v1522
    %v1985 = vpack.c.b16 %v1529, %v1523
    %v1986 = vpack.c.b16 %v1536, %v1530
    %v1987 = vpack.c.b16 %v1537, %v1531
    %v1988 = vpack.c.b16 %v1538, %v1532
    %v1989 = vpack.c.b16 %v1539, %v1533
    %v1990 = vpack.c.b16 %v1540, %v1534
    %v1991 = vpack.c.b16 %v1541, %v1535
    %v1992 = vpack.c.b16 %v1548, %v1542
    %v1993 = vpack.c.b16 %v1549, %v1543
    %v1994 = vpack.c.b16 %v1550, %v1544
    %v1995 = vpack.c.b16 %v1551, %v1545
    %v1996 = vpack.c.b16 %v1552, %v1546
    %v1997 = vpack.c.b16 %v1553, %v1547
    %v1998 = vpack.c.b16 %v1560, %v1554
    %v1999 = vpack.c.b16 %v1561, %v1555
    %v2000 = vpack.c.b16 %v1562, %v1556
    %v2001 = vpack.c.b16 %v1563, %v1557
    %v2002 = vpack.c.b16 %v1564, %v1558
    %v2003 = vpack.c.b16 %v1565, %v1559
    %v2004 = vpack.c.b16 %v1572, %v1566
    %v2005 = vpack.c.b16 %v1573, %v1567
    %v2006 = vpack.c.b16 %v1574, %v1568
    %v2007 = vpack.c.b16 %v1575, %v1569
    %v2008 = vpack.c.b16 %v1576, %v1570
    %v2009 = vpack.c.b16 %v1577, %v1571
    %v2010 = vpack.c.b16 %v1584, %v1578
    %v2011 = vpack.c.b16 %v1585, %v1579
    %v2012 = vpack.c.b16 %v1586, %v1580
    %v2013 = vpack.c.b16 %v1587, %v1581
    %v2014 = vpack.c.b16 %v1588, %v1582
    %v2015 = vpack.c.b16 %v1589, %v1583
    %v2016 = vpack.c.b16 %v1596, %v1590
    %v2017 = vpack.c.b16 %v1597, %v1591
    %v2018 = vpack.c.b16 %v1598, %v1592
    %v2019 = vpack.c.b16 %v1599, %v1593
    %v2020 = vpack.c.b16 %v1600, %v1594
    %v2021 = vpack.c.b16 %v1601, %v1595
    %v2022 = vpack.c.b16 %v1608, %v1602
    %v2023 = vpack.c.b16 %v1609, %v1603
    %v2024 = vpack.c.b16 %v1610, %v1604
    %v2025 = vpack.c.b16 %v1611, %v1605
    %v2026 = vpack.c.b16 %v1612, %v1606
    %v2027 = vpack.c.b16 %v1613, %v1607
    %v2028 = vpack.c.b16 %v1620, %v1614
    %v2029 = vpack.c.b16 %v1621, %v1615
    %v2030 = vpack.c.b16 %v1622, %v1616
    %v2031 = vpack.c.b16 %v1623, %v1617
    %v2032 = vpack.c.b16 %v1624, %v1618
    %v2033 = vpack.c.b16 %v1625, %v1619
    %v2034 = vpack.c.b16 %v1632, %v1626
    %v2035 = vpack.c.b16 %v1633, %v1627
    %v2036 = vpack.c.b16 %v1634, %v1628
    %v2037 = vpack.c.b16 %v1635, %v1629
    %v2038 = vpack.c.b16 %v1636, %v1630
    %v2039 = vpack.c.b16 %v1637, %v1631
    %v2040 = vpack.c.b16 %v1644, %v1638
    %v2041 = vpack.c.b16 %v1645, %v1639
    %v2042 = vpack.c.b16 %v1646, %v1640
    %v2043 = vpack.c.b16 %v1647, %v1641
    %v2044 = vpack.c.b16 %v1648, %v1642
    %v2045 = vpack.c.b16 %v1649, %v1643
    %v2046 = vpack.c.b16 %v1656, %v1650
    %v2047 = vpack.c.b16 %v1657, %v1651
    %v2048 = vpack.c.b16 %v1658, %v1652
    %v2049 = vpack.c.b16 %v1659, %v1653
    %v2050 = vpack.c.b16 %v1660, %v1654
    %v2051 = vpack.c.b16 %v1661, %v1655
    %v2052 = vpack.c.b16 %v1668, %v1662
    %v2053 = vpack.c.b16 %v1669, %v1663
    %v2054 = vpack.c.b16 %v1670, %v1664
    %v2055 = vpack.c.b16 %v1671, %v1665
    %v2056 = vpack.c.b16 %v1672, %v1666
    %v2057 = vpack.c.b16 %v1673, %v1667
    %v2058 = vpack.c.b16 %v1680, %v1674
    %v2059 = vpack.c.b16 %v1681, %v1675
    %v2060 = vpack.c.b16 %v1682, %v1676
    %v2061 = vpack.c.b16 %v1683, %v1677
    %v2062 = vpack.c.b16 %v1684, %v1678
    %v2063 = vpack.c.b16 %v1685, %v1679
    %v2064 = vpack.c.b16 %v1692, %v1686
    %v2065 = vpack.c.b16 %v1693, %v1687
    %v2066 = vpack.c.b16 %v1694, %v1688
    %v2067 = vpack.c.b16 %v1695, %v1689
    %v2068 = vpack.c.b16 %v1696, %v1690
    %v2069 = vpack.c.b16 %v1697, %v1691
    %v2070 = vpack.c.b16 %v1704, %v1698
    %v2071 = vpack.c.b16 %v1705, %v1699
    %v2072 = vpack.c.b16 %v1706, %v1700
    %v2073 = vpack.c.b16 %v1707, %v1701
    %v2074 = vpack.c.b16 %v1708, %v1702
    %v2075 = vpack.c.b16 %v1709, %v1703
    %v2076 = vpack.c.b16 %v1716, %v1710
    %v2077 = vpack.c.b16 %v1717, %v1711
    %v2078 = vpack.c.b16 %v1718, %v1712
    %v2079 = vpack.c.b16 %v1719, %v1713
    %v2080 = vpack.c.b16 %v1720, %v1714
    %v2081 = vpack.c.b16 %v1721, %v1715
    %v2082 = vpack.c.b16 %v1728, %v1722
    %v2083 = vpack.c.b16 %v1729, %v1723
    %v2084 = vpack.c.b16 %v1730, %v1724
    %v2085 = vpack.c.b16 %v1731, %v1725
    %v2086 = vpack.c.b16 %v1732, %v1726
    %v2087 = vpack.c.b16 %v1733, %v1727
    %v2088 = vpack.c.b16 %v1740, %v1734
    %v2089 = vpack.c.b16 %v1741, %v1735
    %v2090 = vpack.c.b16 %v1742, %v1736
    %v2091 = vpack.c.b16 %v1743, %v1737
    %v2092 = vpack.c.b16 %v1744, %v1738
    %v2093 = vpack.c.b16 %v1745, %v1739
    %v2094 = vpack.c.b16 %v1752, %v1746
    %v2095 = vpack.c.b16 %v1753, %v1747
    %v2096 = vpack.c.b16 %v1754, %v1748
    %v2097 = vpack.c.b16 %v1755, %v1749
    %v2098 = vpack.c.b16 %v1756, %v1750
    %v2099 = vpack.c.b16 %v1757, %v1751
    %v2100 = vpack.c.b16 %v1764, %v1758
    %v2101 = vpack.c.b16 %v1765, %v1759
    %v2102 = vpack.c.b16 %v1766, %v1760
    %v2103 = vpack.c.b16 %v1767, %v1761
    %v2104 = vpack.c.b16 %v1768, %v1762
    %v2105 = vpack.c.b16 %v1769, %v1763
    %v2106 = vpack.c.b16 %v1776, %v1770
    %v2107 = vpack.c.b16 %v1777, %v1771
    %v2108 = vpack.c.b16 %v1778, %v1772
    %v2109 = vpack.c.b16 %v1779, %v1773
    %v2110 = vpack.c.b16 %v1780, %v1774
    %v2111 = vpack.c.b16 %v1781, %v1775
    %v2112 = vpack.c.b16 %v1788, %v1782
    %v2113 = vpack.c.b16 %v1789, %v1783
    %v2114 = vpack.c.b16 %v1790, %v1784
    %v2115 = vpack.c.b16 %v1791, %v1785
    %v2116 = vpack.c.b16 %v1792, %v1786
    %v2117 = vpack.c.b16 %v1793, %v1787
    %v2118 = vpack.c.b16 %v1800, %v1794
    %v2119 = vpack.c.b16 %v1801, %v1795
    %v2120 = vpack.c.b16 %v1802, %v1796
    %v2121 = vpack.c.b16 %v1803, %v1797
    %v2122 = vpack.c.b16 %v1804, %v1798
    %v2123 = vpack.c.b16 %v1805, %v1799
    %v2124 = vpack.c.b16 %v1812, %v1806
    %v2125 = vpack.c.b16 %v1813, %v1807
    %v2126 = vpack.c.b16 %v1814, %v1808
    %v2127 = vpack.c.b16 %v1815, %v1809
    %v2128 = vpack.c.b16 %v1816, %v1810
    %v2129 = vpack.c.b16 %v1817, %v1811
    %v2130 = vpack.c.b16 %v1824, %v1818
    %v2131 = vpack.c.b16 %v1825, %v1819
    %v2132 = vpack.c.b16 %v1826, %v1820
    %v2133 = vpack.c.b16 %v1827, %v1821
    %v2134 = vpack.c.b16 %v1828, %v1822
    %v2135 = vpack.c.b16 %v1829, %v1823
    %v2136 = vpack.c.b16 %v1836, %v1830
    %v2137 = vpack.c.b16 %v1837, %v1831
    %v2138 = vpack.c.b16 %v1838, %v1832
    %v2139 = vpack.c.b16 %v1839, %v1833
    %v2140 = vpack.c.b16 %v1840, %v1834
    %v2141 = vpack.c.b16 %v1841, %v1835
    %v2142 = vpack.c.b16 %v1848, %v1842
    %v2143 = vpack.c.b16 %v1849, %v1843
    %v2144 = vpack.c.b16 %v1850, %v1844
    %v2145 = vpack.c.b16 %v1851, %v1845
    %v2146 = vpack.c.b16 %v1852, %v1846
    %v2147 = vpack.c.b16 %v1853, %v1847
    %v2148 = vpack.c.b16 %v1860, %v1854
    %v2149 = vpack.c.b16 %v1861, %v1855
    %v2150 = vpack.c.b16 %v1862, %v1856
    %v2151 = vpack.c.b16 %v1863, %v1857
    %v2152 = vpack.c.b16 %v1864, %v1858
    %v2153 = vpack.c.b16 %v1865, %v1859
    %2442 = vmatprep.subr.bf16.mxu0 %v1867
    %2443 = vmatpush1.bf16.msra.mxu0 %v1866
    %2444 = vmatprep.subr.bf16.mxu0 %v1873
    %2445 = vmatpush1.bf16.msra.mxu0 %v1872
    %2446 = vmatprep.subr.bf16.mxu0 %v1879
    %2447 = vmatpush1.bf16.msra.mxu0 %v1878
    %2448 = vmatprep.subr.bf16.mxu0 %v1885
    %2449 = vmatpush1.bf16.msra.mxu0 %v1884
    %2450 = vmatprep.subr.bf16.mxu0 %v1891
    %2451 = vmatpush1.bf16.msra.mxu0 %v1890
    %2452 = vmatprep.subr.bf16.mxu0 %v1897
    %2453 = vmatpush1.bf16.msra.mxu0 %v1896
    %2454 = vmatprep.subr.bf16.mxu0 %v1903
    %2455 = vmatpush1.bf16.msra.mxu0 %v1902
    %2456 = vmatprep.subr.bf16.mxu0 %v1909
    %2457 = vmatpush1.bf16.msra.mxu0 %v1908
    %2458 = vmatprep.subr.bf16.mxu0 %v1915
    %2459 = vmatpush1.bf16.msra.mxu0 %v1914
    %2460 = vmatprep.subr.bf16.mxu0 %v1921
    %2461 = vmatpush1.bf16.msra.mxu0 %v1920
    %2462 = vmatprep.subr.bf16.mxu0 %v1927
    %2463 = vmatpush1.bf16.msra.mxu0 %v1926
    %2464 = vmatprep.subr.bf16.mxu0 %v1933
    %2465 = vmatpush1.bf16.msra.mxu0 %v1932
    %2466 = vmatprep.subr.bf16.mxu0 %v1939
    %2467 = vmatpush1.bf16.msra.mxu0 %v1938
    %2468 = vmatprep.subr.bf16.mxu0 %v1945
    %2469 = vmatpush1.bf16.msra.mxu0 %v1944
    %2470 = vmatprep.subr.bf16.mxu0 %v1951
    %2471 = vmatpush1.bf16.msra.mxu0 %v1950
    %2472 = vmatprep.subr.bf16.mxu0 %v1957
    %2473 = vmatpush1.bf16.msra.mxu0 %v1956
    %2474 = vmatprep.mubr.bf16.mxu0 %v677
    %2475 = vmatmul.mubr.bf16.gmra.mrb[0].mxu0 %v676
    %v2476 = vpop.f32.mrb[0].mxu0
    %v2477 = vadd.f32 %v975, %v2476
    %v2478 = vpop.f32.mrb[0].mxu0
    %v2479 = vadd.f32 %v979, %v2478
    %v2480 = vpop.f32.mrb[0].mxu0
    %v2481 = vadd.f32 %v975, %v2480
    %v2482 = vpop.f32.mrb[0].mxu0
    %v2483 = vadd.f32 %v979, %v2482
    %2484 = vdwg.mxu0
    %2485 = vmatprep.subr.bf16.mxu0 %v1963
    %2486 = vmatpush1.bf16.msra.mxu0 %v1962
    %2487 = vmatprep.subr.bf16.mxu0 %v1969
    %2488 = vmatpush1.bf16.msra.mxu0 %v1968
    %2489 = vmatprep.subr.bf16.mxu0 %v1975
    %2490 = vmatpush1.bf16.msra.mxu0 %v1974
    %2491 = vmatprep.subr.bf16.mxu0 %v1981
    %2492 = vmatpush1.bf16.msra.mxu0 %v1980
    %2493 = vmatprep.subr.bf16.mxu0 %v1987
    %2494 = vmatpush1.bf16.msra.mxu0 %v1986
    %2495 = vmatprep.subr.bf16.mxu0 %v1993
    %2496 = vmatpush1.bf16.msra.mxu0 %v1992
    %2497 = vmatprep.subr.bf16.mxu0 %v1999
    %2498 = vmatpush1.bf16.msra.mxu0 %v1998
    %2499 = vmatprep.subr.bf16.mxu0 %v2005
    %2500 = vmatpush1.bf16.msra.mxu0 %v2004
    %2501 = vmatprep.subr.bf16.mxu0 %v2011
    %2502 = vmatpush1.bf16.msra.mxu0 %v2010
    %2503 = vmatprep.subr.bf16.mxu0 %v2017
    %2504 = vmatpush1.bf16.msra.mxu0 %v2016
    %2505 = vmatprep.subr.bf16.mxu0 %v2023
    %2506 = vmatpush1.bf16.msra.mxu0 %v2022
    %2507 = vmatprep.subr.bf16.mxu0 %v2029
    %2508 = vmatpush1.bf16.msra.mxu0 %v2028
    %2509 = vmatprep.subr.bf16.mxu0 %v2035
    %2510 = vmatpush1.bf16.msra.mxu0 %v2034
    %2511 = vmatprep.subr.bf16.mxu0 %v2041
    %2512 = vmatpush1.bf16.msra.mxu0 %v2040
    %2513 = vmatprep.subr.bf16.mxu0 %v2047
    %2514 = vmatpush1.bf16.msra.mxu0 %v2046
    %2515 = vmatprep.subr.bf16.mxu0 %v2053
    %2516 = vmatpush1.bf16.msra.mxu0 %v2052
    %2517 = vmatprep.mubr.bf16.mxu0 %v679
    %2518 = vmatmul.mubr.bf16.gmra.mrb[0].mxu0 %v678
    %v2519 = vpop.f32.mrb[0].mxu0
    %v2520 = vadd.f32 %v2477, %v2519
    %v2521 = vpop.f32.mrb[0].mxu0
    %v2522 = vadd.f32 %v2479, %v2521
    %v2523 = vpop.f32.mrb[0].mxu0
    %v2524 = vadd.f32 %v2481, %v2523
    %v2525 = vpop.f32.mrb[0].mxu0
    %v2526 = vadd.f32 %v2483, %v2525
    %2527 = vdwg.mxu0
    %2528 = vmatprep.subr.bf16.mxu0 %v2059
    %2529 = vmatpush1.bf16.msra.mxu0 %v2058
    %2530 = vmatprep.subr.bf16.mxu0 %v2065
    %2531 = vmatpush1.bf16.msra.mxu0 %v2064
    %2532 = vmatprep.subr.bf16.mxu0 %v2071
    %2533 = vmatpush1.bf16.msra.mxu0 %v2070
    %2534 = vmatprep.subr.bf16.mxu0 %v2077
    %2535 = vmatpush1.bf16.msra.mxu0 %v2076
    %2536 = vmatprep.subr.bf16.mxu0 %v2083
    %2537 = vmatpush1.bf16.msra.mxu0 %v2082
    %2538 = vmatprep.subr.bf16.mxu0 %v2089
    %2539 = vmatpush1.bf16.msra.mxu0 %v2088
    %2540 = vmatprep.subr.bf16.mxu0 %v2095
    %2541 = vmatpush1.bf16.msra.mxu0 %v2094
    %2542 = vmatprep.subr.bf16.mxu0 %v2101
    %2543 = vmatpush1.bf16.msra.mxu0 %v2100
    %2544 = vmatprep.subr.bf16.mxu0 %v2107
    %2545 = vmatpush1.bf16.msra.mxu0 %v2106
    %2546 = vmatprep.subr.bf16.mxu0 %v2113
    %2547 = vmatpush1.bf16.msra.mxu0 %v2112
    %2548 = vmatprep.subr.bf16.mxu0 %v2119
    %2549 = vmatpush1.bf16.msra.mxu0 %v2118
    %2550 = vmatprep.subr.bf16.mxu0 %v2125
    %2551 = vmatpush1.bf16.msra.mxu0 %v2124
    %2552 = vmatprep.subr.bf16.mxu0 %v2131
    %2553 = vmatpush1.bf16.msra.mxu0 %v2130
    %2554 = vmatprep.subr.bf16.mxu0 %v2137
    %2555 = vmatpush1.bf16.msra.mxu0 %v2136
    %2556 = vmatprep.subr.bf16.mxu0 %v2143
    %2557 = vmatpush1.bf16.msra.mxu0 %v2142
    %2558 = vmatprep.subr.bf16.mxu0 %v2149
    %2559 = vmatpush1.bf16.msra.mxu0 %v2148
    %2560 = vmatprep.mubr.bf16.mxu0 %v681
    %2561 = vmatmul.mubr.bf16.gmra.mrb[0].mxu0 %v680
    %v2562 = vpop.f32.mrb[0].mxu0
    %v2563 = vadd.f32 %v2520, %v2562
    %v2564 = vpop.f32.mrb[0].mxu0
    %v2565 = vadd.f32 %v2522, %v2564
    %v2566 = vpop.f32.mrb[0].mxu0
    %v2567 = vadd.f32 %v2524, %v2566
    %v2568 = vpop.f32.mrb[0].mxu0
    %v2569 = vadd.f32 %v2526, %v2568
    %2570 = vdwg.mxu0
    %2571 = vmatprep.subr.bf16.mxu0 %v1869
    %2572 = vmatpush1.bf16.msra.mxu0 %v1868
    %2573 = vmatprep.subr.bf16.mxu0 %v1875
    %2574 = vmatpush1.bf16.msra.mxu0 %v1874
    %2575 = vmatprep.subr.bf16.mxu0 %v1881
    %2576 = vmatpush1.bf16.msra.mxu0 %v1880
    %2577 = vmatprep.subr.bf16.mxu0 %v1887
    %2578 = vmatpush1.bf16.msra.mxu0 %v1886
    %2579 = vmatprep.subr.bf16.mxu0 %v1893
    %2580 = vmatpush1.bf16.msra.mxu0 %v1892
    %2581 = vmatprep.subr.bf16.mxu0 %v1899
    %2582 = vmatpush1.bf16.msra.mxu0 %v1898
    %2583 = vmatprep.subr.bf16.mxu0 %v1905
    %2584 = vmatpush1.bf16.msra.mxu0 %v1904
    %2585 = vmatprep.subr.bf16.mxu0 %v1911
    %2586 = vmatpush1.bf16.msra.mxu0 %v1910
    %2587 = vmatprep.subr.bf16.mxu0 %v1917
    %2588 = vmatpush1.bf16.msra.mxu0 %v1916
    %2589 = vmatprep.subr.bf16.mxu0 %v1923
    %2590 = vmatpush1.bf16.msra.mxu0 %v1922
    %2591 = vmatprep.subr.bf16.mxu0 %v1929
    %2592 = vmatpush1.bf16.msra.mxu0 %v1928
    %2593 = vmatprep.subr.bf16.mxu0 %v1935
    %2594 = vmatpush1.bf16.msra.mxu0 %v1934
    %2595 = vmatprep.subr.bf16.mxu0 %v1941
    %2596 = vmatpush1.bf16.msra.mxu0 %v1940
    %2597 = vmatprep.subr.bf16.mxu0 %v1947
    %2598 = vmatpush1.bf16.msra.mxu0 %v1946
    %2599 = vmatprep.subr.bf16.mxu0 %v1953
    %2600 = vmatpush1.bf16.msra.mxu0 %v1952
    %2601 = vmatprep.subr.bf16.mxu0 %v1959
    %2602 = vmatpush1.bf16.msra.mxu0 %v1958
    %2603 = vmatprep.mubr.bf16.mxu0 %v677
    %2604 = vmatmul.mubr.bf16.gmra.mrb[0].mxu0 %v676
    %v2605 = vpop.f32.mrb[0].mxu0
    %v2606 = vadd.f32 %v983, %v2605
    %v2607 = vpop.f32.mrb[0].mxu0
    %v2608 = vadd.f32 %v987, %v2607
    %v2609 = vpop.f32.mrb[0].mxu0
    %v2610 = vadd.f32 %v983, %v2609
    %v2611 = vpop.f32.mrb[0].mxu0
    %v2612 = vadd.f32 %v987, %v2611
    %2613 = vdwg.mxu0
    %2614 = vmatprep.subr.bf16.mxu0 %v1965
    %2615 = vmatpush1.bf16.msra.mxu0 %v1964
    %2616 = vmatprep.subr.bf16.mxu0 %v1971
    %2617 = vmatpush1.bf16.msra.mxu0 %v1970
    %2618 = vmatprep.subr.bf16.mxu0 %v1977
    %2619 = vmatpush1.bf16.msra.mxu0 %v1976
    %2620 = vmatprep.subr.bf16.mxu0 %v1983
    %2621 = vmatpush1.bf16.msra.mxu0 %v1982
    %2622 = vmatprep.subr.bf16.mxu0 %v1989
    %2623 = vmatpush1.bf16.msra.mxu0 %v1988
    %2624 = vmatprep.subr.bf16.mxu0 %v1995
    %2625 = vmatpush1.bf16.msra.mxu0 %v1994
    %2626 = vmatprep.subr.bf16.mxu0 %v2001
    %2627 = vmatpush1.bf16.msra.mxu0 %v2000
    %2628 = vmatprep.subr.bf16.mxu0 %v2007
    %2629 = vmatpush1.bf16.msra.mxu0 %v2006
    %2630 = vmatprep.subr.bf16.mxu0 %v2013
    %2631 = vmatpush1.bf16.msra.mxu0 %v2012
    %2632 = vmatprep.subr.bf16.mxu0 %v2019
    %2633 = vmatpush1.bf16.msra.mxu0 %v2018
    %2634 = vmatprep.subr.bf16.mxu0 %v2025
    %2635 = vmatpush1.bf16.msra.mxu0 %v2024
    %2636 = vmatprep.subr.bf16.mxu0 %v2031
    %2637 = vmatpush1.bf16.msra.mxu0 %v2030
    %2638 = vmatprep.subr.bf16.mxu0 %v2037
    %2639 = vmatpush1.bf16.msra.mxu0 %v2036
    %2640 = vmatprep.subr.bf16.mxu0 %v2043
    %2641 = vmatpush1.bf16.msra.mxu0 %v2042
    %2642 = vmatprep.subr.bf16.mxu0 %v2049
    %2643 = vmatpush1.bf16.msra.mxu0 %v2048
    %2644 = vmatprep.subr.bf16.mxu0 %v2055
    %2645 = vmatpush1.bf16.msra.mxu0 %v2054
    %2646 = vmatprep.mubr.bf16.mxu0 %v679
    %2647 = vmatmul.mubr.bf16.gmra.mrb[0].mxu0 %v678
    %v2648 = vpop.f32.mrb[0].mxu0
    %v2649 = vadd.f32 %v2606, %v2648
    %v2650 = vpop.f32.mrb[0].mxu0
    %v2651 = vadd.f32 %v2608, %v2650
    %v2652 = vpop.f32.mrb[0].mxu0
    %v2653 = vadd.f32 %v2610, %v2652
    %v2654 = vpop.f32.mrb[0].mxu0
    %v2655 = vadd.f32 %v2612, %v2654
    %2656 = vdwg.mxu0
    %2657 = vmatprep.subr.bf16.mxu0 %v2061
    %2658 = vmatpush1.bf16.msra.mxu0 %v2060
    %2659 = vmatprep.subr.bf16.mxu0 %v2067
    %2660 = vmatpush1.bf16.msra.mxu0 %v2066
    %2661 = vmatprep.subr.bf16.mxu0 %v2073
    %2662 = vmatpush1.bf16.msra.mxu0 %v2072
    %2663 = vmatprep.subr.bf16.mxu0 %v2079
    %2664 = vmatpush1.bf16.msra.mxu0 %v2078
    %2665 = vmatprep.subr.bf16.mxu0 %v2085
    %2666 = vmatpush1.bf16.msra.mxu0 %v2084
    %2667 = vmatprep.subr.bf16.mxu0 %v2091
    %2668 = vmatpush1.bf16.msra.mxu0 %v2090
    %2669 = vmatprep.subr.bf16.mxu0 %v2097
    %2670 = vmatpush1.bf16.msra.mxu0 %v2096
    %2671 = vmatprep.subr.bf16.mxu0 %v2103
    %2672 = vmatpush1.bf16.msra.mxu0 %v2102
    %2673 = vmatprep.subr.bf16.mxu0 %v2109
    %2674 = vmatpush1.bf16.msra.mxu0 %v2108
    %2675 = vmatprep.subr.bf16.mxu0 %v2115
    %2676 = vmatpush1.bf16.msra.mxu0 %v2114
    %2677 = vmatprep.subr.bf16.mxu0 %v2121
    %2678 = vmatpush1.bf16.msra.mxu0 %v2120
    %2679 = vmatprep.subr.bf16.mxu0 %v2127
    %2680 = vmatpush1.bf16.msra.mxu0 %v2126
    %2681 = vmatprep.subr.bf16.mxu0 %v2133
    %2682 = vmatpush1.bf16.msra.mxu0 %v2132
    %2683 = vmatprep.subr.bf16.mxu0 %v2139
    %2684 = vmatpush1.bf16.msra.mxu0 %v2138
    %2685 = vmatprep.subr.bf16.mxu0 %v2145
    %2686 = vmatpush1.bf16.msra.mxu0 %v2144
    %2687 = vmatprep.subr.bf16.mxu0 %v2151
    %2688 = vmatpush1.bf16.msra.mxu0 %v2150
    %2689 = vmatprep.mubr.bf16.mxu0 %v681
    %2690 = vmatmul.mubr.bf16.gmra.mrb[0].mxu0 %v680
    %v2691 = vpop.f32.mrb[0].mxu0
    %v2692 = vadd.f32 %v2649, %v2691
    %v2693 = vpop.f32.mrb[0].mxu0
    %v2694 = vadd.f32 %v2651, %v2693
    %v2695 = vpop.f32.mrb[0].mxu0
    %v2696 = vadd.f32 %v2653, %v2695
    %v2697 = vpop.f32.mrb[0].mxu0
    %v2698 = vadd.f32 %v2655, %v2697
    %2699 = vdwg.mxu0
    %2700 = vmatprep.subr.bf16.mxu0 %v1871
    %2701 = vmatpush1.bf16.msra.mxu0 %v1870
    %2702 = vmatprep.subr.bf16.mxu0 %v1877
    %2703 = vmatpush1.bf16.msra.mxu0 %v1876
    %2704 = vmatprep.subr.bf16.mxu0 %v1883
    %2705 = vmatpush1.bf16.msra.mxu0 %v1882
    %2706 = vmatprep.subr.bf16.mxu0 %v1889
    %2707 = vmatpush1.bf16.msra.mxu0 %v1888
    %2708 = vmatprep.subr.bf16.mxu0 %v1895
    %2709 = vmatpush1.bf16.msra.mxu0 %v1894
    %2710 = vmatprep.subr.bf16.mxu0 %v1901
    %2711 = vmatpush1.bf16.msra.mxu0 %v1900
    %2712 = vmatprep.subr.bf16.mxu0 %v1907
    %2713 = vmatpush1.bf16.msra.mxu0 %v1906
    %2714 = vmatprep.subr.bf16.mxu0 %v1913
    %2715 = vmatpush1.bf16.msra.mxu0 %v1912
    %2716 = vmatprep.subr.bf16.mxu0 %v1919
    %2717 = vmatpush1.bf16.msra.mxu0 %v1918
    %2718 = vmatprep.subr.bf16.mxu0 %v1925
    %2719 = vmatpush1.bf16.msra.mxu0 %v1924
    %2720 = vmatprep.subr.bf16.mxu0 %v1931
    %2721 = vmatpush1.bf16.msra.mxu0 %v1930
    %2722 = vmatprep.subr.bf16.mxu0 %v1937
    %2723 = vmatpush1.bf16.msra.mxu0 %v1936
    %2724 = vmatprep.subr.bf16.mxu0 %v1943
    %2725 = vmatpush1.bf16.msra.mxu0 %v1942
    %2726 = vmatprep.subr.bf16.mxu0 %v1949
    %2727 = vmatpush1.bf16.msra.mxu0 %v1948
    %2728 = vmatprep.subr.bf16.mxu0 %v1955
    %2729 = vmatpush1.bf16.msra.mxu0 %v1954
    %2730 = vmatprep.subr.bf16.mxu0 %v1961
    %2731 = vmatpush1.bf16.msra.mxu0 %v1960
    %2732 = vmatprep.mubr.bf16.mxu0 %v677
    %2733 = vmatmul.mubr.bf16.gmra.mrb[0].mxu0 %v676
    %v2734 = vpop.f32.mrb[0].mxu0
    %v2735 = vadd.f32 %v991, %v2734
    %v2736 = vpop.f32.mrb[0].mxu0
    %v2737 = vadd.f32 %v995, %v2736
    %v2738 = vpop.f32.mrb[0].mxu0
    %v2739 = vadd.f32 %v991, %v2738
    %v2740 = vpop.f32.mrb[0].mxu0
    %v2741 = vadd.f32 %v995, %v2740
    %2742 = vdwg.mxu0
    %2743 = vmatprep.subr.bf16.mxu0 %v1967
    %2744 = vmatpush1.bf16.msra.mxu0 %v1966
    %2745 = vmatprep.subr.bf16.mxu0 %v1973
    %2746 = vmatpush1.bf16.msra.mxu0 %v1972
    %2747 = vmatprep.subr.bf16.mxu0 %v1979
    %2748 = vmatpush1.bf16.msra.mxu0 %v1978
    %2749 = vmatprep.subr.bf16.mxu0 %v1985
    %2750 = vmatpush1.bf16.msra.mxu0 %v1984
    %2751 = vmatprep.subr.bf16.mxu0 %v1991
    %2752 = vmatpush1.bf16.msra.mxu0 %v1990
    %2753 = vmatprep.subr.bf16.mxu0 %v1997
    %2754 = vmatpush1.bf16.msra.mxu0 %v1996
    %2755 = vmatprep.subr.bf16.mxu0 %v2003
    %2756 = vmatpush1.bf16.msra.mxu0 %v2002
    %2757 = vmatprep.subr.bf16.mxu0 %v2009
    %2758 = vmatpush1.bf16.msra.mxu0 %v2008
    %2759 = vmatprep.subr.bf16.mxu0 %v2015
    %2760 = vmatpush1.bf16.msra.mxu0 %v2014
    %2761 = vmatprep.subr.bf16.mxu0 %v2021
    %2762 = vmatpush1.bf16.msra.mxu0 %v2020
    %2763 = vmatprep.subr.bf16.mxu0 %v2027
    %2764 = vmatpush1.bf16.msra.mxu0 %v2026
    %2765 = vmatprep.subr.bf16.mxu0 %v2033
    %2766 = vmatpush1.bf16.msra.mxu0 %v2032
    %2767 = vmatprep.subr.bf16.mxu0 %v2039
    %2768 = vmatpush1.bf16.msra.mxu0 %v2038
    %2769 = vmatprep.subr.bf16.mxu0 %v2045
    %2770 = vmatpush1.bf16.msra.mxu0 %v2044
    %2771 = vmatprep.subr.bf16.mxu0 %v2051
    %2772 = vmatpush1.bf16.msra.mxu0 %v2050
    %2773 = vmatprep.subr.bf16.mxu0 %v2057
    %2774 = vmatpush1.bf16.msra.mxu0 %v2056
    %2775 = vmatprep.mubr.bf16.mxu0 %v679
    %2776 = vmatmul.mubr.bf16.gmra.mrb[0].mxu0 %v678
    %v2777 = vpop.f32.mrb[0].mxu0
    %v2778 = vadd.f32 %v2735, %v2777
    %v2779 = vpop.f32.mrb[0].mxu0
    %v2780 = vadd.f32 %v2737, %v2779
    %v2781 = vpop.f32.mrb[0].mxu0
    %v2782 = vadd.f32 %v2739, %v2781
    %v2783 = vpop.f32.mrb[0].mxu0
    %v2784 = vadd.f32 %v2741, %v2783
    %2785 = vdwg.mxu0
    %2786 = vmatprep.subr.bf16.mxu0 %v2063
    %2787 = vmatpush1.bf16.msra.mxu0 %v2062
    %2788 = vmatprep.subr.bf16.mxu0 %v2069
    %2789 = vmatpush1.bf16.msra.mxu0 %v2068
    %2790 = vmatprep.subr.bf16.mxu0 %v2075
    %2791 = vmatpush1.bf16.msra.mxu0 %v2074
    %2792 = vmatprep.subr.bf16.mxu0 %v2081
    %2793 = vmatpush1.bf16.msra.mxu0 %v2080
    %2794 = vmatprep.subr.bf16.mxu0 %v2087
    %2795 = vmatpush1.bf16.msra.mxu0 %v2086
    %2796 = vmatprep.subr.bf16.mxu0 %v2093
    %2797 = vmatpush1.bf16.msra.mxu0 %v2092
    %2798 = vmatprep.subr.bf16.mxu0 %v2099
    %2799 = vmatpush1.bf16.msra.mxu0 %v2098
    %2800 = vmatprep.subr.bf16.mxu0 %v2105
    %2801 = vmatpush1.bf16.msra.mxu0 %v2104
    %2802 = vmatprep.subr.bf16.mxu0 %v2111
    %2803 = vmatpush1.bf16.msra.mxu0 %v2110
    %2804 = vmatprep.subr.bf16.mxu0 %v2117
    %2805 = vmatpush1.bf16.msra.mxu0 %v2116
    %2806 = vmatprep.subr.bf16.mxu0 %v2123
    %2807 = vmatpush1.bf16.msra.mxu0 %v2122
    %2808 = vmatprep.subr.bf16.mxu0 %v2129
    %2809 = vmatpush1.bf16.msra.mxu0 %v2128
    %2810 = vmatprep.subr.bf16.mxu0 %v2135
    %2811 = vmatpush1.bf16.msra.mxu0 %v2134
    %2812 = vmatprep.subr.bf16.mxu0 %v2141
    %2813 = vmatpush1.bf16.msra.mxu0 %v2140
    %2814 = vmatprep.subr.bf16.mxu0 %v2147
    %2815 = vmatpush1.bf16.msra.mxu0 %v2146
    %2816 = vmatprep.subr.bf16.mxu0 %v2153
    %2817 = vmatpush1.bf16.msra.mxu0 %v2152
    %2818 = vmatprep.mubr.bf16.mxu0 %v681
    %2819 = vmatmul.mubr.bf16.gmra.mrb[0].mxu0 %v680
    %v2820 = vpop.f32.mrb[0].mxu0
    %v2821 = vadd.f32 %v2778, %v2820
    %v2822 = vpop.f32.mrb[0].mxu0
    %v2823 = vadd.f32 %v2780, %v2822
    %v2824 = vpop.f32.mrb[0].mxu0
    %v2825 = vadd.f32 %v2782, %v2824
    %v2826 = vpop.f32.mrb[0].mxu0
    %v2827 = vadd.f32 %v2784, %v2826
    %2828 = vdwg.mxu0
    %v2829 = vmax.f32 %v2563, 0.0
    %v2830 = vmax.f32 %v2565, 0.0
    %v2831 = vmax.f32 %v2692, 0.0
    %v2832 = vmax.f32 %v2694, 0.0
    %v2833 = vmax.f32 %v2821, 0.0
    %v2834 = vmax.f32 %v2823, 0.0
    %v2835 = vmax.f32 %v2567, 0.0
    %v2836 = vmax.f32 %v2569, 0.0
    %v2837 = vmax.f32 %v2696, 0.0
    %v2838 = vmax.f32 %v2698, 0.0
    %v2839 = vmax.f32 %v2825, 0.0
    %v2840 = vmax.f32 %v2827, 0.0
    %v2841 = vpack.c.bf16 %v2835, %v2829
    %v2842 = vpack.c.bf16 %v2836, %v2830
    %v2843 = vpack.c.bf16 %v2837, %v2831
    %v2844 = vpack.c.bf16 %v2838, %v2832
    %v2845 = vpack.c.bf16 %v2839, %v2833
    %v2846 = vpack.c.bf16 %v2840, %v2834
    %v2847 = vld [vmem:[#allocation11] sm:$0xff]
    %v2848 = vld [vmem:[#allocation11 + $0x8] sm:$0xff]
    %v2849 = vld [vmem:[#allocation11 + $0x10] sm:$0xff]
    %v2850 = vld [vmem:[#allocation11 + $0x18] sm:$0xff]
    %v2851 = vld [vmem:[#allocation11 + $0x20] sm:$0xff]
    %v2852 = vld [vmem:[#allocation11 + $0x28] sm:$0xff]
    %v2853 = vld [vmem:[#allocation11 + $0x30] sm:$0xff]
    %v2854 = vld [vmem:[#allocation11 + $0x38] sm:$0xff]
    %v2855 = vld [vmem:[#allocation11 + $0x40] sm:$0xff]
    %v2856 = vld [vmem:[#allocation11 + $0x48] sm:$0xff]
    %v2857 = vld [vmem:[#allocation11 + $0x50] sm:$0xff]
    %v2858 = vld [vmem:[#allocation11 + $0x58] sm:$0xff]
    %v2859 = vld [vmem:[#allocation11 + $0x60] sm:$0xff]
    %v2860 = vld [vmem:[#allocation11 + $0x68] sm:$0xff]
    %v2861 = vld [vmem:[#allocation11 + $0x70] sm:$0xff]
    %v2862 = vld [vmem:[#allocation11 + $0x78] sm:$0xff]
    %v2863 = vld [vmem:[#allocation11 + $0x80] sm:$0xff]
    %v2864 = vld [vmem:[#allocation11 + $0x88] sm:$0xff]
    %v2865 = vld [vmem:[#allocation11 + $0x90] sm:$0xff]
    %v2866 = vld [vmem:[#allocation11 + $0x98] sm:$0xff]
    %v2867 = vld [vmem:[#allocation11 + $0xa0] sm:$0xff]
    %v2868 = vld [vmem:[#allocation11 + $0xa8] sm:$0xff]
    %v2869 = vld [vmem:[#allocation11 + $0xb0] sm:$0xff]
    %v2870 = vld [vmem:[#allocation11 + $0xb8] sm:$0xff]
    %v2871 = vld [vmem:[#allocation11 + $0xc0] sm:$0xff]
    %v2872 = vld [vmem:[#allocation11 + $0xc8] sm:$0xff]
    %v2873 = vld [vmem:[#allocation11 + $0xd0] sm:$0xff]
    %v2874 = vld [vmem:[#allocation11 + $0xd8] sm:$0xff]
    %v2875 = vld [vmem:[#allocation11 + $0xe0] sm:$0xff]
    %v2876 = vld [vmem:[#allocation11 + $0xe8] sm:$0xff]
    %v2877 = vld [vmem:[#allocation11 + $0xf0] sm:$0xff]
    %v2878 = vld [vmem:[#allocation11 + $0xf8] sm:$0xff]
    %v2879 = vld [vmem:[#allocation11 + $0x100] sm:$0xff]
    %v2880 = vld [vmem:[#allocation11 + $0x108] sm:$0xff]
    %v2881 = vld [vmem:[#allocation11 + $0x110] sm:$0xff]
    %v2882 = vld [vmem:[#allocation11 + $0x118] sm:$0xff]
    %v2883 = vld [vmem:[#allocation11 + $0x120] sm:$0xff]
    %v2884 = vld [vmem:[#allocation11 + $0x128] sm:$0xff]
    %v2885 = vld [vmem:[#allocation11 + $0x130] sm:$0xff]
    %v2886 = vld [vmem:[#allocation11 + $0x138] sm:$0xff]
    %v2887 = vld [vmem:[#allocation11 + $0x140] sm:$0xff]
    %v2888 = vld [vmem:[#allocation11 + $0x148] sm:$0xff]
    %v2889 = vld [vmem:[#allocation11 + $0x150] sm:$0xff]
    %v2890 = vld [vmem:[#allocation11 + $0x158] sm:$0xff]
    %v2891 = vld [vmem:[#allocation11 + $0x160] sm:$0xff]
    %v2892 = vld [vmem:[#allocation11 + $0x168] sm:$0xff]
    %v2893 = vld [vmem:[#allocation11 + $0x170] sm:$0xff]
    %v2894 = vld [vmem:[#allocation11 + $0x178] sm:$0xff]
    %v2895 = vld [vmem:[#allocation11 + $0x180] sm:$0xff]
    %v2896 = vld [vmem:[#allocation11 + $0x188] sm:$0xff]
    %v2897 = vld [vmem:[#allocation11 + $0x190] sm:$0xff]
    %v2898 = vld [vmem:[#allocation11 + $0x198] sm:$0xff]
    %v2899 = vld [vmem:[#allocation11 + $0x1a0] sm:$0xff]
    %v2900 = vld [vmem:[#allocation11 + $0x1a8] sm:$0xff]
    %v2901 = vld [vmem:[#allocation11 + $0x1b0] sm:$0xff]
    %v2902 = vld [vmem:[#allocation11 + $0x1b8] sm:$0xff]
    %v2903 = vld [vmem:[#allocation11 + $0x1c0] sm:$0xff]
    %v2904 = vld [vmem:[#allocation11 + $0x1c8] sm:$0xff]
    %v2905 = vld [vmem:[#allocation11 + $0x1d0] sm:$0xff]
    %v2906 = vld [vmem:[#allocation11 + $0x1d8] sm:$0xff]
    %v2907 = vld [vmem:[#allocation11 + $0x1e0] sm:$0xff]
    %v2908 = vld [vmem:[#allocation11 + $0x1e8] sm:$0xff]
    %v2909 = vld [vmem:[#allocation11 + $0x1f0] sm:$0xff]
    %v2910 = vld [vmem:[#allocation11 + $0x1f8] sm:$0xff]
    %v2911 = vld [vmem:[#allocation11 + $0x200] sm:$0xff]
    %v2912 = vld [vmem:[#allocation11 + $0x208] sm:$0xff]
    %v2913 = vld [vmem:[#allocation11 + $0x210] sm:$0xff]
    %v2914 = vld [vmem:[#allocation11 + $0x218] sm:$0xff]
    %v2915 = vld [vmem:[#allocation11 + $0x220] sm:$0xff]
    %v2916 = vld [vmem:[#allocation11 + $0x228] sm:$0xff]
    %v2917 = vld [vmem:[#allocation11 + $0x230] sm:$0xff]
    %v2918 = vld [vmem:[#allocation11 + $0x238] sm:$0xff]
    %v2919 = vld [vmem:[#allocation11 + $0x240] sm:$0xff]
    %v2920 = vld [vmem:[#allocation11 + $0x248] sm:$0xff]
    %v2921 = vld [vmem:[#allocation11 + $0x250] sm:$0xff]
    %v2922 = vld [vmem:[#allocation11 + $0x258] sm:$0xff]
    %v2923 = vld [vmem:[#allocation11 + $0x260] sm:$0xff]
    %v2924 = vld [vmem:[#allocation11 + $0x268] sm:$0xff]
    %v2925 = vld [vmem:[#allocation11 + $0x270] sm:$0xff]
    %v2926 = vld [vmem:[#allocation11 + $0x278] sm:$0xff]
    %v2927 = vld [vmem:[#allocation11 + $0x280] sm:$0xff]
    %v2928 = vld [vmem:[#allocation11 + $0x288] sm:$0xff]
    %v2929 = vld [vmem:[#allocation11 + $0x290] sm:$0xff]
    %v2930 = vld [vmem:[#allocation11 + $0x298] sm:$0xff]
    %v2931 = vld [vmem:[#allocation11 + $0x2a0] sm:$0xff]
    %v2932 = vld [vmem:[#allocation11 + $0x2a8] sm:$0xff]
    %v2933 = vld [vmem:[#allocation11 + $0x2b0] sm:$0xff]
    %v2934 = vld [vmem:[#allocation11 + $0x2b8] sm:$0xff]
    %v2935 = vld [vmem:[#allocation11 + $0x2c0] sm:$0xff]
    %v2936 = vld [vmem:[#allocation11 + $0x2c8] sm:$0xff]
    %v2937 = vld [vmem:[#allocation11 + $0x2d0] sm:$0xff]
    %v2938 = vld [vmem:[#allocation11 + $0x2d8] sm:$0xff]
    %v2939 = vld [vmem:[#allocation11 + $0x2e0] sm:$0xff]
    %v2940 = vld [vmem:[#allocation11 + $0x2e8] sm:$0xff]
    %v2941 = vld [vmem:[#allocation11 + $0x2f0] sm:$0xff]
    %v2942 = vld [vmem:[#allocation11 + $0x2f8] sm:$0xff]
    %v2943 = vld [vmem:[#allocation13] sm:$0x3]
    %v2945 = vlaneseq
    %v2946 = vshrl.u32 %v2945, 7
    %v2947 = vsub.s32 0, %v2946
    %v2948 = vrot.slane %v2943, %v2947
    %v2949 = vlaneseq
    %v2950 = vshrl.u32 %v2949, 7
    %v2951 = vsub.s32 1, %v2950
    %v2952 = vrot.slane %v2943, %v2951
    %v3051 = vunpack.c.l.b16 %v2847
    %v3052 = vunpack.c.h.b16 %v2847
    %v3053 = vunpack.c.l.b16 %v2848
    %v3054 = vunpack.c.h.b16 %v2848
    %v3055 = vunpack.c.l.b16 %v2849
    %v3056 = vunpack.c.h.b16 %v2849
    %v3057 = vunpack.c.l.b16 %v2850
    %v3058 = vunpack.c.h.b16 %v2850
    %v3059 = vunpack.c.l.b16 %v2851
    %v3060 = vunpack.c.h.b16 %v2851
    %v3061 = vunpack.c.l.b16 %v2852
    %v3062 = vunpack.c.h.b16 %v2852
    %v3063 = vunpack.c.l.b16 %v2853
    %v3064 = vunpack.c.h.b16 %v2853
    %v3065 = vunpack.c.l.b16 %v2854
    %v3066 = vunpack.c.h.b16 %v2854
    %v3067 = vunpack.c.l.b16 %v2855
    %v3068 = vunpack.c.h.b16 %v2855
    %v3069 = vunpack.c.l.b16 %v2856
    %v3070 = vunpack.c.h.b16 %v2856
    %v3071 = vunpack.c.l.b16 %v2857
    %v3072 = vunpack.c.h.b16 %v2857
    %v3073 = vunpack.c.l.b16 %v2858
    %v3074 = vunpack.c.h.b16 %v2858
    %v3075 = vunpack.c.l.b16 %v2859
    %v3076 = vunpack.c.h.b16 %v2859
    %v3077 = vunpack.c.l.b16 %v2860
    %v3078 = vunpack.c.h.b16 %v2860
    %v3079 = vunpack.c.l.b16 %v2861
    %v3080 = vunpack.c.h.b16 %v2861
    %v3081 = vunpack.c.l.b16 %v2862
    %v3082 = vunpack.c.h.b16 %v2862
    %v3083 = vunpack.c.l.b16 %v2863
    %v3084 = vunpack.c.h.b16 %v2863
    %v3085 = vunpack.c.l.b16 %v2864
    %v3086 = vunpack.c.h.b16 %v2864
    %v3087 = vunpack.c.l.b16 %v2865
    %v3088 = vunpack.c.h.b16 %v2865
    %v3089 = vunpack.c.l.b16 %v2866
    %v3090 = vunpack.c.h.b16 %v2866
    %v3091 = vunpack.c.l.b16 %v2867
    %v3092 = vunpack.c.h.b16 %v2867
    %v3093 = vunpack.c.l.b16 %v2868
    %v3094 = vunpack.c.h.b16 %v2868
    %v3095 = vunpack.c.l.b16 %v2869
    %v3096 = vunpack.c.h.b16 %v2869
    %v3097 = vunpack.c.l.b16 %v2870
    %v3098 = vunpack.c.h.b16 %v2870
    %v3099 = vunpack.c.l.b16 %v2871
    %v3100 = vunpack.c.h.b16 %v2871
    %v3101 = vunpack.c.l.b16 %v2872
    %v3102 = vunpack.c.h.b16 %v2872
    %v3103 = vunpack.c.l.b16 %v2873
    %v3104 = vunpack.c.h.b16 %v2873
    %v3105 = vunpack.c.l.b16 %v2874
    %v3106 = vunpack.c.h.b16 %v2874
    %v3107 = vunpack.c.l.b16 %v2875
    %v3108 = vunpack.c.h.b16 %v2875
    %v3109 = vunpack.c.l.b16 %v2876
    %v3110 = vunpack.c.h.b16 %v2876
    %v3111 = vunpack.c.l.b16 %v2877
    %v3112 = vunpack.c.h.b16 %v2877
    %v3113 = vunpack.c.l.b16 %v2878
    %v3114 = vunpack.c.h.b16 %v2878
    %v3115 = vunpack.c.l.b16 %v2879
    %v3116 = vunpack.c.h.b16 %v2879
    %v3117 = vunpack.c.l.b16 %v2880
    %v3118 = vunpack.c.h.b16 %v2880
    %v3119 = vunpack.c.l.b16 %v2881
    %v3120 = vunpack.c.h.b16 %v2881
    %v3121 = vunpack.c.l.b16 %v2882
    %v3122 = vunpack.c.h.b16 %v2882
    %v3123 = vunpack.c.l.b16 %v2883
    %v3124 = vunpack.c.h.b16 %v2883
    %v3125 = vunpack.c.l.b16 %v2884
    %v3126 = vunpack.c.h.b16 %v2884
    %v3127 = vunpack.c.l.b16 %v2885
    %v3128 = vunpack.c.h.b16 %v2885
    %v3129 = vunpack.c.l.b16 %v2886
    %v3130 = vunpack.c.h.b16 %v2886
    %v3131 = vunpack.c.l.b16 %v2887
    %v3132 = vunpack.c.h.b16 %v2887
    %v3133 = vunpack.c.l.b16 %v2888
    %v3134 = vunpack.c.h.b16 %v2888
    %v3135 = vunpack.c.l.b16 %v2889
    %v3136 = vunpack.c.h.b16 %v2889
    %v3137 = vunpack.c.l.b16 %v2890
    %v3138 = vunpack.c.h.b16 %v2890
    %v3139 = vunpack.c.l.b16 %v2891
    %v3140 = vunpack.c.h.b16 %v2891
    %v3141 = vunpack.c.l.b16 %v2892
    %v3142 = vunpack.c.h.b16 %v2892
    %v3143 = vunpack.c.l.b16 %v2893
    %v3144 = vunpack.c.h.b16 %v2893
    %v3145 = vunpack.c.l.b16 %v2894
    %v3146 = vunpack.c.h.b16 %v2894
    %v3147 = vunpack.c.l.b16 %v2895
    %v3148 = vunpack.c.h.b16 %v2895
    %v3149 = vunpack.c.l.b16 %v2896
    %v3150 = vunpack.c.h.b16 %v2896
    %v3151 = vunpack.c.l.b16 %v2897
    %v3152 = vunpack.c.h.b16 %v2897
    %v3153 = vunpack.c.l.b16 %v2898
    %v3154 = vunpack.c.h.b16 %v2898
    %v3155 = vunpack.c.l.b16 %v2899
    %v3156 = vunpack.c.h.b16 %v2899
    %v3157 = vunpack.c.l.b16 %v2900
    %v3158 = vunpack.c.h.b16 %v2900
    %v3159 = vunpack.c.l.b16 %v2901
    %v3160 = vunpack.c.h.b16 %v2901
    %v3161 = vunpack.c.l.b16 %v2902
    %v3162 = vunpack.c.h.b16 %v2902
    %v3163 = vunpack.c.l.b16 %v2903
    %v3164 = vunpack.c.h.b16 %v2903
    %v3165 = vunpack.c.l.b16 %v2904
    %v3166 = vunpack.c.h.b16 %v2904
    %v3167 = vunpack.c.l.b16 %v2905
    %v3168 = vunpack.c.h.b16 %v2905
    %v3169 = vunpack.c.l.b16 %v2906
    %v3170 = vunpack.c.h.b16 %v2906
    %v3171 = vunpack.c.l.b16 %v2907
    %v3172 = vunpack.c.h.b16 %v2907
    %v3173 = vunpack.c.l.b16 %v2908
    %v3174 = vunpack.c.h.b16 %v2908
    %v3175 = vunpack.c.l.b16 %v2909
    %v3176 = vunpack.c.h.b16 %v2909
    %v3177 = vunpack.c.l.b16 %v2910
    %v3178 = vunpack.c.h.b16 %v2910
    %v3179 = vunpack.c.l.b16 %v2911
    %v3180 = vunpack.c.h.b16 %v2911
    %v3181 = vunpack.c.l.b16 %v2912
    %v3182 = vunpack.c.h.b16 %v2912
    %v3183 = vunpack.c.l.b16 %v2913
    %v3184 = vunpack.c.h.b16 %v2913
    %v3185 = vunpack.c.l.b16 %v2914
    %v3186 = vunpack.c.h.b16 %v2914
    %v3187 = vunpack.c.l.b16 %v2915
    %v3188 = vunpack.c.h.b16 %v2915
    %v3189 = vunpack.c.l.b16 %v2916
    %v3190 = vunpack.c.h.b16 %v2916
    %v3191 = vunpack.c.l.b16 %v2917
    %v3192 = vunpack.c.h.b16 %v2917
    %v3193 = vunpack.c.l.b16 %v2918
    %v3194 = vunpack.c.h.b16 %v2918
    %v3195 = vunpack.c.l.b16 %v2919
    %v3196 = vunpack.c.h.b16 %v2919
    %v3197 = vunpack.c.l.b16 %v2920
    %v3198 = vunpack.c.h.b16 %v2920
    %v3199 = vunpack.c.l.b16 %v2921
    %v3200 = vunpack.c.h.b16 %v2921
    %v3201 = vunpack.c.l.b16 %v2922
    %v3202 = vunpack.c.h.b16 %v2922
    %v3203 = vunpack.c.l.b16 %v2923
    %v3204 = vunpack.c.h.b16 %v2923
    %v3205 = vunpack.c.l.b16 %v2924
    %v3206 = vunpack.c.h.b16 %v2924
    %v3207 = vunpack.c.l.b16 %v2925
    %v3208 = vunpack.c.h.b16 %v2925
    %v3209 = vunpack.c.l.b16 %v2926
    %v3210 = vunpack.c.h.b16 %v2926
    %v3211 = vunpack.c.l.b16 %v2927
    %v3212 = vunpack.c.h.b16 %v2927
    %v3213 = vunpack.c.l.b16 %v2928
    %v3214 = vunpack.c.h.b16 %v2928
    %v3215 = vunpack.c.l.b16 %v2929
    %v3216 = vunpack.c.h.b16 %v2929
    %v3217 = vunpack.c.l.b16 %v2930
    %v3218 = vunpack.c.h.b16 %v2930
    %v3219 = vunpack.c.l.b16 %v2931
    %v3220 = vunpack.c.h.b16 %v2931
    %v3221 = vunpack.c.l.b16 %v2932
    %v3222 = vunpack.c.h.b16 %v2932
    %v3223 = vunpack.c.l.b16 %v2933
    %v3224 = vunpack.c.h.b16 %v2933
    %v3225 = vunpack.c.l.b16 %v2934
    %v3226 = vunpack.c.h.b16 %v2934
    %v3227 = vunpack.c.l.b16 %v2935
    %v3228 = vunpack.c.h.b16 %v2935
    %v3229 = vunpack.c.l.b16 %v2936
    %v3230 = vunpack.c.h.b16 %v2936
    %v3231 = vunpack.c.l.b16 %v2937
    %v3232 = vunpack.c.h.b16 %v2937
    %v3233 = vunpack.c.l.b16 %v2938
    %v3234 = vunpack.c.h.b16 %v2938
    %v3235 = vunpack.c.l.b16 %v2939
    %v3236 = vunpack.c.h.b16 %v2939
    %v3237 = vunpack.c.l.b16 %v2940
    %v3238 = vunpack.c.h.b16 %v2940
    %v3239 = vunpack.c.l.b16 %v2941
    %v3240 = vunpack.c.h.b16 %v2941
    %v3241 = vunpack.c.l.b16 %v2942
    %v3242 = vunpack.c.h.b16 %v2942
    %v3243 = vpack.c.b16 %v3053, %v3051
    %v3244 = vpack.c.b16 %v3054, %v3052
    %v3245 = vpack.c.b16 %v3057, %v3055
    %v3246 = vpack.c.b16 %v3058, %v3056
    %v3247 = vpack.c.b16 %v3061, %v3059
    %v3248 = vpack.c.b16 %v3062, %v3060
    %v3249 = vpack.c.b16 %v3065, %v3063
    %v3250 = vpack.c.b16 %v3066, %v3064
    %v3251 = vpack.c.b16 %v3069, %v3067
    %v3252 = vpack.c.b16 %v3070, %v3068
    %v3253 = vpack.c.b16 %v3073, %v3071
    %v3254 = vpack.c.b16 %v3074, %v3072
    %v3255 = vpack.c.b16 %v3077, %v3075
    %v3256 = vpack.c.b16 %v3078, %v3076
    %v3257 = vpack.c.b16 %v3081, %v3079
    %v3258 = vpack.c.b16 %v3082, %v3080
    %v3259 = vpack.c.b16 %v3085, %v3083
    %v3260 = vpack.c.b16 %v3086, %v3084
    %v3261 = vpack.c.b16 %v3089, %v3087
    %v3262 = vpack.c.b16 %v3090, %v3088
    %v3263 = vpack.c.b16 %v3093, %v3091
    %v3264 = vpack.c.b16 %v3094, %v3092
    %v3265 = vpack.c.b16 %v3097, %v3095
    %v3266 = vpack.c.b16 %v3098, %v3096
    %v3267 = vpack.c.b16 %v3101, %v3099
    %v3268 = vpack.c.b16 %v3102, %v3100
    %v3269 = vpack.c.b16 %v3105, %v3103
    %v3270 = vpack.c.b16 %v3106, %v3104
    %v3271 = vpack.c.b16 %v3109, %v3107
    %v3272 = vpack.c.b16 %v3110, %v3108
    %v3273 = vpack.c.b16 %v3113, %v3111
    %v3274 = vpack.c.b16 %v3114, %v3112
    %v3275 = vpack.c.b16 %v3117, %v3115
    %v3276 = vpack.c.b16 %v3118, %v3116
    %v3277 = vpack.c.b16 %v3121, %v3119
    %v3278 = vpack.c.b16 %v3122, %v3120
    %v3279 = vpack.c.b16 %v3125, %v3123
    %v3280 = vpack.c.b16 %v3126, %v3124
    %v3281 = vpack.c.b16 %v3129, %v3127
    %v3282 = vpack.c.b16 %v3130, %v3128
    %v3283 = vpack.c.b16 %v3133, %v3131
    %v3284 = vpack.c.b16 %v3134, %v3132
    %v3285 = vpack.c.b16 %v3137, %v3135
    %v3286 = vpack.c.b16 %v3138, %v3136
    %v3287 = vpack.c.b16 %v3141, %v3139
    %v3288 = vpack.c.b16 %v3142, %v3140
    %v3289 = vpack.c.b16 %v3145, %v3143
    %v3290 = vpack.c.b16 %v3146, %v3144
    %v3291 = vpack.c.b16 %v3149, %v3147
    %v3292 = vpack.c.b16 %v3150, %v3148
    %v3293 = vpack.c.b16 %v3153, %v3151
    %v3294 = vpack.c.b16 %v3154, %v3152
    %v3295 = vpack.c.b16 %v3157, %v3155
    %v3296 = vpack.c.b16 %v3158, %v3156
    %v3297 = vpack.c.b16 %v3161, %v3159
    %v3298 = vpack.c.b16 %v3162, %v3160
    %v3299 = vpack.c.b16 %v3165, %v3163
    %v3300 = vpack.c.b16 %v3166, %v3164
    %v3301 = vpack.c.b16 %v3169, %v3167
    %v3302 = vpack.c.b16 %v3170, %v3168
    %v3303 = vpack.c.b16 %v3173, %v3171
    %v3304 = vpack.c.b16 %v3174, %v3172
    %v3305 = vpack.c.b16 %v3177, %v3175
    %v3306 = vpack.c.b16 %v3178, %v3176
    %v3307 = vpack.c.b16 %v3181, %v3179
    %v3308 = vpack.c.b16 %v3182, %v3180
    %v3309 = vpack.c.b16 %v3185, %v3183
    %v3310 = vpack.c.b16 %v3186, %v3184
    %v3311 = vpack.c.b16 %v3189, %v3187
    %v3312 = vpack.c.b16 %v3190, %v3188
    %v3313 = vpack.c.b16 %v3193, %v3191
    %v3314 = vpack.c.b16 %v3194, %v3192
    %v3315 = vpack.c.b16 %v3197, %v3195
    %v3316 = vpack.c.b16 %v3198, %v3196
    %v3317 = vpack.c.b16 %v3201, %v3199
    %v3318 = vpack.c.b16 %v3202, %v3200
    %v3319 = vpack.c.b16 %v3205, %v3203
    %v3320 = vpack.c.b16 %v3206, %v3204
    %v3321 = vpack.c.b16 %v3209, %v3207
    %v3322 = vpack.c.b16 %v3210, %v3208
    %v3323 = vpack.c.b16 %v3213, %v3211
    %v3324 = vpack.c.b16 %v3214, %v3212
    %v3325 = vpack.c.b16 %v3217, %v3215
    %v3326 = vpack.c.b16 %v3218, %v3216
    %v3327 = vpack.c.b16 %v3221, %v3219
    %v3328 = vpack.c.b16 %v3222, %v3220
    %v3329 = vpack.c.b16 %v3225, %v3223
    %v3330 = vpack.c.b16 %v3226, %v3224
    %v3331 = vpack.c.b16 %v3229, %v3227
    %v3332 = vpack.c.b16 %v3230, %v3228
    %v3333 = vpack.c.b16 %v3233, %v3231
    %v3334 = vpack.c.b16 %v3234, %v3232
    %v3335 = vpack.c.b16 %v3237, %v3235
    %v3336 = vpack.c.b16 %v3238, %v3236
    %v3337 = vpack.c.b16 %v3241, %v3239
    %v3338 = vpack.c.b16 %v3242, %v3240
    %3435 = vmatprep.subr.bf16.mxu0 %v3244
    %3436 = vmatpush1.bf16.msra.mxu0 %v3243
    %3437 = vmatprep.subr.bf16.mxu0 %v3246
    %3438 = vmatpush1.bf16.msra.mxu0 %v3245
    %3439 = vmatprep.subr.bf16.mxu0 %v3248
    %3440 = vmatpush1.bf16.msra.mxu0 %v3247
    %3441 = vmatprep.subr.bf16.mxu0 %v3250
    %3442 = vmatpush1.bf16.msra.mxu0 %v3249
    %3443 = vmatprep.subr.bf16.mxu0 %v3252
    %3444 = vmatpush1.bf16.msra.mxu0 %v3251
    %3445 = vmatprep.subr.bf16.mxu0 %v3254
    %3446 = vmatpush1.bf16.msra.mxu0 %v3253
    %3447 = vmatprep.subr.bf16.mxu0 %v3256
    %3448 = vmatpush1.bf16.msra.mxu0 %v3255
    %3449 = vmatprep.subr.bf16.mxu0 %v3258
    %3450 = vmatpush1.bf16.msra.mxu0 %v3257
    %3451 = vmatprep.subr.bf16.mxu0 %v3260
    %3452 = vmatpush1.bf16.msra.mxu0 %v3259
    %3453 = vmatprep.subr.bf16.mxu0 %v3262
    %3454 = vmatpush1.bf16.msra.mxu0 %v3261
    %3455 = vmatprep.subr.bf16.mxu0 %v3264
    %3456 = vmatpush1.bf16.msra.mxu0 %v3263
    %3457 = vmatprep.subr.bf16.mxu0 %v3266
    %3458 = vmatpush1.bf16.msra.mxu0 %v3265
    %3459 = vmatprep.subr.bf16.mxu0 %v3268
    %3460 = vmatpush1.bf16.msra.mxu0 %v3267
    %3461 = vmatprep.subr.bf16.mxu0 %v3270
    %3462 = vmatpush1.bf16.msra.mxu0 %v3269
    %3463 = vmatprep.subr.bf16.mxu0 %v3272
    %3464 = vmatpush1.bf16.msra.mxu0 %v3271
    %3465 = vmatprep.subr.bf16.mxu0 %v3274
    %3466 = vmatpush1.bf16.msra.mxu0 %v3273
    %3467 = vmatprep.mubr.bf16.mxu0 %v2842
    %3468 = vmatmul.mubr.bf16.gmra.mrb[0].mxu0 %v2841
    %v3469 = vpop.f32.mrb[0].mxu0
    %v3470 = vadd.f32 %v2948, %v3469
    %v3471 = vpop.f32.mrb[0].mxu0
    %v3472 = vadd.f32 %v2952, %v3471
    %v3473 = vpop.f32.mrb[0].mxu0
    %v3474 = vadd.f32 %v2948, %v3473
    %v3475 = vpop.f32.mrb[0].mxu0
    %v3476 = vadd.f32 %v2952, %v3475
    %3477 = vdwg.mxu0
    %3478 = vmatprep.subr.bf16.mxu0 %v3276
    %3479 = vmatpush1.bf16.msra.mxu0 %v3275
    %3480 = vmatprep.subr.bf16.mxu0 %v3278
    %3481 = vmatpush1.bf16.msra.mxu0 %v3277
    %3482 = vmatprep.subr.bf16.mxu0 %v3280
    %3483 = vmatpush1.bf16.msra.mxu0 %v3279
    %3484 = vmatprep.subr.bf16.mxu0 %v3282
    %3485 = vmatpush1.bf16.msra.mxu0 %v3281
    %3486 = vmatprep.subr.bf16.mxu0 %v3284
    %3487 = vmatpush1.bf16.msra.mxu0 %v3283
    %3488 = vmatprep.subr.bf16.mxu0 %v3286
    %3489 = vmatpush1.bf16.msra.mxu0 %v3285
    %3490 = vmatprep.subr.bf16.mxu0 %v3288
    %3491 = vmatpush1.bf16.msra.mxu0 %v3287
    %3492 = vmatprep.subr.bf16.mxu0 %v3290
    %3493 = vmatpush1.bf16.msra.mxu0 %v3289
    %3494 = vmatprep.subr.bf16.mxu0 %v3292
    %3495 = vmatpush1.bf16.msra.mxu0 %v3291
    %3496 = vmatprep.subr.bf16.mxu0 %v3294
    %3497 = vmatpush1.bf16.msra.mxu0 %v3293
    %3498 = vmatprep.subr.bf16.mxu0 %v3296
    %3499 = vmatpush1.bf16.msra.mxu0 %v3295
    %3500 = vmatprep.subr.bf16.mxu0 %v3298
    %3501 = vmatpush1.bf16.msra.mxu0 %v3297
    %3502 = vmatprep.subr.bf16.mxu0 %v3300
    %3503 = vmatpush1.bf16.msra.mxu0 %v3299
    %3504 = vmatprep.subr.bf16.mxu0 %v3302
    %3505 = vmatpush1.bf16.msra.mxu0 %v3301
    %3506 = vmatprep.subr.bf16.mxu0 %v3304
    %3507 = vmatpush1.bf16.msra.mxu0 %v3303
    %3508 = vmatprep.subr.bf16.mxu0 %v3306
    %3509 = vmatpush1.bf16.msra.mxu0 %v3305
    %3510 = vmatprep.mubr.bf16.mxu0 %v2844
    %3511 = vmatmul.mubr.bf16.gmra.mrb[0].mxu0 %v2843
    %v3512 = vpop.f32.mrb[0].mxu0
    %v3513 = vadd.f32 %v3470, %v3512
    %v3514 = vpop.f32.mrb[0].mxu0
    %v3515 = vadd.f32 %v3472, %v3514
    %v3516 = vpop.f32.mrb[0].mxu0
    %v3517 = vadd.f32 %v3474, %v3516
    %v3518 = vpop.f32.mrb[0].mxu0
    %v3519 = vadd.f32 %v3476, %v3518
    %3520 = vdwg.mxu0
    %3521 = vmatprep.subr.bf16.mxu0 %v3308
    %3522 = vmatpush1.bf16.msra.mxu0 %v3307
    %3523 = vmatprep.subr.bf16.mxu0 %v3310
    %3524 = vmatpush1.bf16.msra.mxu0 %v3309
    %3525 = vmatprep.subr.bf16.mxu0 %v3312
    %3526 = vmatpush1.bf16.msra.mxu0 %v3311
    %3527 = vmatprep.subr.bf16.mxu0 %v3314
    %3528 = vmatpush1.bf16.msra.mxu0 %v3313
    %3529 = vmatprep.subr.bf16.mxu0 %v3316
    %3530 = vmatpush1.bf16.msra.mxu0 %v3315
    %3531 = vmatprep.subr.bf16.mxu0 %v3318
    %3532 = vmatpush1.bf16.msra.mxu0 %v3317
    %3533 = vmatprep.subr.bf16.mxu0 %v3320
    %3534 = vmatpush1.bf16.msra.mxu0 %v3319
    %3535 = vmatprep.subr.bf16.mxu0 %v3322
    %3536 = vmatpush1.bf16.msra.mxu0 %v3321
    %3537 = vmatprep.subr.bf16.mxu0 %v3324
    %3538 = vmatpush1.bf16.msra.mxu0 %v3323
    %3539 = vmatprep.subr.bf16.mxu0 %v3326
    %3540 = vmatpush1.bf16.msra.mxu0 %v3325
    %3541 = vmatprep.subr.bf16.mxu0 %v3328
    %3542 = vmatpush1.bf16.msra.mxu0 %v3327
    %3543 = vmatprep.subr.bf16.mxu0 %v3330
    %3544 = vmatpush1.bf16.msra.mxu0 %v3329
    %3545 = vmatprep.subr.bf16.mxu0 %v3332
    %3546 = vmatpush1.bf16.msra.mxu0 %v3331
    %3547 = vmatprep.subr.bf16.mxu0 %v3334
    %3548 = vmatpush1.bf16.msra.mxu0 %v3333
    %3549 = vmatprep.subr.bf16.mxu0 %v3336
    %3550 = vmatpush1.bf16.msra.mxu0 %v3335
    %3551 = vmatprep.subr.bf16.mxu0 %v3338
    %3552 = vmatpush1.bf16.msra.mxu0 %v3337
    %3553 = vmatprep.mubr.bf16.mxu0 %v2846
    %3554 = vmatmul.mubr.bf16.gmra.mrb[0].mxu0 %v2845
    %v3555 = vpop.f32.mrb[0].mxu0
    %v3556 = vadd.f32 %v3513, %v3555
    %v3557 = vpop.f32.mrb[0].mxu0
    %v3558 = vadd.f32 %v3515, %v3557
    %v3559 = vpop.f32.mrb[0].mxu0
    %v3560 = vadd.f32 %v3517, %v3559
    %v3561 = vpop.f32.mrb[0].mxu0
    %v3562 = vadd.f32 %v3519, %v3561
    %3563 = vdwg.mxu0
    %v3564 = vmax.f32 %v3558, -4.0
    %v3565 = vmax.f32 %v3562, -4.0
    %v3566 = vmin.f32 %v3564, 15.0
    %v3567 = vmin.f32 %v3565, 15.0
    %v3568 = vmul.f32 %v3566, 1.442695
    %v3569 = vpow.pop %v3568
    %v3570 = vmul.f32 %v3567, 1.442695
    %v3571 = vpow.pop %v3570
    %v3572 = vmul.f32 %v3569, %v211
    %v3573 = vmul.f32 %v3571, %v213
    %v3574 = vadd.f32 %v3556, %v3572
    %v3575 = vadd.f32 %v3560, %v3573
    %v3576 = vpack.c.bf16 %v3575, %v3574
    %v3577 = vld [vmem:[#allocation14] sm:$0xff]
    %v3578 = vld [vmem:[#allocation14 + $0x8] sm:$0xff]
    %v3579 = vld [vmem:[#allocation14 + $0x10] sm:$0xff]
    %v3580 = vld [vmem:[#allocation14 + $0x18] sm:$0xff]
    %v3581 = vld [vmem:[#allocation14 + $0x20] sm:$0xff]
    %v3582 = vld [vmem:[#allocation14 + $0x28] sm:$0xff]
    %v3583 = vld [vmem:[#allocation14 + $0x30] sm:$0xff]
    %v3584 = vld [vmem:[#allocation14 + $0x38] sm:$0xff]
    %v3585 = vld [vmem:[#allocation14 + $0x40] sm:$0xff]
    %v3586 = vld [vmem:[#allocation14 + $0x48] sm:$0xff]
    %v3587 = vld [vmem:[#allocation14 + $0x50] sm:$0xff]
    %v3588 = vld [vmem:[#allocation14 + $0x58] sm:$0xff]
    %v3589 = vld [vmem:[#allocation14 + $0x60] sm:$0xff]
    %v3590 = vld [vmem:[#allocation14 + $0x68] sm:$0xff]
    %v3591 = vld [vmem:[#allocation14 + $0x70] sm:$0xff]
    %v3592 = vld [vmem:[#allocation14 + $0x78] sm:$0xff]
    %v3593 = vld [vmem:[#allocation14 + $0x80] sm:$0xff]
    %v3594 = vld [vmem:[#allocation14 + $0x88] sm:$0xff]
    %v3595 = vld [vmem:[#allocation14 + $0x90] sm:$0xff]
    %v3596 = vld [vmem:[#allocation14 + $0x98] sm:$0xff]
    %v3597 = vld [vmem:[#allocation14 + $0xa0] sm:$0xff]
    %v3598 = vld [vmem:[#allocation14 + $0xa8] sm:$0xff]
    %v3599 = vld [vmem:[#allocation14 + $0xb0] sm:$0xff]
    %v3600 = vld [vmem:[#allocation14 + $0xb8] sm:$0xff]
    %v3601 = vld [vmem:[#allocation14 + $0xc0] sm:$0xff]
    %v3602 = vld [vmem:[#allocation14 + $0xc8] sm:$0xff]
    %v3603 = vld [vmem:[#allocation14 + $0xd0] sm:$0xff]
    %v3604 = vld [vmem:[#allocation14 + $0xd8] sm:$0xff]
    %v3605 = vld [vmem:[#allocation14 + $0xe0] sm:$0xff]
    %v3606 = vld [vmem:[#allocation14 + $0xe8] sm:$0xff]
    %v3607 = vld [vmem:[#allocation14 + $0xf0] sm:$0xff]
    %v3608 = vld [vmem:[#allocation14 + $0xf8] sm:$0xff]
    %v3609 = vld [vmem:[#allocation14 + $0x100] sm:$0xff]
    %v3610 = vld [vmem:[#allocation14 + $0x108] sm:$0xff]
    %v3611 = vld [vmem:[#allocation14 + $0x110] sm:$0xff]
    %v3612 = vld [vmem:[#allocation14 + $0x118] sm:$0xff]
    %v3613 = vld [vmem:[#allocation14 + $0x120] sm:$0xff]
    %v3614 = vld [vmem:[#allocation14 + $0x128] sm:$0xff]
    %v3615 = vld [vmem:[#allocation14 + $0x130] sm:$0xff]
    %v3616 = vld [vmem:[#allocation14 + $0x138] sm:$0xff]
    %v3617 = vld [vmem:[#allocation14 + $0x140] sm:$0xff]
    %v3618 = vld [vmem:[#allocation14 + $0x148] sm:$0xff]
    %v3619 = vld [vmem:[#allocation14 + $0x150] sm:$0xff]
    %v3620 = vld [vmem:[#allocation14 + $0x158] sm:$0xff]
    %v3621 = vld [vmem:[#allocation14 + $0x160] sm:$0xff]
    %v3622 = vld [vmem:[#allocation14 + $0x168] sm:$0xff]
    %v3623 = vld [vmem:[#allocation14 + $0x170] sm:$0xff]
    %v3624 = vld [vmem:[#allocation14 + $0x178] sm:$0xff]
    %v3625 = vld [vmem:[#allocation14 + $0x180] sm:$0xff]
    %v3626 = vld [vmem:[#allocation14 + $0x188] sm:$0xff]
    %v3627 = vld [vmem:[#allocation14 + $0x190] sm:$0xff]
    %v3628 = vld [vmem:[#allocation14 + $0x198] sm:$0xff]
    %v3629 = vld [vmem:[#allocation14 + $0x1a0] sm:$0xff]
    %v3630 = vld [vmem:[#allocation14 + $0x1a8] sm:$0xff]
    %v3631 = vld [vmem:[#allocation14 + $0x1b0] sm:$0xff]
    %v3632 = vld [vmem:[#allocation14 + $0x1b8] sm:$0xff]
    %v3633 = vld [vmem:[#allocation14 + $0x1c0] sm:$0xff]
    %v3634 = vld [vmem:[#allocation14 + $0x1c8] sm:$0xff]
    %v3635 = vld [vmem:[#allocation14 + $0x1d0] sm:$0xff]
    %v3636 = vld [vmem:[#allocation14 + $0x1d8] sm:$0xff]
    %v3637 = vld [vmem:[#allocation14 + $0x1e0] sm:$0xff]
    %v3638 = vld [vmem:[#allocation14 + $0x1e8] sm:$0xff]
    %v3639 = vld [vmem:[#allocation14 + $0x1f0] sm:$0xff]
    %v3640 = vld [vmem:[#allocation14 + $0x1f8] sm:$0xff]
    %v3641 = vld [vmem:[#allocation14 + $0x200] sm:$0xff]
    %v3642 = vld [vmem:[#allocation14 + $0x208] sm:$0xff]
    %v3643 = vld [vmem:[#allocation14 + $0x210] sm:$0xff]
    %v3644 = vld [vmem:[#allocation14 + $0x218] sm:$0xff]
    %v3645 = vld [vmem:[#allocation14 + $0x220] sm:$0xff]
    %v3646 = vld [vmem:[#allocation14 + $0x228] sm:$0xff]
    %v3647 = vld [vmem:[#allocation14 + $0x230] sm:$0xff]
    %v3648 = vld [vmem:[#allocation14 + $0x238] sm:$0xff]
    %v3649 = vld [vmem:[#allocation14 + $0x240] sm:$0xff]
    %v3650 = vld [vmem:[#allocation14 + $0x248] sm:$0xff]
    %v3651 = vld [vmem:[#allocation14 + $0x250] sm:$0xff]
    %v3652 = vld [vmem:[#allocation14 + $0x258] sm:$0xff]
    %v3653 = vld [vmem:[#allocation14 + $0x260] sm:$0xff]
    %v3654 = vld [vmem:[#allocation14 + $0x268] sm:$0xff]
    %v3655 = vld [vmem:[#allocation14 + $0x270] sm:$0xff]
    %v3656 = vld [vmem:[#allocation14 + $0x278] sm:$0xff]
    %v3657 = vld [vmem:[#allocation14 + $0x280] sm:$0xff]
    %v3658 = vld [vmem:[#allocation14 + $0x288] sm:$0xff]
    %v3659 = vld [vmem:[#allocation14 + $0x290] sm:$0xff]
    %v3660 = vld [vmem:[#allocation14 + $0x298] sm:$0xff]
    %v3661 = vld [vmem:[#allocation14 + $0x2a0] sm:$0xff]
    %v3662 = vld [vmem:[#allocation14 + $0x2a8] sm:$0xff]
    %v3663 = vld [vmem:[#allocation14 + $0x2b0] sm:$0xff]
    %v3664 = vld [vmem:[#allocation14 + $0x2b8] sm:$0xff]
    %v3665 = vld [vmem:[#allocation14 + $0x2c0] sm:$0xff]
    %v3666 = vld [vmem:[#allocation14 + $0x2c8] sm:$0xff]
    %v3667 = vld [vmem:[#allocation14 + $0x2d0] sm:$0xff]
    %v3668 = vld [vmem:[#allocation14 + $0x2d8] sm:$0xff]
    %v3669 = vld [vmem:[#allocation14 + $0x2e0] sm:$0xff]
    %v3670 = vld [vmem:[#allocation14 + $0x2e8] sm:$0xff]
    %v3671 = vld [vmem:[#allocation14 + $0x2f0] sm:$0xff]
    %v3672 = vld [vmem:[#allocation14 + $0x2f8] sm:$0xff]
    %v3673 = vld [vmem:[#allocation16] sm:$0x3f]
    %v3675 = vlaneseq
    %v3676 = vshrl.u32 %v3675, 7
    %v3677 = vsub.s32 0, %v3676
    %v3678 = vrot.slane %v3673, %v3677
    %v3679 = vlaneseq
    %v3680 = vshrl.u32 %v3679, 7
    %v3681 = vsub.s32 1, %v3680
    %v3682 = vrot.slane %v3673, %v3681
    %v3683 = vlaneseq
    %v3684 = vshrl.u32 %v3683, 7
    %v3685 = vsub.s32 2, %v3684
    %v3686 = vrot.slane %v3673, %v3685
    %v3687 = vlaneseq
    %v3688 = vshrl.u32 %v3687, 7
    %v3689 = vsub.s32 3, %v3688
    %v3690 = vrot.slane %v3673, %v3689
    %v3691 = vlaneseq
    %v3692 = vshrl.u32 %v3691, 7
    %v3693 = vsub.s32 4, %v3692
    %v3694 = vrot.slane %v3673, %v3693
    %v3695 = vlaneseq
    %v3696 = vshrl.u32 %v3695, 7
    %v3697 = vsub.s32 5, %v3696
    %v3698 = vrot.slane %v3673, %v3697
    %v3801 = vunpack.c.l.b16 %v3577
    %v3802 = vunpack.c.h.b16 %v3577
    %v3803 = vunpack.c.l.b16 %v3578
    %v3804 = vunpack.c.h.b16 %v3578
    %v3805 = vunpack.c.l.b16 %v3579
    %v3806 = vunpack.c.h.b16 %v3579
    %v3807 = vunpack.c.l.b16 %v3580
    %v3808 = vunpack.c.h.b16 %v3580
    %v3809 = vunpack.c.l.b16 %v3581
    %v3810 = vunpack.c.h.b16 %v3581
    %v3811 = vunpack.c.l.b16 %v3582
    %v3812 = vunpack.c.h.b16 %v3582
    %v3813 = vunpack.c.l.b16 %v3583
    %v3814 = vunpack.c.h.b16 %v3583
    %v3815 = vunpack.c.l.b16 %v3584
    %v3816 = vunpack.c.h.b16 %v3584
    %v3817 = vunpack.c.l.b16 %v3585
    %v3818 = vunpack.c.h.b16 %v3585
    %v3819 = vunpack.c.l.b16 %v3586
    %v3820 = vunpack.c.h.b16 %v3586
    %v3821 = vunpack.c.l.b16 %v3587
    %v3822 = vunpack.c.h.b16 %v3587
    %v3823 = vunpack.c.l.b16 %v3588
    %v3824 = vunpack.c.h.b16 %v3588
    %v3825 = vunpack.c.l.b16 %v3589
    %v3826 = vunpack.c.h.b16 %v3589
    %v3827 = vunpack.c.l.b16 %v3590
    %v3828 = vunpack.c.h.b16 %v3590
    %v3829 = vunpack.c.l.b16 %v3591
    %v3830 = vunpack.c.h.b16 %v3591
    %v3831 = vunpack.c.l.b16 %v3592
    %v3832 = vunpack.c.h.b16 %v3592
    %v3833 = vunpack.c.l.b16 %v3593
    %v3834 = vunpack.c.h.b16 %v3593
    %v3835 = vunpack.c.l.b16 %v3594
    %v3836 = vunpack.c.h.b16 %v3594
    %v3837 = vunpack.c.l.b16 %v3595
    %v3838 = vunpack.c.h.b16 %v3595
    %v3839 = vunpack.c.l.b16 %v3596
    %v3840 = vunpack.c.h.b16 %v3596
    %v3841 = vunpack.c.l.b16 %v3597
    %v3842 = vunpack.c.h.b16 %v3597
    %v3843 = vunpack.c.l.b16 %v3598
    %v3844 = vunpack.c.h.b16 %v3598
    %v3845 = vunpack.c.l.b16 %v3599
    %v3846 = vunpack.c.h.b16 %v3599
    %v3847 = vunpack.c.l.b16 %v3600
    %v3848 = vunpack.c.h.b16 %v3600
    %v3849 = vunpack.c.l.b16 %v3601
    %v3850 = vunpack.c.h.b16 %v3601
    %v3851 = vunpack.c.l.b16 %v3602
    %v3852 = vunpack.c.h.b16 %v3602
    %v3853 = vunpack.c.l.b16 %v3603
    %v3854 = vunpack.c.h.b16 %v3603
    %v3855 = vunpack.c.l.b16 %v3604
    %v3856 = vunpack.c.h.b16 %v3604
    %v3857 = vunpack.c.l.b16 %v3605
    %v3858 = vunpack.c.h.b16 %v3605
    %v3859 = vunpack.c.l.b16 %v3606
    %v3860 = vunpack.c.h.b16 %v3606
    %v3861 = vunpack.c.l.b16 %v3607
    %v3862 = vunpack.c.h.b16 %v3607
    %v3863 = vunpack.c.l.b16 %v3608
    %v3864 = vunpack.c.h.b16 %v3608
    %v3865 = vunpack.c.l.b16 %v3609
    %v3866 = vunpack.c.h.b16 %v3609
    %v3867 = vunpack.c.l.b16 %v3610
    %v3868 = vunpack.c.h.b16 %v3610
    %v3869 = vunpack.c.l.b16 %v3611
    %v3870 = vunpack.c.h.b16 %v3611
    %v3871 = vunpack.c.l.b16 %v3612
    %v3872 = vunpack.c.h.b16 %v3612
    %v3873 = vunpack.c.l.b16 %v3613
    %v3874 = vunpack.c.h.b16 %v3613
    %v3875 = vunpack.c.l.b16 %v3614
    %v3876 = vunpack.c.h.b16 %v3614
    %v3877 = vunpack.c.l.b16 %v3615
    %v3878 = vunpack.c.h.b16 %v3615
    %v3879 = vunpack.c.l.b16 %v3616
    %v3880 = vunpack.c.h.b16 %v3616
    %v3881 = vunpack.c.l.b16 %v3617
    %v3882 = vunpack.c.h.b16 %v3617
    %v3883 = vunpack.c.l.b16 %v3618
    %v3884 = vunpack.c.h.b16 %v3618
    %v3885 = vunpack.c.l.b16 %v3619
    %v3886 = vunpack.c.h.b16 %v3619
    %v3887 = vunpack.c.l.b16 %v3620
    %v3888 = vunpack.c.h.b16 %v3620
    %v3889 = vunpack.c.l.b16 %v3621
    %v3890 = vunpack.c.h.b16 %v3621
    %v3891 = vunpack.c.l.b16 %v3622
    %v3892 = vunpack.c.h.b16 %v3622
    %v3893 = vunpack.c.l.b16 %v3623
    %v3894 = vunpack.c.h.b16 %v3623
    %v3895 = vunpack.c.l.b16 %v3624
    %v3896 = vunpack.c.h.b16 %v3624
    %v3897 = vunpack.c.l.b16 %v3625
    %v3898 = vunpack.c.h.b16 %v3625
    %v3899 = vunpack.c.l.b16 %v3626
    %v3900 = vunpack.c.h.b16 %v3626
    %v3901 = vunpack.c.l.b16 %v3627
    %v3902 = vunpack.c.h.b16 %v3627
    %v3903 = vunpack.c.l.b16 %v3628
    %v3904 = vunpack.c.h.b16 %v3628
    %v3905 = vunpack.c.l.b16 %v3629
    %v3906 = vunpack.c.h.b16 %v3629
    %v3907 = vunpack.c.l.b16 %v3630
    %v3908 = vunpack.c.h.b16 %v3630
    %v3909 = vunpack.c.l.b16 %v3631
    %v3910 = vunpack.c.h.b16 %v3631
    %v3911 = vunpack.c.l.b16 %v3632
    %v3912 = vunpack.c.h.b16 %v3632
    %v3913 = vunpack.c.l.b16 %v3633
    %v3914 = vunpack.c.h.b16 %v3633
    %v3915 = vunpack.c.l.b16 %v3634
    %v3916 = vunpack.c.h.b16 %v3634
    %v3917 = vunpack.c.l.b16 %v3635
    %v3918 = vunpack.c.h.b16 %v3635
    %v3919 = vunpack.c.l.b16 %v3636
    %v3920 = vunpack.c.h.b16 %v3636
    %v3921 = vunpack.c.l.b16 %v3637
    %v3922 = vunpack.c.h.b16 %v3637
    %v3923 = vunpack.c.l.b16 %v3638
    %v3924 = vunpack.c.h.b16 %v3638
    %v3925 = vunpack.c.l.b16 %v3639
    %v3926 = vunpack.c.h.b16 %v3639
    %v3927 = vunpack.c.l.b16 %v3640
    %v3928 = vunpack.c.h.b16 %v3640
    %v3929 = vunpack.c.l.b16 %v3641
    %v3930 = vunpack.c.h.b16 %v3641
    %v3931 = vunpack.c.l.b16 %v3642
    %v3932 = vunpack.c.h.b16 %v3642
    %v3933 = vunpack.c.l.b16 %v3643
    %v3934 = vunpack.c.h.b16 %v3643
    %v3935 = vunpack.c.l.b16 %v3644
    %v3936 = vunpack.c.h.b16 %v3644
    %v3937 = vunpack.c.l.b16 %v3645
    %v3938 = vunpack.c.h.b16 %v3645
    %v3939 = vunpack.c.l.b16 %v3646
    %v3940 = vunpack.c.h.b16 %v3646
    %v3941 = vunpack.c.l.b16 %v3647
    %v3942 = vunpack.c.h.b16 %v3647
    %v3943 = vunpack.c.l.b16 %v3648
    %v3944 = vunpack.c.h.b16 %v3648
    %v3945 = vunpack.c.l.b16 %v3649
    %v3946 = vunpack.c.h.b16 %v3649
    %v3947 = vunpack.c.l.b16 %v3650
    %v3948 = vunpack.c.h.b16 %v3650
    %v3949 = vunpack.c.l.b16 %v3651
    %v3950 = vunpack.c.h.b16 %v3651
    %v3951 = vunpack.c.l.b16 %v3652
    %v3952 = vunpack.c.h.b16 %v3652
    %v3953 = vunpack.c.l.b16 %v3653
    %v3954 = vunpack.c.h.b16 %v3653
    %v3955 = vunpack.c.l.b16 %v3654
    %v3956 = vunpack.c.h.b16 %v3654
    %v3957 = vunpack.c.l.b16 %v3655
    %v3958 = vunpack.c.h.b16 %v3655
    %v3959 = vunpack.c.l.b16 %v3656
    %v3960 = vunpack.c.h.b16 %v3656
    %v3961 = vunpack.c.l.b16 %v3657
    %v3962 = vunpack.c.h.b16 %v3657
    %v3963 = vunpack.c.l.b16 %v3658
    %v3964 = vunpack.c.h.b16 %v3658
    %v3965 = vunpack.c.l.b16 %v3659
    %v3966 = vunpack.c.h.b16 %v3659
    %v3967 = vunpack.c.l.b16 %v3660
    %v3968 = vunpack.c.h.b16 %v3660
    %v3969 = vunpack.c.l.b16 %v3661
    %v3970 = vunpack.c.h.b16 %v3661
    %v3971 = vunpack.c.l.b16 %v3662
    %v3972 = vunpack.c.h.b16 %v3662
    %v3973 = vunpack.c.l.b16 %v3663
    %v3974 = vunpack.c.h.b16 %v3663
    %v3975 = vunpack.c.l.b16 %v3664
    %v3976 = vunpack.c.h.b16 %v3664
    %v3977 = vunpack.c.l.b16 %v3665
    %v3978 = vunpack.c.h.b16 %v3665
    %v3979 = vunpack.c.l.b16 %v3666
    %v3980 = vunpack.c.h.b16 %v3666
    %v3981 = vunpack.c.l.b16 %v3667
    %v3982 = vunpack.c.h.b16 %v3667
    %v3983 = vunpack.c.l.b16 %v3668
    %v3984 = vunpack.c.h.b16 %v3668
    %v3985 = vunpack.c.l.b16 %v3669
    %v3986 = vunpack.c.h.b16 %v3669
    %v3987 = vunpack.c.l.b16 %v3670
    %v3988 = vunpack.c.h.b16 %v3670
    %v3989 = vunpack.c.l.b16 %v3671
    %v3990 = vunpack.c.h.b16 %v3671
    %v3991 = vunpack.c.l.b16 %v3672
    %v3992 = vunpack.c.h.b16 %v3672
    %v3993 = vpack.c.b16 %v3807, %v3801
    %v3994 = vpack.c.b16 %v3808, %v3802
    %v3995 = vpack.c.b16 %v3809, %v3803
    %v3996 = vpack.c.b16 %v3810, %v3804
    %v3997 = vpack.c.b16 %v3811, %v3805
    %v3998 = vpack.c.b16 %v3812, %v3806
    %v3999 = vpack.c.b16 %v3819, %v3813
    %v4000 = vpack.c.b16 %v3820, %v3814
    %v4001 = vpack.c.b16 %v3821, %v3815
    %v4002 = vpack.c.b16 %v3822, %v3816
    %v4003 = vpack.c.b16 %v3823, %v3817
    %v4004 = vpack.c.b16 %v3824, %v3818
    %v4005 = vpack.c.b16 %v3831, %v3825
    %v4006 = vpack.c.b16 %v3832, %v3826
    %v4007 = vpack.c.b16 %v3833, %v3827
    %v4008 = vpack.c.b16 %v3834, %v3828
    %v4009 = vpack.c.b16 %v3835, %v3829
    %v4010 = vpack.c.b16 %v3836, %v3830
    %v4011 = vpack.c.b16 %v3843, %v3837
    %v4012 = vpack.c.b16 %v3844, %v3838
    %v4013 = vpack.c.b16 %v3845, %v3839
    %v4014 = vpack.c.b16 %v3846, %v3840
    %v4015 = vpack.c.b16 %v3847, %v3841
    %v4016 = vpack.c.b16 %v3848, %v3842
    %v4017 = vpack.c.b16 %v3855, %v3849
    %v4018 = vpack.c.b16 %v3856, %v3850
    %v4019 = vpack.c.b16 %v3857, %v3851
    %v4020 = vpack.c.b16 %v3858, %v3852
    %v4021 = vpack.c.b16 %v3859, %v3853
    %v4022 = vpack.c.b16 %v3860, %v3854
    %v4023 = vpack.c.b16 %v3867, %v3861
    %v4024 = vpack.c.b16 %v3868, %v3862
    %v4025 = vpack.c.b16 %v3869, %v3863
    %v4026 = vpack.c.b16 %v3870, %v3864
    %v4027 = vpack.c.b16 %v3871, %v3865
    %v4028 = vpack.c.b16 %v3872, %v3866
    %v4029 = vpack.c.b16 %v3879, %v3873
    %v4030 = vpack.c.b16 %v3880, %v3874
    %v4031 = vpack.c.b16 %v3881, %v3875
    %v4032 = vpack.c.b16 %v3882, %v3876
    %v4033 = vpack.c.b16 %v3883, %v3877
    %v4034 = vpack.c.b16 %v3884, %v3878
    %v4035 = vpack.c.b16 %v3891, %v3885
    %v4036 = vpack.c.b16 %v3892, %v3886
    %v4037 = vpack.c.b16 %v3893, %v3887
    %v4038 = vpack.c.b16 %v3894, %v3888
    %v4039 = vpack.c.b16 %v3895, %v3889
    %v4040 = vpack.c.b16 %v3896, %v3890
    %v4041 = vpack.c.b16 %v3903, %v3897
    %v4042 = vpack.c.b16 %v3904, %v3898
    %v4043 = vpack.c.b16 %v3905, %v3899
    %v4044 = vpack.c.b16 %v3906, %v3900
    %v4045 = vpack.c.b16 %v3907, %v3901
    %v4046 = vpack.c.b16 %v3908, %v3902
    %v4047 = vpack.c.b16 %v3915, %v3909
    %v4048 = vpack.c.b16 %v3916, %v3910
    %v4049 = vpack.c.b16 %v3917, %v3911
    %v4050 = vpack.c.b16 %v3918, %v3912
    %v4051 = vpack.c.b16 %v3919, %v3913
    %v4052 = vpack.c.b16 %v3920, %v3914
    %v4053 = vpack.c.b16 %v3927, %v3921
    %v4054 = vpack.c.b16 %v3928, %v3922
    %v4055 = vpack.c.b16 %v3929, %v3923
    %v4056 = vpack.c.b16 %v3930, %v3924
    %v4057 = vpack.c.b16 %v3931, %v3925
    %v4058 = vpack.c.b16 %v3932, %v3926
    %v4059 = vpack.c.b16 %v3939, %v3933
    %v4060 = vpack.c.b16 %v3940, %v3934
    %v4061 = vpack.c.b16 %v3941, %v3935
    %v4062 = vpack.c.b16 %v3942, %v3936
    %v4063 = vpack.c.b16 %v3943, %v3937
    %v4064 = vpack.c.b16 %v3944, %v3938
    %v4065 = vpack.c.b16 %v3951, %v3945
    %v4066 = vpack.c.b16 %v3952, %v3946
    %v4067 = vpack.c.b16 %v3953, %v3947
    %v4068 = vpack.c.b16 %v3954, %v3948
    %v4069 = vpack.c.b16 %v3955, %v3949
    %v4070 = vpack.c.b16 %v3956, %v3950
    %v4071 = vpack.c.b16 %v3963, %v3957
    %v4072 = vpack.c.b16 %v3964, %v3958
    %v4073 = vpack.c.b16 %v3965, %v3959
    %v4074 = vpack.c.b16 %v3966, %v3960
    %v4075 = vpack.c.b16 %v3967, %v3961
    %v4076 = vpack.c.b16 %v3968, %v3962
    %v4077 = vpack.c.b16 %v3975, %v3969
    %v4078 = vpack.c.b16 %v3976, %v3970
    %v4079 = vpack.c.b16 %v3977, %v3971
    %v4080 = vpack.c.b16 %v3978, %v3972
    %v4081 = vpack.c.b16 %v3979, %v3973
    %v4082 = vpack.c.b16 %v3980, %v3974
    %v4083 = vpack.c.b16 %v3987, %v3981
    %v4084 = vpack.c.b16 %v3988, %v3982
    %v4085 = vpack.c.b16 %v3989, %v3983
    %v4086 = vpack.c.b16 %v3990, %v3984
    %v4087 = vpack.c.b16 %v3991, %v3985
    %v4088 = vpack.c.b16 %v3992, %v3986
    %4185 = vmatprep.subr.bf16.mxu0 %v3994
    %4186 = vmatpush1.bf16.msra.mxu0 %v3993
    %4187 = vmatprep.subr.bf16.mxu0 %v4000
    %4188 = vmatpush1.bf16.msra.mxu0 %v3999
    %4189 = vmatprep.subr.bf16.mxu0 %v4006
    %4190 = vmatpush1.bf16.msra.mxu0 %v4005
    %4191 = vmatprep.subr.bf16.mxu0 %v4012
    %4192 = vmatpush1.bf16.msra.mxu0 %v4011
    %4193 = vmatprep.subr.bf16.mxu0 %v4018
    %4194 = vmatpush1.bf16.msra.mxu0 %v4017
    %4195 = vmatprep.subr.bf16.mxu0 %v4024
    %4196 = vmatpush1.bf16.msra.mxu0 %v4023
    %4197 = vmatprep.subr.bf16.mxu0 %v4030
    %4198 = vmatpush1.bf16.msra.mxu0 %v4029
    %4199 = vmatprep.subr.bf16.mxu0 %v4036
    %4200 = vmatpush1.bf16.msra.mxu0 %v4035
    %4201 = vmatprep.subr.bf16.mxu0 %v4042
    %4202 = vmatpush1.bf16.msra.mxu0 %v4041
    %4203 = vmatprep.subr.bf16.mxu0 %v4048
    %4204 = vmatpush1.bf16.msra.mxu0 %v4047
    %4205 = vmatprep.subr.bf16.mxu0 %v4054
    %4206 = vmatpush1.bf16.msra.mxu0 %v4053
    %4207 = vmatprep.subr.bf16.mxu0 %v4060
    %4208 = vmatpush1.bf16.msra.mxu0 %v4059
    %4209 = vmatprep.subr.bf16.mxu0 %v4066
    %4210 = vmatpush1.bf16.msra.mxu0 %v4065
    %4211 = vmatprep.subr.bf16.mxu0 %v4072
    %4212 = vmatpush1.bf16.msra.mxu0 %v4071
    %4213 = vmatprep.subr.bf16.mxu0 %v4078
    %4214 = vmatpush1.bf16.msra.mxu0 %v4077
    %4215 = vmatprep.subr.bf16.mxu0 %v4084
    %4216 = vmatpush1.bf16.msra.mxu0 %v4083
    %4217 = vmatprep.mubr.bf16.mxu0 %v3576
    %4218 = vmatmul.mubr.bf16.gmra.mrb[0].mxu0 %v214
    %v4219 = vpop.f32.mrb[0].mxu0
    %v4220 = vadd.f32 %v3678, %v4219
    %v4221 = vpop.f32.mrb[0].mxu0
    %v4222 = vadd.f32 %v3682, %v4221
    %v4223 = vpop.f32.mrb[0].mxu0
    %v4224 = vadd.f32 %v3678, %v4223
    %v4225 = vpop.f32.mrb[0].mxu0
    %v4226 = vadd.f32 %v3682, %v4225
    %4227 = vdwg.mxu0
    %4228 = vmatprep.subr.bf16.mxu0 %v3996
    %4229 = vmatpush1.bf16.msra.mxu0 %v3995
    %4230 = vmatprep.subr.bf16.mxu0 %v4002
    %4231 = vmatpush1.bf16.msra.mxu0 %v4001
    %4232 = vmatprep.subr.bf16.mxu0 %v4008
    %4233 = vmatpush1.bf16.msra.mxu0 %v4007
    %4234 = vmatprep.subr.bf16.mxu0 %v4014
    %4235 = vmatpush1.bf16.msra.mxu0 %v4013
    %4236 = vmatprep.subr.bf16.mxu0 %v4020
    %4237 = vmatpush1.bf16.msra.mxu0 %v4019
    %4238 = vmatprep.subr.bf16.mxu0 %v4026
    %4239 = vmatpush1.bf16.msra.mxu0 %v4025
    %4240 = vmatprep.subr.bf16.mxu0 %v4032
    %4241 = vmatpush1.bf16.msra.mxu0 %v4031
    %4242 = vmatprep.subr.bf16.mxu0 %v4038
    %4243 = vmatpush1.bf16.msra.mxu0 %v4037
    %4244 = vmatprep.subr.bf16.mxu0 %v4044
    %4245 = vmatpush1.bf16.msra.mxu0 %v4043
    %4246 = vmatprep.subr.bf16.mxu0 %v4050
    %4247 = vmatpush1.bf16.msra.mxu0 %v4049
    %4248 = vmatprep.subr.bf16.mxu0 %v4056
    %4249 = vmatpush1.bf16.msra.mxu0 %v4055
    %4250 = vmatprep.subr.bf16.mxu0 %v4062
    %4251 = vmatpush1.bf16.msra.mxu0 %v4061
    %4252 = vmatprep.subr.bf16.mxu0 %v4068
    %4253 = vmatpush1.bf16.msra.mxu0 %v4067
    %4254 = vmatprep.subr.bf16.mxu0 %v4074
    %4255 = vmatpush1.bf16.msra.mxu0 %v4073
    %4256 = vmatprep.subr.bf16.mxu0 %v4080
    %4257 = vmatpush1.bf16.msra.mxu0 %v4079
    %4258 = vmatprep.subr.bf16.mxu0 %v4086
    %4259 = vmatpush1.bf16.msra.mxu0 %v4085
    %4260 = vmatprep.mubr.bf16.mxu0 %v3576
    %4261 = vmatmul.mubr.bf16.gmra.mrb[0].mxu0 %v214
    %v4262 = vpop.f32.mrb[0].mxu0
    %v4263 = vadd.f32 %v3686, %v4262
    %v4264 = vpop.f32.mrb[0].mxu0
    %v4265 = vadd.f32 %v3690, %v4264
    %v4266 = vpop.f32.mrb[0].mxu0
    %v4267 = vadd.f32 %v3686, %v4266
    %v4268 = vpop.f32.mrb[0].mxu0
    %v4269 = vadd.f32 %v3690, %v4268
    %4270 = vdwg.mxu0
    %4271 = vmatprep.subr.bf16.mxu0 %v3998
    %4272 = vmatpush1.bf16.msra.mxu0 %v3997
    %4273 = vmatprep.subr.bf16.mxu0 %v4004
    %4274 = vmatpush1.bf16.msra.mxu0 %v4003
    %4275 = vmatprep.subr.bf16.mxu0 %v4010
    %4276 = vmatpush1.bf16.msra.mxu0 %v4009
    %4277 = vmatprep.subr.bf16.mxu0 %v4016
    %4278 = vmatpush1.bf16.msra.mxu0 %v4015
    %4279 = vmatprep.subr.bf16.mxu0 %v4022
    %4280 = vmatpush1.bf16.msra.mxu0 %v4021
    %4281 = vmatprep.subr.bf16.mxu0 %v4028
    %4282 = vmatpush1.bf16.msra.mxu0 %v4027
    %4283 = vmatprep.subr.bf16.mxu0 %v4034
    %4284 = vmatpush1.bf16.msra.mxu0 %v4033
    %4285 = vmatprep.subr.bf16.mxu0 %v4040
    %4286 = vmatpush1.bf16.msra.mxu0 %v4039
    %4287 = vmatprep.subr.bf16.mxu0 %v4046
    %4288 = vmatpush1.bf16.msra.mxu0 %v4045
    %4289 = vmatprep.subr.bf16.mxu0 %v4052
    %4290 = vmatpush1.bf16.msra.mxu0 %v4051
    %4291 = vmatprep.subr.bf16.mxu0 %v4058
    %4292 = vmatpush1.bf16.msra.mxu0 %v4057
    %4293 = vmatprep.subr.bf16.mxu0 %v4064
    %4294 = vmatpush1.bf16.msra.mxu0 %v4063
    %4295 = vmatprep.subr.bf16.mxu0 %v4070
    %4296 = vmatpush1.bf16.msra.mxu0 %v4069
    %4297 = vmatprep.subr.bf16.mxu0 %v4076
    %4298 = vmatpush1.bf16.msra.mxu0 %v4075
    %4299 = vmatprep.subr.bf16.mxu0 %v4082
    %4300 = vmatpush1.bf16.msra.mxu0 %v4081
    %4301 = vmatprep.subr.bf16.mxu0 %v4088
    %4302 = vmatpush1.bf16.msra.mxu0 %v4087
    %4303 = vmatprep.mubr.bf16.mxu0 %v3576
    %4304 = vmatmul.mubr.bf16.gmra.mrb[0].mxu0 %v214
    %v4305 = vpop.f32.mrb[0].mxu0
    %v4306 = vadd.f32 %v3694, %v4305
    %v4307 = vpop.f32.mrb[0].mxu0
    %v4308 = vadd.f32 %v3698, %v4307
    %v4309 = vpop.f32.mrb[0].mxu0
    %v4310 = vadd.f32 %v3694, %v4309
    %v4311 = vpop.f32.mrb[0].mxu0
    %v4312 = vadd.f32 %v3698, %v4311
    %4313 = vdwg.mxu0
    %v4314 = vmax.f32 %v4220, 0.0
    %v4315 = vmax.f32 %v4222, 0.0
    %v4316 = vmax.f32 %v4263, 0.0
    %v4317 = vmax.f32 %v4265, 0.0
    %v4318 = vmax.f32 %v4306, 0.0
    %v4319 = vmax.f32 %v4308, 0.0
    %v4320 = vmax.f32 %v4224, 0.0
    %v4321 = vmax.f32 %v4226, 0.0
    %v4322 = vmax.f32 %v4267, 0.0
    %v4323 = vmax.f32 %v4269, 0.0
    %v4324 = vmax.f32 %v4310, 0.0
    %v4325 = vmax.f32 %v4312, 0.0
    %v4326 = vpack.c.bf16 %v4320, %v4314
    %v4327 = vpack.c.bf16 %v4321, %v4315
    %v4328 = vpack.c.bf16 %v4322, %v4316
    %v4329 = vpack.c.bf16 %v4323, %v4317
    %v4330 = vpack.c.bf16 %v4324, %v4318
    %v4331 = vpack.c.bf16 %v4325, %v4319
    %v4332 = vld [vmem:[#allocation17] sm:$0xff]
    %v4333 = vld [vmem:[#allocation17 + $0x8] sm:$0xff]
    %v4334 = vld [vmem:[#allocation17 + $0x10] sm:$0xff]
    %v4335 = vld [vmem:[#allocation17 + $0x18] sm:$0xff]
    %v4336 = vld [vmem:[#allocation17 + $0x20] sm:$0xff]
    %v4337 = vld [vmem:[#allocation17 + $0x28] sm:$0xff]
    %v4338 = vld [vmem:[#allocation17 + $0x30] sm:$0xff]
    %v4339 = vld [vmem:[#allocation17 + $0x38] sm:$0xff]
    %v4340 = vld [vmem:[#allocation17 + $0x40] sm:$0xff]
    %v4341 = vld [vmem:[#allocation17 + $0x48] sm:$0xff]
    %v4342 = vld [vmem:[#allocation17 + $0x50] sm:$0xff]
    %v4343 = vld [vmem:[#allocation17 + $0x58] sm:$0xff]
    %v4344 = vld [vmem:[#allocation17 + $0x60] sm:$0xff]
    %v4345 = vld [vmem:[#allocation17 + $0x68] sm:$0xff]
    %v4346 = vld [vmem:[#allocation17 + $0x70] sm:$0xff]
    %v4347 = vld [vmem:[#allocation17 + $0x78] sm:$0xff]
    %v4348 = vld [vmem:[#allocation17 + $0x80] sm:$0xff]
    %v4349 = vld [vmem:[#allocation17 + $0x88] sm:$0xff]
    %v4350 = vld [vmem:[#allocation17 + $0x90] sm:$0xff]
    %v4351 = vld [vmem:[#allocation17 + $0x98] sm:$0xff]
    %v4352 = vld [vmem:[#allocation17 + $0xa0] sm:$0xff]
    %v4353 = vld [vmem:[#allocation17 + $0xa8] sm:$0xff]
    %v4354 = vld [vmem:[#allocation17 + $0xb0] sm:$0xff]
    %v4355 = vld [vmem:[#allocation17 + $0xb8] sm:$0xff]
    %v4356 = vld [vmem:[#allocation17 + $0xc0] sm:$0xff]
    %v4357 = vld [vmem:[#allocation17 + $0xc8] sm:$0xff]
    %v4358 = vld [vmem:[#allocation17 + $0xd0] sm:$0xff]
    %v4359 = vld [vmem:[#allocation17 + $0xd8] sm:$0xff]
    %v4360 = vld [vmem:[#allocation17 + $0xe0] sm:$0xff]
    %v4361 = vld [vmem:[#allocation17 + $0xe8] sm:$0xff]
    %v4362 = vld [vmem:[#allocation17 + $0xf0] sm:$0xff]
    %v4363 = vld [vmem:[#allocation17 + $0xf8] sm:$0xff]
    %v4364 = vld [vmem:[#allocation17 + $0x100] sm:$0xff]
    %v4365 = vld [vmem:[#allocation17 + $0x108] sm:$0xff]
    %v4366 = vld [vmem:[#allocation17 + $0x110] sm:$0xff]
    %v4367 = vld [vmem:[#allocation17 + $0x118] sm:$0xff]
    %v4368 = vld [vmem:[#allocation17 + $0x120] sm:$0xff]
    %v4369 = vld [vmem:[#allocation17 + $0x128] sm:$0xff]
    %v4370 = vld [vmem:[#allocation17 + $0x130] sm:$0xff]
    %v4371 = vld [vmem:[#allocation17 + $0x138] sm:$0xff]
    %v4372 = vld [vmem:[#allocation17 + $0x140] sm:$0xff]
    %v4373 = vld [vmem:[#allocation17 + $0x148] sm:$0xff]
    %v4374 = vld [vmem:[#allocation17 + $0x150] sm:$0xff]
    %v4375 = vld [vmem:[#allocation17 + $0x158] sm:$0xff]
    %v4376 = vld [vmem:[#allocation17 + $0x160] sm:$0xff]
    %v4377 = vld [vmem:[#allocation17 + $0x168] sm:$0xff]
    %v4378 = vld [vmem:[#allocation17 + $0x170] sm:$0xff]
    %v4379 = vld [vmem:[#allocation17 + $0x178] sm:$0xff]
    %v4380 = vld [vmem:[#allocation17 + $0x180] sm:$0xff]
    %v4381 = vld [vmem:[#allocation17 + $0x188] sm:$0xff]
    %v4382 = vld [vmem:[#allocation17 + $0x190] sm:$0xff]
    %v4383 = vld [vmem:[#allocation17 + $0x198] sm:$0xff]
    %v4384 = vld [vmem:[#allocation17 + $0x1a0] sm:$0xff]
    %v4385 = vld [vmem:[#allocation17 + $0x1a8] sm:$0xff]
    %v4386 = vld [vmem:[#allocation17 + $0x1b0] sm:$0xff]
    %v4387 = vld [vmem:[#allocation17 + $0x1b8] sm:$0xff]
    %v4388 = vld [vmem:[#allocation17 + $0x1c0] sm:$0xff]
    %v4389 = vld [vmem:[#allocation17 + $0x1c8] sm:$0xff]
    %v4390 = vld [vmem:[#allocation17 + $0x1d0] sm:$0xff]
    %v4391 = vld [vmem:[#allocation17 + $0x1d8] sm:$0xff]
    %v4392 = vld [vmem:[#allocation17 + $0x1e0] sm:$0xff]
    %v4393 = vld [vmem:[#allocation17 + $0x1e8] sm:$0xff]
    %v4394 = vld [vmem:[#allocation17 + $0x1f0] sm:$0xff]
    %v4395 = vld [vmem:[#allocation17 + $0x1f8] sm:$0xff]
    %v4396 = vld [vmem:[#allocation17 + $0x200] sm:$0xff]
    %v4397 = vld [vmem:[#allocation17 + $0x208] sm:$0xff]
    %v4398 = vld [vmem:[#allocation17 + $0x210] sm:$0xff]
    %v4399 = vld [vmem:[#allocation17 + $0x218] sm:$0xff]
    %v4400 = vld [vmem:[#allocation17 + $0x220] sm:$0xff]
    %v4401 = vld [vmem:[#allocation17 + $0x228] sm:$0xff]
    %v4402 = vld [vmem:[#allocation17 + $0x230] sm:$0xff]
    %v4403 = vld [vmem:[#allocation17 + $0x238] sm:$0xff]
    %v4404 = vld [vmem:[#allocation17 + $0x240] sm:$0xff]
    %v4405 = vld [vmem:[#allocation17 + $0x248] sm:$0xff]
    %v4406 = vld [vmem:[#allocation17 + $0x250] sm:$0xff]
    %v4407 = vld [vmem:[#allocation17 + $0x258] sm:$0xff]
    %v4408 = vld [vmem:[#allocation17 + $0x260] sm:$0xff]
    %v4409 = vld [vmem:[#allocation17 + $0x268] sm:$0xff]
    %v4410 = vld [vmem:[#allocation17 + $0x270] sm:$0xff]
    %v4411 = vld [vmem:[#allocation17 + $0x278] sm:$0xff]
    %v4412 = vld [vmem:[#allocation17 + $0x280] sm:$0xff]
    %v4413 = vld [vmem:[#allocation17 + $0x288] sm:$0xff]
    %v4414 = vld [vmem:[#allocation17 + $0x290] sm:$0xff]
    %v4415 = vld [vmem:[#allocation17 + $0x298] sm:$0xff]
    %v4416 = vld [vmem:[#allocation17 + $0x2a0] sm:$0xff]
    %v4417 = vld [vmem:[#allocation17 + $0x2a8] sm:$0xff]
    %v4418 = vld [vmem:[#allocation17 + $0x2b0] sm:$0xff]
    %v4419 = vld [vmem:[#allocation17 + $0x2b8] sm:$0xff]
    %v4420 = vld [vmem:[#allocation17 + $0x2c0] sm:$0xff]
    %v4421 = vld [vmem:[#allocation17 + $0x2c8] sm:$0xff]
    %v4422 = vld [vmem:[#allocation17 + $0x2d0] sm:$0xff]
    %v4423 = vld [vmem:[#allocation17 + $0x2d8] sm:$0xff]
    %v4424 = vld [vmem:[#allocation17 + $0x2e0] sm:$0xff]
    %v4425 = vld [vmem:[#allocation17 + $0x2e8] sm:$0xff]
    %v4426 = vld [vmem:[#allocation17 + $0x2f0] sm:$0xff]
    %v4427 = vld [vmem:[#allocation17 + $0x2f8] sm:$0xff]
    %v4428 = vld [vmem:[#allocation17 + $0x300] sm:$0xff]
    %v4429 = vld [vmem:[#allocation17 + $0x308] sm:$0xff]
    %v4430 = vld [vmem:[#allocation17 + $0x310] sm:$0xff]
    %v4431 = vld [vmem:[#allocation17 + $0x318] sm:$0xff]
    %v4432 = vld [vmem:[#allocation17 + $0x320] sm:$0xff]
    %v4433 = vld [vmem:[#allocation17 + $0x328] sm:$0xff]
    %v4434 = vld [vmem:[#allocation17 + $0x330] sm:$0xff]
    %v4435 = vld [vmem:[#allocation17 + $0x338] sm:$0xff]
    %v4436 = vld [vmem:[#allocation17 + $0x340] sm:$0xff]
    %v4437 = vld [vmem:[#allocation17 + $0x348] sm:$0xff]
    %v4438 = vld [vmem:[#allocation17 + $0x350] sm:$0xff]
    %v4439 = vld [vmem:[#allocation17 + $0x358] sm:$0xff]
    %v4440 = vld [vmem:[#allocation17 + $0x360] sm:$0xff]
    %v4441 = vld [vmem:[#allocation17 + $0x368] sm:$0xff]
    %v4442 = vld [vmem:[#allocation17 + $0x370] sm:$0xff]
    %v4443 = vld [vmem:[#allocation17 + $0x378] sm:$0xff]
    %v4444 = vld [vmem:[#allocation17 + $0x380] sm:$0xff]
    %v4445 = vld [vmem:[#allocation17 + $0x388] sm:$0xff]
    %v4446 = vld [vmem:[#allocation17 + $0x390] sm:$0xff]
    %v4447 = vld [vmem:[#allocation17 + $0x398] sm:$0xff]
    %v4448 = vld [vmem:[#allocation17 + $0x3a0] sm:$0xff]
    %v4449 = vld [vmem:[#allocation17 + $0x3a8] sm:$0xff]
    %v4450 = vld [vmem:[#allocation17 + $0x3b0] sm:$0xff]
    %v4451 = vld [vmem:[#allocation17 + $0x3b8] sm:$0xff]
    %v4452 = vld [vmem:[#allocation17 + $0x3c0] sm:$0xff]
    %v4453 = vld [vmem:[#allocation17 + $0x3c8] sm:$0xff]
    %v4454 = vld [vmem:[#allocation17 + $0x3d0] sm:$0xff]
    %v4455 = vld [vmem:[#allocation17 + $0x3d8] sm:$0xff]
    %v4456 = vld [vmem:[#allocation17 + $0x3e0] sm:$0xff]
    %v4457 = vld [vmem:[#allocation17 + $0x3e8] sm:$0xff]
    %v4458 = vld [vmem:[#allocation17 + $0x3f0] sm:$0xff]
    %v4459 = vld [vmem:[#allocation17 + $0x3f8] sm:$0xff]
    %v4460 = vld [vmem:[#allocation17 + $0x400] sm:$0xff]
    %v4461 = vld [vmem:[#allocation17 + $0x408] sm:$0xff]
    %v4462 = vld [vmem:[#allocation17 + $0x410] sm:$0xff]
    %v4463 = vld [vmem:[#allocation17 + $0x418] sm:$0xff]
    %v4464 = vld [vmem:[#allocation17 + $0x420] sm:$0xff]
    %v4465 = vld [vmem:[#allocation17 + $0x428] sm:$0xff]
    %v4466 = vld [vmem:[#allocation17 + $0x430] sm:$0xff]
    %v4467 = vld [vmem:[#allocation17 + $0x438] sm:$0xff]
    %v4468 = vld [vmem:[#allocation17 + $0x440] sm:$0xff]
    %v4469 = vld [vmem:[#allocation17 + $0x448] sm:$0xff]
    %v4470 = vld [vmem:[#allocation17 + $0x450] sm:$0xff]
    %v4471 = vld [vmem:[#allocation17 + $0x458] sm:$0xff]
    %v4472 = vld [vmem:[#allocation17 + $0x460] sm:$0xff]
    %v4473 = vld [vmem:[#allocation17 + $0x468] sm:$0xff]
    %v4474 = vld [vmem:[#allocation17 + $0x470] sm:$0xff]
    %v4475 = vld [vmem:[#allocation17 + $0x478] sm:$0xff]
    %v4476 = vld [vmem:[#allocation17 + $0x480] sm:$0xff]
    %v4477 = vld [vmem:[#allocation17 + $0x488] sm:$0xff]
    %v4478 = vld [vmem:[#allocation17 + $0x490] sm:$0xff]
    %v4479 = vld [vmem:[#allocation17 + $0x498] sm:$0xff]
    %v4480 = vld [vmem:[#allocation17 + $0x4a0] sm:$0xff]
    %v4481 = vld [vmem:[#allocation17 + $0x4a8] sm:$0xff]
    %v4482 = vld [vmem:[#allocation17 + $0x4b0] sm:$0xff]
    %v4483 = vld [vmem:[#allocation17 + $0x4b8] sm:$0xff]
    %v4484 = vld [vmem:[#allocation17 + $0x4c0] sm:$0xff]
    %v4485 = vld [vmem:[#allocation17 + $0x4c8] sm:$0xff]
    %v4486 = vld [vmem:[#allocation17 + $0x4d0] sm:$0xff]
    %v4487 = vld [vmem:[#allocation17 + $0x4d8] sm:$0xff]
    %v4488 = vld [vmem:[#allocation17 + $0x4e0] sm:$0xff]
    %v4489 = vld [vmem:[#allocation17 + $0x4e8] sm:$0xff]
    %v4490 = vld [vmem:[#allocation17 + $0x4f0] sm:$0xff]
    %v4491 = vld [vmem:[#allocation17 + $0x4f8] sm:$0xff]
    %v4492 = vld [vmem:[#allocation17 + $0x500] sm:$0xff]
    %v4493 = vld [vmem:[#allocation17 + $0x508] sm:$0xff]
    %v4494 = vld [vmem:[#allocation17 + $0x510] sm:$0xff]
    %v4495 = vld [vmem:[#allocation17 + $0x518] sm:$0xff]
    %v4496 = vld [vmem:[#allocation17 + $0x520] sm:$0xff]
    %v4497 = vld [vmem:[#allocation17 + $0x528] sm:$0xff]
    %v4498 = vld [vmem:[#allocation17 + $0x530] sm:$0xff]
    %v4499 = vld [vmem:[#allocation17 + $0x538] sm:$0xff]
    %v4500 = vld [vmem:[#allocation17 + $0x540] sm:$0xff]
    %v4501 = vld [vmem:[#allocation17 + $0x548] sm:$0xff]
    %v4502 = vld [vmem:[#allocation17 + $0x550] sm:$0xff]
    %v4503 = vld [vmem:[#allocation17 + $0x558] sm:$0xff]
    %v4504 = vld [vmem:[#allocation17 + $0x560] sm:$0xff]
    %v4505 = vld [vmem:[#allocation17 + $0x568] sm:$0xff]
    %v4506 = vld [vmem:[#allocation17 + $0x570] sm:$0xff]
    %v4507 = vld [vmem:[#allocation17 + $0x578] sm:$0xff]
    %v4508 = vld [vmem:[#allocation17 + $0x580] sm:$0xff]
    %v4509 = vld [vmem:[#allocation17 + $0x588] sm:$0xff]
    %v4510 = vld [vmem:[#allocation17 + $0x590] sm:$0xff]
    %v4511 = vld [vmem:[#allocation17 + $0x598] sm:$0xff]
    %v4512 = vld [vmem:[#allocation17 + $0x5a0] sm:$0xff]
    %v4513 = vld [vmem:[#allocation17 + $0x5a8] sm:$0xff]
    %v4514 = vld [vmem:[#allocation17 + $0x5b0] sm:$0xff]
    %v4515 = vld [vmem:[#allocation17 + $0x5b8] sm:$0xff]
    %v4516 = vld [vmem:[#allocation17 + $0x5c0] sm:$0xff]
    %v4517 = vld [vmem:[#allocation17 + $0x5c8] sm:$0xff]
    %v4518 = vld [vmem:[#allocation17 + $0x5d0] sm:$0xff]
    %v4519 = vld [vmem:[#allocation17 + $0x5d8] sm:$0xff]
    %v4520 = vld [vmem:[#allocation17 + $0x5e0] sm:$0xff]
    %v4521 = vld [vmem:[#allocation17 + $0x5e8] sm:$0xff]
    %v4522 = vld [vmem:[#allocation17 + $0x5f0] sm:$0xff]
    %v4523 = vld [vmem:[#allocation17 + $0x5f8] sm:$0xff]
    %v4524 = vld [vmem:[#allocation17 + $0x600] sm:$0xff]
    %v4525 = vld [vmem:[#allocation17 + $0x608] sm:$0xff]
    %v4526 = vld [vmem:[#allocation17 + $0x610] sm:$0xff]
    %v4527 = vld [vmem:[#allocation17 + $0x618] sm:$0xff]
    %v4528 = vld [vmem:[#allocation17 + $0x620] sm:$0xff]
    %v4529 = vld [vmem:[#allocation17 + $0x628] sm:$0xff]
    %v4530 = vld [vmem:[#allocation17 + $0x630] sm:$0xff]
    %v4531 = vld [vmem:[#allocation17 + $0x638] sm:$0xff]
    %v4532 = vld [vmem:[#allocation17 + $0x640] sm:$0xff]
    %v4533 = vld [vmem:[#allocation17 + $0x648] sm:$0xff]
    %v4534 = vld [vmem:[#allocation17 + $0x650] sm:$0xff]
    %v4535 = vld [vmem:[#allocation17 + $0x658] sm:$0xff]
    %v4536 = vld [vmem:[#allocation17 + $0x660] sm:$0xff]
    %v4537 = vld [vmem:[#allocation17 + $0x668] sm:$0xff]
    %v4538 = vld [vmem:[#allocation17 + $0x670] sm:$0xff]
    %v4539 = vld [vmem:[#allocation17 + $0x678] sm:$0xff]
    %v4540 = vld [vmem:[#allocation17 + $0x680] sm:$0xff]
    %v4541 = vld [vmem:[#allocation17 + $0x688] sm:$0xff]
    %v4542 = vld [vmem:[#allocation17 + $0x690] sm:$0xff]
    %v4543 = vld [vmem:[#allocation17 + $0x698] sm:$0xff]
    %v4544 = vld [vmem:[#allocation17 + $0x6a0] sm:$0xff]
    %v4545 = vld [vmem:[#allocation17 + $0x6a8] sm:$0xff]
    %v4546 = vld [vmem:[#allocation17 + $0x6b0] sm:$0xff]
    %v4547 = vld [vmem:[#allocation17 + $0x6b8] sm:$0xff]
    %v4548 = vld [vmem:[#allocation17 + $0x6c0] sm:$0xff]
    %v4549 = vld [vmem:[#allocation17 + $0x6c8] sm:$0xff]
    %v4550 = vld [vmem:[#allocation17 + $0x6d0] sm:$0xff]
    %v4551 = vld [vmem:[#allocation17 + $0x6d8] sm:$0xff]
    %v4552 = vld [vmem:[#allocation17 + $0x6e0] sm:$0xff]
    %v4553 = vld [vmem:[#allocation17 + $0x6e8] sm:$0xff]
    %v4554 = vld [vmem:[#allocation17 + $0x6f0] sm:$0xff]
    %v4555 = vld [vmem:[#allocation17 + $0x6f8] sm:$0xff]
    %v4556 = vld [vmem:[#allocation17 + $0x700] sm:$0xff]
    %v4557 = vld [vmem:[#allocation17 + $0x708] sm:$0xff]
    %v4558 = vld [vmem:[#allocation17 + $0x710] sm:$0xff]
    %v4559 = vld [vmem:[#allocation17 + $0x718] sm:$0xff]
    %v4560 = vld [vmem:[#allocation17 + $0x720] sm:$0xff]
    %v4561 = vld [vmem:[#allocation17 + $0x728] sm:$0xff]
    %v4562 = vld [vmem:[#allocation17 + $0x730] sm:$0xff]
    %v4563 = vld [vmem:[#allocation17 + $0x738] sm:$0xff]
    %v4564 = vld [vmem:[#allocation17 + $0x740] sm:$0xff]
    %v4565 = vld [vmem:[#allocation17 + $0x748] sm:$0xff]
    %v4566 = vld [vmem:[#allocation17 + $0x750] sm:$0xff]
    %v4567 = vld [vmem:[#allocation17 + $0x758] sm:$0xff]
    %v4568 = vld [vmem:[#allocation17 + $0x760] sm:$0xff]
    %v4569 = vld [vmem:[#allocation17 + $0x768] sm:$0xff]
    %v4570 = vld [vmem:[#allocation17 + $0x770] sm:$0xff]
    %v4571 = vld [vmem:[#allocation17 + $0x778] sm:$0xff]
    %v4572 = vld [vmem:[#allocation17 + $0x780] sm:$0xff]
    %v4573 = vld [vmem:[#allocation17 + $0x788] sm:$0xff]
    %v4574 = vld [vmem:[#allocation17 + $0x790] sm:$0xff]
    %v4575 = vld [vmem:[#allocation17 + $0x798] sm:$0xff]
    %v4576 = vld [vmem:[#allocation17 + $0x7a0] sm:$0xff]
    %v4577 = vld [vmem:[#allocation17 + $0x7a8] sm:$0xff]
    %v4578 = vld [vmem:[#allocation17 + $0x7b0] sm:$0xff]
    %v4579 = vld [vmem:[#allocation17 + $0x7b8] sm:$0xff]
    %v4580 = vld [vmem:[#allocation17 + $0x7c0] sm:$0xff]
    %v4581 = vld [vmem:[#allocation17 + $0x7c8] sm:$0xff]
    %v4582 = vld [vmem:[#allocation17 + $0x7d0] sm:$0xff]
    %v4583 = vld [vmem:[#allocation17 + $0x7d8] sm:$0xff]
    %v4584 = vld [vmem:[#allocation17 + $0x7e0] sm:$0xff]
    %v4585 = vld [vmem:[#allocation17 + $0x7e8] sm:$0xff]
    %v4586 = vld [vmem:[#allocation17 + $0x7f0] sm:$0xff]
    %v4587 = vld [vmem:[#allocation17 + $0x7f8] sm:$0xff]
    %v4588 = vld [vmem:[#allocation17 + $0x800] sm:$0xff]
    %v4589 = vld [vmem:[#allocation17 + $0x808] sm:$0xff]
    %v4590 = vld [vmem:[#allocation17 + $0x810] sm:$0xff]
    %v4591 = vld [vmem:[#allocation17 + $0x818] sm:$0xff]
    %v4592 = vld [vmem:[#allocation17 + $0x820] sm:$0xff]
    %v4593 = vld [vmem:[#allocation17 + $0x828] sm:$0xff]
    %v4594 = vld [vmem:[#allocation17 + $0x830] sm:$0xff]
    %v4595 = vld [vmem:[#allocation17 + $0x838] sm:$0xff]
    %v4596 = vld [vmem:[#allocation17 + $0x840] sm:$0xff]
    %v4597 = vld [vmem:[#allocation17 + $0x848] sm:$0xff]
    %v4598 = vld [vmem:[#allocation17 + $0x850] sm:$0xff]
    %v4599 = vld [vmem:[#allocation17 + $0x858] sm:$0xff]
    %v4600 = vld [vmem:[#allocation17 + $0x860] sm:$0xff]
    %v4601 = vld [vmem:[#allocation17 + $0x868] sm:$0xff]
    %v4602 = vld [vmem:[#allocation17 + $0x870] sm:$0xff]
    %v4603 = vld [vmem:[#allocation17 + $0x878] sm:$0xff]
    %v4604 = vld [vmem:[#allocation17 + $0x880] sm:$0xff]
    %v4605 = vld [vmem:[#allocation17 + $0x888] sm:$0xff]
    %v4606 = vld [vmem:[#allocation17 + $0x890] sm:$0xff]
    %v4607 = vld [vmem:[#allocation17 + $0x898] sm:$0xff]
    %v4608 = vld [vmem:[#allocation17 + $0x8a0] sm:$0xff]
    %v4609 = vld [vmem:[#allocation17 + $0x8a8] sm:$0xff]
    %v4610 = vld [vmem:[#allocation17 + $0x8b0] sm:$0xff]
    %v4611 = vld [vmem:[#allocation17 + $0x8b8] sm:$0xff]
    %v4612 = vld [vmem:[#allocation17 + $0x8c0] sm:$0xff]
    %v4613 = vld [vmem:[#allocation17 + $0x8c8] sm:$0xff]
    %v4614 = vld [vmem:[#allocation17 + $0x8d0] sm:$0xff]
    %v4615 = vld [vmem:[#allocation17 + $0x8d8] sm:$0xff]
    %v4616 = vld [vmem:[#allocation17 + $0x8e0] sm:$0xff]
    %v4617 = vld [vmem:[#allocation17 + $0x8e8] sm:$0xff]
    %v4618 = vld [vmem:[#allocation17 + $0x8f0] sm:$0xff]
    %v4619 = vld [vmem:[#allocation17 + $0x8f8] sm:$0xff]
    %v4620 = vld [vmem:[#allocation19] sm:$0x3f]
    %v4622 = vlaneseq
    %v4623 = vshrl.u32 %v4622, 7
    %v4624 = vsub.s32 0, %v4623
    %v4625 = vrot.slane %v4620, %v4624
    %v4626 = vlaneseq
    %v4627 = vshrl.u32 %v4626, 7
    %v4628 = vsub.s32 1, %v4627
    %v4629 = vrot.slane %v4620, %v4628
    %v4630 = vlaneseq
    %v4631 = vshrl.u32 %v4630, 7
    %v4632 = vsub.s32 2, %v4631
    %v4633 = vrot.slane %v4620, %v4632
    %v4634 = vlaneseq
    %v4635 = vshrl.u32 %v4634, 7
    %v4636 = vsub.s32 3, %v4635
    %v4637 = vrot.slane %v4620, %v4636
    %v4638 = vlaneseq
    %v4639 = vshrl.u32 %v4638, 7
    %v4640 = vsub.s32 4, %v4639
    %v4641 = vrot.slane %v4620, %v4640
    %v4642 = vlaneseq
    %v4643 = vshrl.u32 %v4642, 7
    %v4644 = vsub.s32 5, %v4643
    %v4645 = vrot.slane %v4620, %v4644
    %v4940 = vunpack.c.l.b16 %v4332
    %v4941 = vunpack.c.h.b16 %v4332
    %v4942 = vunpack.c.l.b16 %v4333
    %v4943 = vunpack.c.h.b16 %v4333
    %v4944 = vunpack.c.l.b16 %v4334
    %v4945 = vunpack.c.h.b16 %v4334
    %v4946 = vunpack.c.l.b16 %v4335
    %v4947 = vunpack.c.h.b16 %v4335
    %v4948 = vunpack.c.l.b16 %v4336
    %v4949 = vunpack.c.h.b16 %v4336
    %v4950 = vunpack.c.l.b16 %v4337
    %v4951 = vunpack.c.h.b16 %v4337
    %v4952 = vunpack.c.l.b16 %v4338
    %v4953 = vunpack.c.h.b16 %v4338
    %v4954 = vunpack.c.l.b16 %v4339
    %v4955 = vunpack.c.h.b16 %v4339
    %v4956 = vunpack.c.l.b16 %v4340
    %v4957 = vunpack.c.h.b16 %v4340
    %v4958 = vunpack.c.l.b16 %v4341
    %v4959 = vunpack.c.h.b16 %v4341
    %v4960 = vunpack.c.l.b16 %v4342
    %v4961 = vunpack.c.h.b16 %v4342
    %v4962 = vunpack.c.l.b16 %v4343
    %v4963 = vunpack.c.h.b16 %v4343
    %v4964 = vunpack.c.l.b16 %v4344
    %v4965 = vunpack.c.h.b16 %v4344
    %v4966 = vunpack.c.l.b16 %v4345
    %v4967 = vunpack.c.h.b16 %v4345
    %v4968 = vunpack.c.l.b16 %v4346
    %v4969 = vunpack.c.h.b16 %v4346
    %v4970 = vunpack.c.l.b16 %v4347
    %v4971 = vunpack.c.h.b16 %v4347
    %v4972 = vunpack.c.l.b16 %v4348
    %v4973 = vunpack.c.h.b16 %v4348
    %v4974 = vunpack.c.l.b16 %v4349
    %v4975 = vunpack.c.h.b16 %v4349
    %v4976 = vunpack.c.l.b16 %v4350
    %v4977 = vunpack.c.h.b16 %v4350
    %v4978 = vunpack.c.l.b16 %v4351
    %v4979 = vunpack.c.h.b16 %v4351
    %v4980 = vunpack.c.l.b16 %v4352
    %v4981 = vunpack.c.h.b16 %v4352
    %v4982 = vunpack.c.l.b16 %v4353
    %v4983 = vunpack.c.h.b16 %v4353
    %v4984 = vunpack.c.l.b16 %v4354
    %v4985 = vunpack.c.h.b16 %v4354
    %v4986 = vunpack.c.l.b16 %v4355
    %v4987 = vunpack.c.h.b16 %v4355
    %v4988 = vunpack.c.l.b16 %v4356
    %v4989 = vunpack.c.h.b16 %v4356
    %v4990 = vunpack.c.l.b16 %v4357
    %v4991 = vunpack.c.h.b16 %v4357
    %v4992 = vunpack.c.l.b16 %v4358
    %v4993 = vunpack.c.h.b16 %v4358
    %v4994 = vunpack.c.l.b16 %v4359
    %v4995 = vunpack.c.h.b16 %v4359
    %v4996 = vunpack.c.l.b16 %v4360
    %v4997 = vunpack.c.h.b16 %v4360
    %v4998 = vunpack.c.l.b16 %v4361
    %v4999 = vunpack.c.h.b16 %v4361
    %v5000 = vunpack.c.l.b16 %v4362
    %v5001 = vunpack.c.h.b16 %v4362
    %v5002 = vunpack.c.l.b16 %v4363
    %v5003 = vunpack.c.h.b16 %v4363
    %v5004 = vunpack.c.l.b16 %v4364
    %v5005 = vunpack.c.h.b16 %v4364
    %v5006 = vunpack.c.l.b16 %v4365
    %v5007 = vunpack.c.h.b16 %v4365
    %v5008 = vunpack.c.l.b16 %v4366
    %v5009 = vunpack.c.h.b16 %v4366
    %v5010 = vunpack.c.l.b16 %v4367
    %v5011 = vunpack.c.h.b16 %v4367
    %v5012 = vunpack.c.l.b16 %v4368
    %v5013 = vunpack.c.h.b16 %v4368
    %v5014 = vunpack.c.l.b16 %v4369
    %v5015 = vunpack.c.h.b16 %v4369
    %v5016 = vunpack.c.l.b16 %v4370
    %v5017 = vunpack.c.h.b16 %v4370
    %v5018 = vunpack.c.l.b16 %v4371
    %v5019 = vunpack.c.h.b16 %v4371
    %v5020 = vunpack.c.l.b16 %v4372
    %v5021 = vunpack.c.h.b16 %v4372
    %v5022 = vunpack.c.l.b16 %v4373
    %v5023 = vunpack.c.h.b16 %v4373
    %v5024 = vunpack.c.l.b16 %v4374
    %v5025 = vunpack.c.h.b16 %v4374
    %v5026 = vunpack.c.l.b16 %v4375
    %v5027 = vunpack.c.h.b16 %v4375
    %v5028 = vunpack.c.l.b16 %v4376
    %v5029 = vunpack.c.h.b16 %v4376
    %v5030 = vunpack.c.l.b16 %v4377
    %v5031 = vunpack.c.h.b16 %v4377
    %v5032 = vunpack.c.l.b16 %v4378
    %v5033 = vunpack.c.h.b16 %v4378
    %v5034 = vunpack.c.l.b16 %v4379
    %v5035 = vunpack.c.h.b16 %v4379
    %v5036 = vunpack.c.l.b16 %v4380
    %v5037 = vunpack.c.h.b16 %v4380
    %v5038 = vunpack.c.l.b16 %v4381
    %v5039 = vunpack.c.h.b16 %v4381
    %v5040 = vunpack.c.l.b16 %v4382
    %v5041 = vunpack.c.h.b16 %v4382
    %v5042 = vunpack.c.l.b16 %v4383
    %v5043 = vunpack.c.h.b16 %v4383
    %v5044 = vunpack.c.l.b16 %v4384
    %v5045 = vunpack.c.h.b16 %v4384
    %v5046 = vunpack.c.l.b16 %v4385
    %v5047 = vunpack.c.h.b16 %v4385
    %v5048 = vunpack.c.l.b16 %v4386
    %v5049 = vunpack.c.h.b16 %v4386
    %v5050 = vunpack.c.l.b16 %v4387
    %v5051 = vunpack.c.h.b16 %v4387
    %v5052 = vunpack.c.l.b16 %v4388
    %v5053 = vunpack.c.h.b16 %v4388
    %v5054 = vunpack.c.l.b16 %v4389
    %v5055 = vunpack.c.h.b16 %v4389
    %v5056 = vunpack.c.l.b16 %v4390
    %v5057 = vunpack.c.h.b16 %v4390
    %v5058 = vunpack.c.l.b16 %v4391
    %v5059 = vunpack.c.h.b16 %v4391
    %v5060 = vunpack.c.l.b16 %v4392
    %v5061 = vunpack.c.h.b16 %v4392
    %v5062 = vunpack.c.l.b16 %v4393
    %v5063 = vunpack.c.h.b16 %v4393
    %v5064 = vunpack.c.l.b16 %v4394
    %v5065 = vunpack.c.h.b16 %v4394
    %v5066 = vunpack.c.l.b16 %v4395
    %v5067 = vunpack.c.h.b16 %v4395
    %v5068 = vunpack.c.l.b16 %v4396
    %v5069 = vunpack.c.h.b16 %v4396
    %v5070 = vunpack.c.l.b16 %v4397
    %v5071 = vunpack.c.h.b16 %v4397
    %v5072 = vunpack.c.l.b16 %v4398
    %v5073 = vunpack.c.h.b16 %v4398
    %v5074 = vunpack.c.l.b16 %v4399
    %v5075 = vunpack.c.h.b16 %v4399
    %v5076 = vunpack.c.l.b16 %v4400
    %v5077 = vunpack.c.h.b16 %v4400
    %v5078 = vunpack.c.l.b16 %v4401
    %v5079 = vunpack.c.h.b16 %v4401
    %v5080 = vunpack.c.l.b16 %v4402
    %v5081 = vunpack.c.h.b16 %v4402
    %v5082 = vunpack.c.l.b16 %v4403
    %v5083 = vunpack.c.h.b16 %v4403
    %v5084 = vunpack.c.l.b16 %v4404
    %v5085 = vunpack.c.h.b16 %v4404
    %v5086 = vunpack.c.l.b16 %v4405
    %v5087 = vunpack.c.h.b16 %v4405
    %v5088 = vunpack.c.l.b16 %v4406
    %v5089 = vunpack.c.h.b16 %v4406
    %v5090 = vunpack.c.l.b16 %v4407
    %v5091 = vunpack.c.h.b16 %v4407
    %v5092 = vunpack.c.l.b16 %v4408
    %v5093 = vunpack.c.h.b16 %v4408
    %v5094 = vunpack.c.l.b16 %v4409
    %v5095 = vunpack.c.h.b16 %v4409
    %v5096 = vunpack.c.l.b16 %v4410
    %v5097 = vunpack.c.h.b16 %v4410
    %v5098 = vunpack.c.l.b16 %v4411
    %v5099 = vunpack.c.h.b16 %v4411
    %v5100 = vunpack.c.l.b16 %v4412
    %v5101 = vunpack.c.h.b16 %v4412
    %v5102 = vunpack.c.l.b16 %v4413
    %v5103 = vunpack.c.h.b16 %v4413
    %v5104 = vunpack.c.l.b16 %v4414
    %v5105 = vunpack.c.h.b16 %v4414
    %v5106 = vunpack.c.l.b16 %v4415
    %v5107 = vunpack.c.h.b16 %v4415
    %v5108 = vunpack.c.l.b16 %v4416
    %v5109 = vunpack.c.h.b16 %v4416
    %v5110 = vunpack.c.l.b16 %v4417
    %v5111 = vunpack.c.h.b16 %v4417
    %v5112 = vunpack.c.l.b16 %v4418
    %v5113 = vunpack.c.h.b16 %v4418
    %v5114 = vunpack.c.l.b16 %v4419
    %v5115 = vunpack.c.h.b16 %v4419
    %v5116 = vunpack.c.l.b16 %v4420
    %v5117 = vunpack.c.h.b16 %v4420
    %v5118 = vunpack.c.l.b16 %v4421
    %v5119 = vunpack.c.h.b16 %v4421
    %v5120 = vunpack.c.l.b16 %v4422
    %v5121 = vunpack.c.h.b16 %v4422
    %v5122 = vunpack.c.l.b16 %v4423
    %v5123 = vunpack.c.h.b16 %v4423
    %v5124 = vunpack.c.l.b16 %v4424
    %v5125 = vunpack.c.h.b16 %v4424
    %v5126 = vunpack.c.l.b16 %v4425
    %v5127 = vunpack.c.h.b16 %v4425
    %v5128 = vunpack.c.l.b16 %v4426
    %v5129 = vunpack.c.h.b16 %v4426
    %v5130 = vunpack.c.l.b16 %v4427
    %v5131 = vunpack.c.h.b16 %v4427
    %v5132 = vunpack.c.l.b16 %v4428
    %v5133 = vunpack.c.h.b16 %v4428
    %v5134 = vunpack.c.l.b16 %v4429
    %v5135 = vunpack.c.h.b16 %v4429
    %v5136 = vunpack.c.l.b16 %v4430
    %v5137 = vunpack.c.h.b16 %v4430
    %v5138 = vunpack.c.l.b16 %v4431
    %v5139 = vunpack.c.h.b16 %v4431
    %v5140 = vunpack.c.l.b16 %v4432
    %v5141 = vunpack.c.h.b16 %v4432
    %v5142 = vunpack.c.l.b16 %v4433
    %v5143 = vunpack.c.h.b16 %v4433
    %v5144 = vunpack.c.l.b16 %v4434
    %v5145 = vunpack.c.h.b16 %v4434
    %v5146 = vunpack.c.l.b16 %v4435
    %v5147 = vunpack.c.h.b16 %v4435
    %v5148 = vunpack.c.l.b16 %v4436
    %v5149 = vunpack.c.h.b16 %v4436
    %v5150 = vunpack.c.l.b16 %v4437
    %v5151 = vunpack.c.h.b16 %v4437
    %v5152 = vunpack.c.l.b16 %v4438
    %v5153 = vunpack.c.h.b16 %v4438
    %v5154 = vunpack.c.l.b16 %v4439
    %v5155 = vunpack.c.h.b16 %v4439
    %v5156 = vunpack.c.l.b16 %v4440
    %v5157 = vunpack.c.h.b16 %v4440
    %v5158 = vunpack.c.l.b16 %v4441
    %v5159 = vunpack.c.h.b16 %v4441
    %v5160 = vunpack.c.l.b16 %v4442
    %v5161 = vunpack.c.h.b16 %v4442
    %v5162 = vunpack.c.l.b16 %v4443
    %v5163 = vunpack.c.h.b16 %v4443
    %v5164 = vunpack.c.l.b16 %v4444
    %v5165 = vunpack.c.h.b16 %v4444
    %v5166 = vunpack.c.l.b16 %v4445
    %v5167 = vunpack.c.h.b16 %v4445
    %v5168 = vunpack.c.l.b16 %v4446
    %v5169 = vunpack.c.h.b16 %v4446
    %v5170 = vunpack.c.l.b16 %v4447
    %v5171 = vunpack.c.h.b16 %v4447
    %v5172 = vunpack.c.l.b16 %v4448
    %v5173 = vunpack.c.h.b16 %v4448
    %v5174 = vunpack.c.l.b16 %v4449
    %v5175 = vunpack.c.h.b16 %v4449
    %v5176 = vunpack.c.l.b16 %v4450
    %v5177 = vunpack.c.h.b16 %v4450
    %v5178 = vunpack.c.l.b16 %v4451
    %v5179 = vunpack.c.h.b16 %v4451
    %v5180 = vunpack.c.l.b16 %v4452
    %v5181 = vunpack.c.h.b16 %v4452
    %v5182 = vunpack.c.l.b16 %v4453
    %v5183 = vunpack.c.h.b16 %v4453
    %v5184 = vunpack.c.l.b16 %v4454
    %v5185 = vunpack.c.h.b16 %v4454
    %v5186 = vunpack.c.l.b16 %v4455
    %v5187 = vunpack.c.h.b16 %v4455
    %v5188 = vunpack.c.l.b16 %v4456
    %v5189 = vunpack.c.h.b16 %v4456
    %v5190 = vunpack.c.l.b16 %v4457
    %v5191 = vunpack.c.h.b16 %v4457
    %v5192 = vunpack.c.l.b16 %v4458
    %v5193 = vunpack.c.h.b16 %v4458
    %v5194 = vunpack.c.l.b16 %v4459
    %v5195 = vunpack.c.h.b16 %v4459
    %v5196 = vunpack.c.l.b16 %v4460
    %v5197 = vunpack.c.h.b16 %v4460
    %v5198 = vunpack.c.l.b16 %v4461
    %v5199 = vunpack.c.h.b16 %v4461
    %v5200 = vunpack.c.l.b16 %v4462
    %v5201 = vunpack.c.h.b16 %v4462
    %v5202 = vunpack.c.l.b16 %v4463
    %v5203 = vunpack.c.h.b16 %v4463
    %v5204 = vunpack.c.l.b16 %v4464
    %v5205 = vunpack.c.h.b16 %v4464
    %v5206 = vunpack.c.l.b16 %v4465
    %v5207 = vunpack.c.h.b16 %v4465
    %v5208 = vunpack.c.l.b16 %v4466
    %v5209 = vunpack.c.h.b16 %v4466
    %v5210 = vunpack.c.l.b16 %v4467
    %v5211 = vunpack.c.h.b16 %v4467
    %v5212 = vunpack.c.l.b16 %v4468
    %v5213 = vunpack.c.h.b16 %v4468
    %v5214 = vunpack.c.l.b16 %v4469
    %v5215 = vunpack.c.h.b16 %v4469
    %v5216 = vunpack.c.l.b16 %v4470
    %v5217 = vunpack.c.h.b16 %v4470
    %v5218 = vunpack.c.l.b16 %v4471
    %v5219 = vunpack.c.h.b16 %v4471
    %v5220 = vunpack.c.l.b16 %v4472
    %v5221 = vunpack.c.h.b16 %v4472
    %v5222 = vunpack.c.l.b16 %v4473
    %v5223 = vunpack.c.h.b16 %v4473
    %v5224 = vunpack.c.l.b16 %v4474
    %v5225 = vunpack.c.h.b16 %v4474
    %v5226 = vunpack.c.l.b16 %v4475
    %v5227 = vunpack.c.h.b16 %v4475
    %v5228 = vunpack.c.l.b16 %v4476
    %v5229 = vunpack.c.h.b16 %v4476
    %v5230 = vunpack.c.l.b16 %v4477
    %v5231 = vunpack.c.h.b16 %v4477
    %v5232 = vunpack.c.l.b16 %v4478
    %v5233 = vunpack.c.h.b16 %v4478
    %v5234 = vunpack.c.l.b16 %v4479
    %v5235 = vunpack.c.h.b16 %v4479
    %v5236 = vunpack.c.l.b16 %v4480
    %v5237 = vunpack.c.h.b16 %v4480
    %v5238 = vunpack.c.l.b16 %v4481
    %v5239 = vunpack.c.h.b16 %v4481
    %v5240 = vunpack.c.l.b16 %v4482
    %v5241 = vunpack.c.h.b16 %v4482
    %v5242 = vunpack.c.l.b16 %v4483
    %v5243 = vunpack.c.h.b16 %v4483
    %v5244 = vunpack.c.l.b16 %v4484
    %v5245 = vunpack.c.h.b16 %v4484
    %v5246 = vunpack.c.l.b16 %v4485
    %v5247 = vunpack.c.h.b16 %v4485
    %v5248 = vunpack.c.l.b16 %v4486
    %v5249 = vunpack.c.h.b16 %v4486
    %v5250 = vunpack.c.l.b16 %v4487
    %v5251 = vunpack.c.h.b16 %v4487
    %v5252 = vunpack.c.l.b16 %v4488
    %v5253 = vunpack.c.h.b16 %v4488
    %v5254 = vunpack.c.l.b16 %v4489
    %v5255 = vunpack.c.h.b16 %v4489
    %v5256 = vunpack.c.l.b16 %v4490
    %v5257 = vunpack.c.h.b16 %v4490
    %v5258 = vunpack.c.l.b16 %v4491
    %v5259 = vunpack.c.h.b16 %v4491
    %v5260 = vunpack.c.l.b16 %v4492
    %v5261 = vunpack.c.h.b16 %v4492
    %v5262 = vunpack.c.l.b16 %v4493
    %v5263 = vunpack.c.h.b16 %v4493
    %v5264 = vunpack.c.l.b16 %v4494
    %v5265 = vunpack.c.h.b16 %v4494
    %v5266 = vunpack.c.l.b16 %v4495
    %v5267 = vunpack.c.h.b16 %v4495
    %v5268 = vunpack.c.l.b16 %v4496
    %v5269 = vunpack.c.h.b16 %v4496
    %v5270 = vunpack.c.l.b16 %v4497
    %v5271 = vunpack.c.h.b16 %v4497
    %v5272 = vunpack.c.l.b16 %v4498
    %v5273 = vunpack.c.h.b16 %v4498
    %v5274 = vunpack.c.l.b16 %v4499
    %v5275 = vunpack.c.h.b16 %v4499
    %v5276 = vunpack.c.l.b16 %v4500
    %v5277 = vunpack.c.h.b16 %v4500
    %v5278 = vunpack.c.l.b16 %v4501
    %v5279 = vunpack.c.h.b16 %v4501
    %v5280 = vunpack.c.l.b16 %v4502
    %v5281 = vunpack.c.h.b16 %v4502
    %v5282 = vunpack.c.l.b16 %v4503
    %v5283 = vunpack.c.h.b16 %v4503
    %v5284 = vunpack.c.l.b16 %v4504
    %v5285 = vunpack.c.h.b16 %v4504
    %v5286 = vunpack.c.l.b16 %v4505
    %v5287 = vunpack.c.h.b16 %v4505
    %v5288 = vunpack.c.l.b16 %v4506
    %v5289 = vunpack.c.h.b16 %v4506
    %v5290 = vunpack.c.l.b16 %v4507
    %v5291 = vunpack.c.h.b16 %v4507
    %v5292 = vunpack.c.l.b16 %v4508
    %v5293 = vunpack.c.h.b16 %v4508
    %v5294 = vunpack.c.l.b16 %v4509
    %v5295 = vunpack.c.h.b16 %v4509
    %v5296 = vunpack.c.l.b16 %v4510
    %v5297 = vunpack.c.h.b16 %v4510
    %v5298 = vunpack.c.l.b16 %v4511
    %v5299 = vunpack.c.h.b16 %v4511
    %v5300 = vunpack.c.l.b16 %v4512
    %v5301 = vunpack.c.h.b16 %v4512
    %v5302 = vunpack.c.l.b16 %v4513
    %v5303 = vunpack.c.h.b16 %v4513
    %v5304 = vunpack.c.l.b16 %v4514
    %v5305 = vunpack.c.h.b16 %v4514
    %v5306 = vunpack.c.l.b16 %v4515
    %v5307 = vunpack.c.h.b16 %v4515
    %v5308 = vunpack.c.l.b16 %v4516
    %v5309 = vunpack.c.h.b16 %v4516
    %v5310 = vunpack.c.l.b16 %v4517
    %v5311 = vunpack.c.h.b16 %v4517
    %v5312 = vunpack.c.l.b16 %v4518
    %v5313 = vunpack.c.h.b16 %v4518
    %v5314 = vunpack.c.l.b16 %v4519
    %v5315 = vunpack.c.h.b16 %v4519
    %v5316 = vunpack.c.l.b16 %v4520
    %v5317 = vunpack.c.h.b16 %v4520
    %v5318 = vunpack.c.l.b16 %v4521
    %v5319 = vunpack.c.h.b16 %v4521
    %v5320 = vunpack.c.l.b16 %v4522
    %v5321 = vunpack.c.h.b16 %v4522
    %v5322 = vunpack.c.l.b16 %v4523
    %v5323 = vunpack.c.h.b16 %v4523
    %v5324 = vunpack.c.l.b16 %v4524
    %v5325 = vunpack.c.h.b16 %v4524
    %v5326 = vunpack.c.l.b16 %v4525
    %v5327 = vunpack.c.h.b16 %v4525
    %v5328 = vunpack.c.l.b16 %v4526
    %v5329 = vunpack.c.h.b16 %v4526
    %v5330 = vunpack.c.l.b16 %v4527
    %v5331 = vunpack.c.h.b16 %v4527
    %v5332 = vunpack.c.l.b16 %v4528
    %v5333 = vunpack.c.h.b16 %v4528
    %v5334 = vunpack.c.l.b16 %v4529
    %v5335 = vunpack.c.h.b16 %v4529
    %v5336 = vunpack.c.l.b16 %v4530
    %v5337 = vunpack.c.h.b16 %v4530
    %v5338 = vunpack.c.l.b16 %v4531
    %v5339 = vunpack.c.h.b16 %v4531
    %v5340 = vunpack.c.l.b16 %v4532
    %v5341 = vunpack.c.h.b16 %v4532
    %v5342 = vunpack.c.l.b16 %v4533
    %v5343 = vunpack.c.h.b16 %v4533
    %v5344 = vunpack.c.l.b16 %v4534
    %v5345 = vunpack.c.h.b16 %v4534
    %v5346 = vunpack.c.l.b16 %v4535
    %v5347 = vunpack.c.h.b16 %v4535
    %v5348 = vunpack.c.l.b16 %v4536
    %v5349 = vunpack.c.h.b16 %v4536
    %v5350 = vunpack.c.l.b16 %v4537
    %v5351 = vunpack.c.h.b16 %v4537
    %v5352 = vunpack.c.l.b16 %v4538
    %v5353 = vunpack.c.h.b16 %v4538
    %v5354 = vunpack.c.l.b16 %v4539
    %v5355 = vunpack.c.h.b16 %v4539
    %v5356 = vunpack.c.l.b16 %v4540
    %v5357 = vunpack.c.h.b16 %v4540
    %v5358 = vunpack.c.l.b16 %v4541
    %v5359 = vunpack.c.h.b16 %v4541
    %v5360 = vunpack.c.l.b16 %v4542
    %v5361 = vunpack.c.h.b16 %v4542
    %v5362 = vunpack.c.l.b16 %v4543
    %v5363 = vunpack.c.h.b16 %v4543
    %v5364 = vunpack.c.l.b16 %v4544
    %v5365 = vunpack.c.h.b16 %v4544
    %v5366 = vunpack.c.l.b16 %v4545
    %v5367 = vunpack.c.h.b16 %v4545
    %v5368 = vunpack.c.l.b16 %v4546
    %v5369 = vunpack.c.h.b16 %v4546
    %v5370 = vunpack.c.l.b16 %v4547
    %v5371 = vunpack.c.h.b16 %v4547
    %v5372 = vunpack.c.l.b16 %v4548
    %v5373 = vunpack.c.h.b16 %v4548
    %v5374 = vunpack.c.l.b16 %v4549
    %v5375 = vunpack.c.h.b16 %v4549
    %v5376 = vunpack.c.l.b16 %v4550
    %v5377 = vunpack.c.h.b16 %v4550
    %v5378 = vunpack.c.l.b16 %v4551
    %v5379 = vunpack.c.h.b16 %v4551
    %v5380 = vunpack.c.l.b16 %v4552
    %v5381 = vunpack.c.h.b16 %v4552
    %v5382 = vunpack.c.l.b16 %v4553
    %v5383 = vunpack.c.h.b16 %v4553
    %v5384 = vunpack.c.l.b16 %v4554
    %v5385 = vunpack.c.h.b16 %v4554
    %v5386 = vunpack.c.l.b16 %v4555
    %v5387 = vunpack.c.h.b16 %v4555
    %v5388 = vunpack.c.l.b16 %v4556
    %v5389 = vunpack.c.h.b16 %v4556
    %v5390 = vunpack.c.l.b16 %v4557
    %v5391 = vunpack.c.h.b16 %v4557
    %v5392 = vunpack.c.l.b16 %v4558
    %v5393 = vunpack.c.h.b16 %v4558
    %v5394 = vunpack.c.l.b16 %v4559
    %v5395 = vunpack.c.h.b16 %v4559
    %v5396 = vunpack.c.l.b16 %v4560
    %v5397 = vunpack.c.h.b16 %v4560
    %v5398 = vunpack.c.l.b16 %v4561
    %v5399 = vunpack.c.h.b16 %v4561
    %v5400 = vunpack.c.l.b16 %v4562
    %v5401 = vunpack.c.h.b16 %v4562
    %v5402 = vunpack.c.l.b16 %v4563
    %v5403 = vunpack.c.h.b16 %v4563
    %v5404 = vunpack.c.l.b16 %v4564
    %v5405 = vunpack.c.h.b16 %v4564
    %v5406 = vunpack.c.l.b16 %v4565
    %v5407 = vunpack.c.h.b16 %v4565
    %v5408 = vunpack.c.l.b16 %v4566
    %v5409 = vunpack.c.h.b16 %v4566
    %v5410 = vunpack.c.l.b16 %v4567
    %v5411 = vunpack.c.h.b16 %v4567
    %v5412 = vunpack.c.l.b16 %v4568
    %v5413 = vunpack.c.h.b16 %v4568
    %v5414 = vunpack.c.l.b16 %v4569
    %v5415 = vunpack.c.h.b16 %v4569
    %v5416 = vunpack.c.l.b16 %v4570
    %v5417 = vunpack.c.h.b16 %v4570
    %v5418 = vunpack.c.l.b16 %v4571
    %v5419 = vunpack.c.h.b16 %v4571
    %v5420 = vunpack.c.l.b16 %v4572
    %v5421 = vunpack.c.h.b16 %v4572
    %v5422 = vunpack.c.l.b16 %v4573
    %v5423 = vunpack.c.h.b16 %v4573
    %v5424 = vunpack.c.l.b16 %v4574
    %v5425 = vunpack.c.h.b16 %v4574
    %v5426 = vunpack.c.l.b16 %v4575
    %v5427 = vunpack.c.h.b16 %v4575
    %v5428 = vunpack.c.l.b16 %v4576
    %v5429 = vunpack.c.h.b16 %v4576
    %v5430 = vunpack.c.l.b16 %v4577
    %v5431 = vunpack.c.h.b16 %v4577
    %v5432 = vunpack.c.l.b16 %v4578
    %v5433 = vunpack.c.h.b16 %v4578
    %v5434 = vunpack.c.l.b16 %v4579
    %v5435 = vunpack.c.h.b16 %v4579
    %v5436 = vunpack.c.l.b16 %v4580
    %v5437 = vunpack.c.h.b16 %v4580
    %v5438 = vunpack.c.l.b16 %v4581
    %v5439 = vunpack.c.h.b16 %v4581
    %v5440 = vunpack.c.l.b16 %v4582
    %v5441 = vunpack.c.h.b16 %v4582
    %v5442 = vunpack.c.l.b16 %v4583
    %v5443 = vunpack.c.h.b16 %v4583
    %v5444 = vunpack.c.l.b16 %v4584
    %v5445 = vunpack.c.h.b16 %v4584
    %v5446 = vunpack.c.l.b16 %v4585
    %v5447 = vunpack.c.h.b16 %v4585
    %v5448 = vunpack.c.l.b16 %v4586
    %v5449 = vunpack.c.h.b16 %v4586
    %v5450 = vunpack.c.l.b16 %v4587
    %v5451 = vunpack.c.h.b16 %v4587
    %v5452 = vunpack.c.l.b16 %v4588
    %v5453 = vunpack.c.h.b16 %v4588
    %v5454 = vunpack.c.l.b16 %v4589
    %v5455 = vunpack.c.h.b16 %v4589
    %v5456 = vunpack.c.l.b16 %v4590
    %v5457 = vunpack.c.h.b16 %v4590
    %v5458 = vunpack.c.l.b16 %v4591
    %v5459 = vunpack.c.h.b16 %v4591
    %v5460 = vunpack.c.l.b16 %v4592
    %v5461 = vunpack.c.h.b16 %v4592
    %v5462 = vunpack.c.l.b16 %v4593
    %v5463 = vunpack.c.h.b16 %v4593
    %v5464 = vunpack.c.l.b16 %v4594
    %v5465 = vunpack.c.h.b16 %v4594
    %v5466 = vunpack.c.l.b16 %v4595
    %v5467 = vunpack.c.h.b16 %v4595
    %v5468 = vunpack.c.l.b16 %v4596
    %v5469 = vunpack.c.h.b16 %v4596
    %v5470 = vunpack.c.l.b16 %v4597
    %v5471 = vunpack.c.h.b16 %v4597
    %v5472 = vunpack.c.l.b16 %v4598
    %v5473 = vunpack.c.h.b16 %v4598
    %v5474 = vunpack.c.l.b16 %v4599
    %v5475 = vunpack.c.h.b16 %v4599
    %v5476 = vunpack.c.l.b16 %v4600
    %v5477 = vunpack.c.h.b16 %v4600
    %v5478 = vunpack.c.l.b16 %v4601
    %v5479 = vunpack.c.h.b16 %v4601
    %v5480 = vunpack.c.l.b16 %v4602
    %v5481 = vunpack.c.h.b16 %v4602
    %v5482 = vunpack.c.l.b16 %v4603
    %v5483 = vunpack.c.h.b16 %v4603
    %v5484 = vunpack.c.l.b16 %v4604
    %v5485 = vunpack.c.h.b16 %v4604
    %v5486 = vunpack.c.l.b16 %v4605
    %v5487 = vunpack.c.h.b16 %v4605
    %v5488 = vunpack.c.l.b16 %v4606
    %v5489 = vunpack.c.h.b16 %v4606
    %v5490 = vunpack.c.l.b16 %v4607
    %v5491 = vunpack.c.h.b16 %v4607
    %v5492 = vunpack.c.l.b16 %v4608
    %v5493 = vunpack.c.h.b16 %v4608
    %v5494 = vunpack.c.l.b16 %v4609
    %v5495 = vunpack.c.h.b16 %v4609
    %v5496 = vunpack.c.l.b16 %v4610
    %v5497 = vunpack.c.h.b16 %v4610
    %v5498 = vunpack.c.l.b16 %v4611
    %v5499 = vunpack.c.h.b16 %v4611
    %v5500 = vunpack.c.l.b16 %v4612
    %v5501 = vunpack.c.h.b16 %v4612
    %v5502 = vunpack.c.l.b16 %v4613
    %v5503 = vunpack.c.h.b16 %v4613
    %v5504 = vunpack.c.l.b16 %v4614
    %v5505 = vunpack.c.h.b16 %v4614
    %v5506 = vunpack.c.l.b16 %v4615
    %v5507 = vunpack.c.h.b16 %v4615
    %v5508 = vunpack.c.l.b16 %v4616
    %v5509 = vunpack.c.h.b16 %v4616
    %v5510 = vunpack.c.l.b16 %v4617
    %v5511 = vunpack.c.h.b16 %v4617
    %v5512 = vunpack.c.l.b16 %v4618
    %v5513 = vunpack.c.h.b16 %v4618
    %v5514 = vunpack.c.l.b16 %v4619
    %v5515 = vunpack.c.h.b16 %v4619
    %v5516 = vpack.c.b16 %v4946, %v4940
    %v5517 = vpack.c.b16 %v4947, %v4941
    %v5518 = vpack.c.b16 %v4948, %v4942
    %v5519 = vpack.c.b16 %v4949, %v4943
    %v5520 = vpack.c.b16 %v4950, %v4944
    %v5521 = vpack.c.b16 %v4951, %v4945
    %v5522 = vpack.c.b16 %v4958, %v4952
    %v5523 = vpack.c.b16 %v4959, %v4953
    %v5524 = vpack.c.b16 %v4960, %v4954
    %v5525 = vpack.c.b16 %v4961, %v4955
    %v5526 = vpack.c.b16 %v4962, %v4956
    %v5527 = vpack.c.b16 %v4963, %v4957
    %v5528 = vpack.c.b16 %v4970, %v4964
    %v5529 = vpack.c.b16 %v4971, %v4965
    %v5530 = vpack.c.b16 %v4972, %v4966
    %v5531 = vpack.c.b16 %v4973, %v4967
    %v5532 = vpack.c.b16 %v4974, %v4968
    %v5533 = vpack.c.b16 %v4975, %v4969
    %v5534 = vpack.c.b16 %v4982, %v4976
    %v5535 = vpack.c.b16 %v4983, %v4977
    %v5536 = vpack.c.b16 %v4984, %v4978
    %v5537 = vpack.c.b16 %v4985, %v4979
    %v5538 = vpack.c.b16 %v4986, %v4980
    %v5539 = vpack.c.b16 %v4987, %v4981
    %v5540 = vpack.c.b16 %v4994, %v4988
    %v5541 = vpack.c.b16 %v4995, %v4989
    %v5542 = vpack.c.b16 %v4996, %v4990
    %v5543 = vpack.c.b16 %v4997, %v4991
    %v5544 = vpack.c.b16 %v4998, %v4992
    %v5545 = vpack.c.b16 %v4999, %v4993
    %v5546 = vpack.c.b16 %v5006, %v5000
    %v5547 = vpack.c.b16 %v5007, %v5001
    %v5548 = vpack.c.b16 %v5008, %v5002
    %v5549 = vpack.c.b16 %v5009, %v5003
    %v5550 = vpack.c.b16 %v5010, %v5004
    %v5551 = vpack.c.b16 %v5011, %v5005
    %v5552 = vpack.c.b16 %v5018, %v5012
    %v5553 = vpack.c.b16 %v5019, %v5013
    %v5554 = vpack.c.b16 %v5020, %v5014
    %v5555 = vpack.c.b16 %v5021, %v5015
    %v5556 = vpack.c.b16 %v5022, %v5016
    %v5557 = vpack.c.b16 %v5023, %v5017
    %v5558 = vpack.c.b16 %v5030, %v5024
    %v5559 = vpack.c.b16 %v5031, %v5025
    %v5560 = vpack.c.b16 %v5032, %v5026
    %v5561 = vpack.c.b16 %v5033, %v5027
    %v5562 = vpack.c.b16 %v5034, %v5028
    %v5563 = vpack.c.b16 %v5035, %v5029
    %v5564 = vpack.c.b16 %v5042, %v5036
    %v5565 = vpack.c.b16 %v5043, %v5037
    %v5566 = vpack.c.b16 %v5044, %v5038
    %v5567 = vpack.c.b16 %v5045, %v5039
    %v5568 = vpack.c.b16 %v5046, %v5040
    %v5569 = vpack.c.b16 %v5047, %v5041
    %v5570 = vpack.c.b16 %v5054, %v5048
    %v5571 = vpack.c.b16 %v5055, %v5049
    %v5572 = vpack.c.b16 %v5056, %v5050
    %v5573 = vpack.c.b16 %v5057, %v5051
    %v5574 = vpack.c.b16 %v5058, %v5052
    %v5575 = vpack.c.b16 %v5059, %v5053
    %v5576 = vpack.c.b16 %v5066, %v5060
    %v5577 = vpack.c.b16 %v5067, %v5061
    %v5578 = vpack.c.b16 %v5068, %v5062
    %v5579 = vpack.c.b16 %v5069, %v5063
    %v5580 = vpack.c.b16 %v5070, %v5064
    %v5581 = vpack.c.b16 %v5071, %v5065
    %v5582 = vpack.c.b16 %v5078, %v5072
    %v5583 = vpack.c.b16 %v5079, %v5073
    %v5584 = vpack.c.b16 %v5080, %v5074
    %v5585 = vpack.c.b16 %v5081, %v5075
    %v5586 = vpack.c.b16 %v5082, %v5076
    %v5587 = vpack.c.b16 %v5083, %v5077
    %v5588 = vpack.c.b16 %v5090, %v5084
    %v5589 = vpack.c.b16 %v5091, %v5085
    %v5590 = vpack.c.b16 %v5092, %v5086
    %v5591 = vpack.c.b16 %v5093, %v5087
    %v5592 = vpack.c.b16 %v5094, %v5088
    %v5593 = vpack.c.b16 %v5095, %v5089
    %v5594 = vpack.c.b16 %v5102, %v5096
    %v5595 = vpack.c.b16 %v5103, %v5097
    %v5596 = vpack.c.b16 %v5104, %v5098
    %v5597 = vpack.c.b16 %v5105, %v5099
    %v5598 = vpack.c.b16 %v5106, %v5100
    %v5599 = vpack.c.b16 %v5107, %v5101
    %v5600 = vpack.c.b16 %v5114, %v5108
    %v5601 = vpack.c.b16 %v5115, %v5109
    %v5602 = vpack.c.b16 %v5116, %v5110
    %v5603 = vpack.c.b16 %v5117, %v5111
    %v5604 = vpack.c.b16 %v5118, %v5112
    %v5605 = vpack.c.b16 %v5119, %v5113
    %v5606 = vpack.c.b16 %v5126, %v5120
    %v5607 = vpack.c.b16 %v5127, %v5121
    %v5608 = vpack.c.b16 %v5128, %v5122
    %v5609 = vpack.c.b16 %v5129, %v5123
    %v5610 = vpack.c.b16 %v5130, %v5124
    %v5611 = vpack.c.b16 %v5131, %v5125
    %v5612 = vpack.c.b16 %v5138, %v5132
    %v5613 = vpack.c.b16 %v5139, %v5133
    %v5614 = vpack.c.b16 %v5140, %v5134
    %v5615 = vpack.c.b16 %v5141, %v5135
    %v5616 = vpack.c.b16 %v5142, %v5136
    %v5617 = vpack.c.b16 %v5143, %v5137
    %v5618 = vpack.c.b16 %v5150, %v5144
    %v5619 = vpack.c.b16 %v5151, %v5145
    %v5620 = vpack.c.b16 %v5152, %v5146
    %v5621 = vpack.c.b16 %v5153, %v5147
    %v5622 = vpack.c.b16 %v5154, %v5148
    %v5623 = vpack.c.b16 %v5155, %v5149
    %v5624 = vpack.c.b16 %v5162, %v5156
    %v5625 = vpack.c.b16 %v5163, %v5157
    %v5626 = vpack.c.b16 %v5164, %v5158
    %v5627 = vpack.c.b16 %v5165, %v5159
    %v5628 = vpack.c.b16 %v5166, %v5160
    %v5629 = vpack.c.b16 %v5167, %v5161
    %v5630 = vpack.c.b16 %v5174, %v5168
    %v5631 = vpack.c.b16 %v5175, %v5169
    %v5632 = vpack.c.b16 %v5176, %v5170
    %v5633 = vpack.c.b16 %v5177, %v5171
    %v5634 = vpack.c.b16 %v5178, %v5172
    %v5635 = vpack.c.b16 %v5179, %v5173
    %v5636 = vpack.c.b16 %v5186, %v5180
    %v5637 = vpack.c.b16 %v5187, %v5181
    %v5638 = vpack.c.b16 %v5188, %v5182
    %v5639 = vpack.c.b16 %v5189, %v5183
    %v5640 = vpack.c.b16 %v5190, %v5184
    %v5641 = vpack.c.b16 %v5191, %v5185
    %v5642 = vpack.c.b16 %v5198, %v5192
    %v5643 = vpack.c.b16 %v5199, %v5193
    %v5644 = vpack.c.b16 %v5200, %v5194
    %v5645 = vpack.c.b16 %v5201, %v5195
    %v5646 = vpack.c.b16 %v5202, %v5196
    %v5647 = vpack.c.b16 %v5203, %v5197
    %v5648 = vpack.c.b16 %v5210, %v5204
    %v5649 = vpack.c.b16 %v5211, %v5205
    %v5650 = vpack.c.b16 %v5212, %v5206
    %v5651 = vpack.c.b16 %v5213, %v5207
    %v5652 = vpack.c.b16 %v5214, %v5208
    %v5653 = vpack.c.b16 %v5215, %v5209
    %v5654 = vpack.c.b16 %v5222, %v5216
    %v5655 = vpack.c.b16 %v5223, %v5217
    %v5656 = vpack.c.b16 %v5224, %v5218
    %v5657 = vpack.c.b16 %v5225, %v5219
    %v5658 = vpack.c.b16 %v5226, %v5220
    %v5659 = vpack.c.b16 %v5227, %v5221
    %v5660 = vpack.c.b16 %v5234, %v5228
    %v5661 = vpack.c.b16 %v5235, %v5229
    %v5662 = vpack.c.b16 %v5236, %v5230
    %v5663 = vpack.c.b16 %v5237, %v5231
    %v5664 = vpack.c.b16 %v5238, %v5232
    %v5665 = vpack.c.b16 %v5239, %v5233
    %v5666 = vpack.c.b16 %v5246, %v5240
    %v5667 = vpack.c.b16 %v5247, %v5241
    %v5668 = vpack.c.b16 %v5248, %v5242
    %v5669 = vpack.c.b16 %v5249, %v5243
    %v5670 = vpack.c.b16 %v5250, %v5244
    %v5671 = vpack.c.b16 %v5251, %v5245
    %v5672 = vpack.c.b16 %v5258, %v5252
    %v5673 = vpack.c.b16 %v5259, %v5253
    %v5674 = vpack.c.b16 %v5260, %v5254
    %v5675 = vpack.c.b16 %v5261, %v5255
    %v5676 = vpack.c.b16 %v5262, %v5256
    %v5677 = vpack.c.b16 %v5263, %v5257
    %v5678 = vpack.c.b16 %v5270, %v5264
    %v5679 = vpack.c.b16 %v5271, %v5265
    %v5680 = vpack.c.b16 %v5272, %v5266
    %v5681 = vpack.c.b16 %v5273, %v5267
    %v5682 = vpack.c.b16 %v5274, %v5268
    %v5683 = vpack.c.b16 %v5275, %v5269
    %v5684 = vpack.c.b16 %v5282, %v5276
    %v5685 = vpack.c.b16 %v5283, %v5277
    %v5686 = vpack.c.b16 %v5284, %v5278
    %v5687 = vpack.c.b16 %v5285, %v5279
    %v5688 = vpack.c.b16 %v5286, %v5280
    %v5689 = vpack.c.b16 %v5287, %v5281
    %v5690 = vpack.c.b16 %v5294, %v5288
    %v5691 = vpack.c.b16 %v5295, %v5289
    %v5692 = vpack.c.b16 %v5296, %v5290
    %v5693 = vpack.c.b16 %v5297, %v5291
    %v5694 = vpack.c.b16 %v5298, %v5292
    %v5695 = vpack.c.b16 %v5299, %v5293
    %v5696 = vpack.c.b16 %v5306, %v5300
    %v5697 = vpack.c.b16 %v5307, %v5301
    %v5698 = vpack.c.b16 %v5308, %v5302
    %v5699 = vpack.c.b16 %v5309, %v5303
    %v5700 = vpack.c.b16 %v5310, %v5304
    %v5701 = vpack.c.b16 %v5311, %v5305
    %v5702 = vpack.c.b16 %v5318, %v5312
    %v5703 = vpack.c.b16 %v5319, %v5313
    %v5704 = vpack.c.b16 %v5320, %v5314
    %v5705 = vpack.c.b16 %v5321, %v5315
    %v5706 = vpack.c.b16 %v5322, %v5316
    %v5707 = vpack.c.b16 %v5323, %v5317
    %v5708 = vpack.c.b16 %v5330, %v5324
    %v5709 = vpack.c.b16 %v5331, %v5325
    %v5710 = vpack.c.b16 %v5332, %v5326
    %v5711 = vpack.c.b16 %v5333, %v5327
    %v5712 = vpack.c.b16 %v5334, %v5328
    %v5713 = vpack.c.b16 %v5335, %v5329
    %v5714 = vpack.c.b16 %v5342, %v5336
    %v5715 = vpack.c.b16 %v5343, %v5337
    %v5716 = vpack.c.b16 %v5344, %v5338
    %v5717 = vpack.c.b16 %v5345, %v5339
    %v5718 = vpack.c.b16 %v5346, %v5340
    %v5719 = vpack.c.b16 %v5347, %v5341
    %v5720 = vpack.c.b16 %v5354, %v5348
    %v5721 = vpack.c.b16 %v5355, %v5349
    %v5722 = vpack.c.b16 %v5356, %v5350
    %v5723 = vpack.c.b16 %v5357, %v5351
    %v5724 = vpack.c.b16 %v5358, %v5352
    %v5725 = vpack.c.b16 %v5359, %v5353
    %v5726 = vpack.c.b16 %v5366, %v5360
    %v5727 = vpack.c.b16 %v5367, %v5361
    %v5728 = vpack.c.b16 %v5368, %v5362
    %v5729 = vpack.c.b16 %v5369, %v5363
    %v5730 = vpack.c.b16 %v5370, %v5364
    %v5731 = vpack.c.b16 %v5371, %v5365
    %v5732 = vpack.c.b16 %v5378, %v5372
    %v5733 = vpack.c.b16 %v5379, %v5373
    %v5734 = vpack.c.b16 %v5380, %v5374
    %v5735 = vpack.c.b16 %v5381, %v5375
    %v5736 = vpack.c.b16 %v5382, %v5376
    %v5737 = vpack.c.b16 %v5383, %v5377
    %v5738 = vpack.c.b16 %v5390, %v5384
    %v5739 = vpack.c.b16 %v5391, %v5385
    %v5740 = vpack.c.b16 %v5392, %v5386
    %v5741 = vpack.c.b16 %v5393, %v5387
    %v5742 = vpack.c.b16 %v5394, %v5388
    %v5743 = vpack.c.b16 %v5395, %v5389
    %v5744 = vpack.c.b16 %v5402, %v5396
    %v5745 = vpack.c.b16 %v5403, %v5397
    %v5746 = vpack.c.b16 %v5404, %v5398
    %v5747 = vpack.c.b16 %v5405, %v5399
    %v5748 = vpack.c.b16 %v5406, %v5400
    %v5749 = vpack.c.b16 %v5407, %v5401
    %v5750 = vpack.c.b16 %v5414, %v5408
    %v5751 = vpack.c.b16 %v5415, %v5409
    %v5752 = vpack.c.b16 %v5416, %v5410
    %v5753 = vpack.c.b16 %v5417, %v5411
    %v5754 = vpack.c.b16 %v5418, %v5412
    %v5755 = vpack.c.b16 %v5419, %v5413
    %v5756 = vpack.c.b16 %v5426, %v5420
    %v5757 = vpack.c.b16 %v5427, %v5421
    %v5758 = vpack.c.b16 %v5428, %v5422
    %v5759 = vpack.c.b16 %v5429, %v5423
    %v5760 = vpack.c.b16 %v5430, %v5424
    %v5761 = vpack.c.b16 %v5431, %v5425
    %v5762 = vpack.c.b16 %v5438, %v5432
    %v5763 = vpack.c.b16 %v5439, %v5433
    %v5764 = vpack.c.b16 %v5440, %v5434
    %v5765 = vpack.c.b16 %v5441, %v5435
    %v5766 = vpack.c.b16 %v5442, %v5436
    %v5767 = vpack.c.b16 %v5443, %v5437
    %v5768 = vpack.c.b16 %v5450, %v5444
    %v5769 = vpack.c.b16 %v5451, %v5445
    %v5770 = vpack.c.b16 %v5452, %v5446
    %v5771 = vpack.c.b16 %v5453, %v5447
    %v5772 = vpack.c.b16 %v5454, %v5448
    %v5773 = vpack.c.b16 %v5455, %v5449
    %v5774 = vpack.c.b16 %v5462, %v5456
    %v5775 = vpack.c.b16 %v5463, %v5457
    %v5776 = vpack.c.b16 %v5464, %v5458
    %v5777 = vpack.c.b16 %v5465, %v5459
    %v5778 = vpack.c.b16 %v5466, %v5460
    %v5779 = vpack.c.b16 %v5467, %v5461
    %v5780 = vpack.c.b16 %v5474, %v5468
    %v5781 = vpack.c.b16 %v5475, %v5469
    %v5782 = vpack.c.b16 %v5476, %v5470
    %v5783 = vpack.c.b16 %v5477, %v5471
    %v5784 = vpack.c.b16 %v5478, %v5472
    %v5785 = vpack.c.b16 %v5479, %v5473
    %v5786 = vpack.c.b16 %v5486, %v5480
    %v5787 = vpack.c.b16 %v5487, %v5481
    %v5788 = vpack.c.b16 %v5488, %v5482
    %v5789 = vpack.c.b16 %v5489, %v5483
    %v5790 = vpack.c.b16 %v5490, %v5484
    %v5791 = vpack.c.b16 %v5491, %v5485
    %v5792 = vpack.c.b16 %v5498, %v5492
    %v5793 = vpack.c.b16 %v5499, %v5493
    %v5794 = vpack.c.b16 %v5500, %v5494
    %v5795 = vpack.c.b16 %v5501, %v5495
    %v5796 = vpack.c.b16 %v5502, %v5496
    %v5797 = vpack.c.b16 %v5503, %v5497
    %v5798 = vpack.c.b16 %v5510, %v5504
    %v5799 = vpack.c.b16 %v5511, %v5505
    %v5800 = vpack.c.b16 %v5512, %v5506
    %v5801 = vpack.c.b16 %v5513, %v5507
    %v5802 = vpack.c.b16 %v5514, %v5508
    %v5803 = vpack.c.b16 %v5515, %v5509
    %6092 = vmatprep.subr.bf16.mxu0 %v5517
    %6093 = vmatpush1.bf16.msra.mxu0 %v5516
    %6094 = vmatprep.subr.bf16.mxu0 %v5523
    %6095 = vmatpush1.bf16.msra.mxu0 %v5522
    %6096 = vmatprep.subr.bf16.mxu0 %v5529
    %6097 = vmatpush1.bf16.msra.mxu0 %v5528
    %6098 = vmatprep.subr.bf16.mxu0 %v5535
    %6099 = vmatpush1.bf16.msra.mxu0 %v5534
    %6100 = vmatprep.subr.bf16.mxu0 %v5541
    %6101 = vmatpush1.bf16.msra.mxu0 %v5540
    %6102 = vmatprep.subr.bf16.mxu0 %v5547
    %6103 = vmatpush1.bf16.msra.mxu0 %v5546
    %6104 = vmatprep.subr.bf16.mxu0 %v5553
    %6105 = vmatpush1.bf16.msra.mxu0 %v5552
    %6106 = vmatprep.subr.bf16.mxu0 %v5559
    %6107 = vmatpush1.bf16.msra.mxu0 %v5558
    %6108 = vmatprep.subr.bf16.mxu0 %v5565
    %6109 = vmatpush1.bf16.msra.mxu0 %v5564
    %6110 = vmatprep.subr.bf16.mxu0 %v5571
    %6111 = vmatpush1.bf16.msra.mxu0 %v5570
    %6112 = vmatprep.subr.bf16.mxu0 %v5577
    %6113 = vmatpush1.bf16.msra.mxu0 %v5576
    %6114 = vmatprep.subr.bf16.mxu0 %v5583
    %6115 = vmatpush1.bf16.msra.mxu0 %v5582
    %6116 = vmatprep.subr.bf16.mxu0 %v5589
    %6117 = vmatpush1.bf16.msra.mxu0 %v5588
    %6118 = vmatprep.subr.bf16.mxu0 %v5595
    %6119 = vmatpush1.bf16.msra.mxu0 %v5594
    %6120 = vmatprep.subr.bf16.mxu0 %v5601
    %6121 = vmatpush1.bf16.msra.mxu0 %v5600
    %6122 = vmatprep.subr.bf16.mxu0 %v5607
    %6123 = vmatpush1.bf16.msra.mxu0 %v5606
    %6124 = vmatprep.mubr.bf16.mxu0 %v4327
    %6125 = vmatmul.mubr.bf16.gmra.mrb[0].mxu0 %v4326
    %v6126 = vpop.f32.mrb[0].mxu0
    %v6127 = vadd.f32 %v4625, %v6126
    %v6128 = vpop.f32.mrb[0].mxu0
    %v6129 = vadd.f32 %v4629, %v6128
    %v6130 = vpop.f32.mrb[0].mxu0
    %v6131 = vadd.f32 %v4625, %v6130
    %v6132 = vpop.f32.mrb[0].mxu0
    %v6133 = vadd.f32 %v4629, %v6132
    %6134 = vdwg.mxu0
    %6135 = vmatprep.subr.bf16.mxu0 %v5613
    %6136 = vmatpush1.bf16.msra.mxu0 %v5612
    %6137 = vmatprep.subr.bf16.mxu0 %v5619
    %6138 = vmatpush1.bf16.msra.mxu0 %v5618
    %6139 = vmatprep.subr.bf16.mxu0 %v5625
    %6140 = vmatpush1.bf16.msra.mxu0 %v5624
    %6141 = vmatprep.subr.bf16.mxu0 %v5631
    %6142 = vmatpush1.bf16.msra.mxu0 %v5630
    %6143 = vmatprep.subr.bf16.mxu0 %v5637
    %6144 = vmatpush1.bf16.msra.mxu0 %v5636
    %6145 = vmatprep.subr.bf16.mxu0 %v5643
    %6146 = vmatpush1.bf16.msra.mxu0 %v5642
    %6147 = vmatprep.subr.bf16.mxu0 %v5649
    %6148 = vmatpush1.bf16.msra.mxu0 %v5648
    %6149 = vmatprep.subr.bf16.mxu0 %v5655
    %6150 = vmatpush1.bf16.msra.mxu0 %v5654
    %6151 = vmatprep.subr.bf16.mxu0 %v5661
    %6152 = vmatpush1.bf16.msra.mxu0 %v5660
    %6153 = vmatprep.subr.bf16.mxu0 %v5667
    %6154 = vmatpush1.bf16.msra.mxu0 %v5666
    %6155 = vmatprep.subr.bf16.mxu0 %v5673
    %6156 = vmatpush1.bf16.msra.mxu0 %v5672
    %6157 = vmatprep.subr.bf16.mxu0 %v5679
    %6158 = vmatpush1.bf16.msra.mxu0 %v5678
    %6159 = vmatprep.subr.bf16.mxu0 %v5685
    %6160 = vmatpush1.bf16.msra.mxu0 %v5684
    %6161 = vmatprep.subr.bf16.mxu0 %v5691
    %6162 = vmatpush1.bf16.msra.mxu0 %v5690
    %6163 = vmatprep.subr.bf16.mxu0 %v5697
    %6164 = vmatpush1.bf16.msra.mxu0 %v5696
    %6165 = vmatprep.subr.bf16.mxu0 %v5703
    %6166 = vmatpush1.bf16.msra.mxu0 %v5702
    %6167 = vmatprep.mubr.bf16.mxu0 %v4329
    %6168 = vmatmul.mubr.bf16.gmra.mrb[0].mxu0 %v4328
    %v6169 = vpop.f32.mrb[0].mxu0
    %v6170 = vadd.f32 %v6127, %v6169
    %v6171 = vpop.f32.mrb[0].mxu0
    %v6172 = vadd.f32 %v6129, %v6171
    %v6173 = vpop.f32.mrb[0].mxu0
    %v6174 = vadd.f32 %v6131, %v6173
    %v6175 = vpop.f32.mrb[0].mxu0
    %v6176 = vadd.f32 %v6133, %v6175
    %6177 = vdwg.mxu0
    %6178 = vmatprep.subr.bf16.mxu0 %v5709
    %6179 = vmatpush1.bf16.msra.mxu0 %v5708
    %6180 = vmatprep.subr.bf16.mxu0 %v5715
    %6181 = vmatpush1.bf16.msra.mxu0 %v5714
    %6182 = vmatprep.subr.bf16.mxu0 %v5721
    %6183 = vmatpush1.bf16.msra.mxu0 %v5720
    %6184 = vmatprep.subr.bf16.mxu0 %v5727
    %6185 = vmatpush1.bf16.msra.mxu0 %v5726
    %6186 = vmatprep.subr.bf16.mxu0 %v5733
    %6187 = vmatpush1.bf16.msra.mxu0 %v5732
    %6188 = vmatprep.subr.bf16.mxu0 %v5739
    %6189 = vmatpush1.bf16.msra.mxu0 %v5738
    %6190 = vmatprep.subr.bf16.mxu0 %v5745
    %6191 = vmatpush1.bf16.msra.mxu0 %v5744
    %6192 = vmatprep.subr.bf16.mxu0 %v5751
    %6193 = vmatpush1.bf16.msra.mxu0 %v5750
    %6194 = vmatprep.subr.bf16.mxu0 %v5757
    %6195 = vmatpush1.bf16.msra.mxu0 %v5756
    %6196 = vmatprep.subr.bf16.mxu0 %v5763
    %6197 = vmatpush1.bf16.msra.mxu0 %v5762
    %6198 = vmatprep.subr.bf16.mxu0 %v5769
    %6199 = vmatpush1.bf16.msra.mxu0 %v5768
    %6200 = vmatprep.subr.bf16.mxu0 %v5775
    %6201 = vmatpush1.bf16.msra.mxu0 %v5774
    %6202 = vmatprep.subr.bf16.mxu0 %v5781
    %6203 = vmatpush1.bf16.msra.mxu0 %v5780
    %6204 = vmatprep.subr.bf16.mxu0 %v5787
    %6205 = vmatpush1.bf16.msra.mxu0 %v5786
    %6206 = vmatprep.subr.bf16.mxu0 %v5793
    %6207 = vmatpush1.bf16.msra.mxu0 %v5792
    %6208 = vmatprep.subr.bf16.mxu0 %v5799
    %6209 = vmatpush1.bf16.msra.mxu0 %v5798
    %6210 = vmatprep.mubr.bf16.mxu0 %v4331
    %6211 = vmatmul.mubr.bf16.gmra.mrb[0].mxu0 %v4330
    %v6212 = vpop.f32.mrb[0].mxu0
    %v6213 = vadd.f32 %v6170, %v6212
    %v6214 = vpop.f32.mrb[0].mxu0
    %v6215 = vadd.f32 %v6172, %v6214
    %v6216 = vpop.f32.mrb[0].mxu0
    %v6217 = vadd.f32 %v6174, %v6216
    %v6218 = vpop.f32.mrb[0].mxu0
    %v6219 = vadd.f32 %v6176, %v6218
    %6220 = vdwg.mxu0
    %6221 = vmatprep.subr.bf16.mxu0 %v5519
    %6222 = vmatpush1.bf16.msra.mxu0 %v5518
    %6223 = vmatprep.subr.bf16.mxu0 %v5525
    %6224 = vmatpush1.bf16.msra.mxu0 %v5524
    %6225 = vmatprep.subr.bf16.mxu0 %v5531
    %6226 = vmatpush1.bf16.msra.mxu0 %v5530
    %6227 = vmatprep.subr.bf16.mxu0 %v5537
    %6228 = vmatpush1.bf16.msra.mxu0 %v5536
    %6229 = vmatprep.subr.bf16.mxu0 %v5543
    %6230 = vmatpush1.bf16.msra.mxu0 %v5542
    %6231 = vmatprep.subr.bf16.mxu0 %v5549
    %6232 = vmatpush1.bf16.msra.mxu0 %v5548
    %6233 = vmatprep.subr.bf16.mxu0 %v5555
    %6234 = vmatpush1.bf16.msra.mxu0 %v5554
    %6235 = vmatprep.subr.bf16.mxu0 %v5561
    %6236 = vmatpush1.bf16.msra.mxu0 %v5560
    %6237 = vmatprep.subr.bf16.mxu0 %v5567
    %6238 = vmatpush1.bf16.msra.mxu0 %v5566
    %6239 = vmatprep.subr.bf16.mxu0 %v5573
    %6240 = vmatpush1.bf16.msra.mxu0 %v5572
    %6241 = vmatprep.subr.bf16.mxu0 %v5579
    %6242 = vmatpush1.bf16.msra.mxu0 %v5578
    %6243 = vmatprep.subr.bf16.mxu0 %v5585
    %6244 = vmatpush1.bf16.msra.mxu0 %v5584
    %6245 = vmatprep.subr.bf16.mxu0 %v5591
    %6246 = vmatpush1.bf16.msra.mxu0 %v5590
    %6247 = vmatprep.subr.bf16.mxu0 %v5597
    %6248 = vmatpush1.bf16.msra.mxu0 %v5596
    %6249 = vmatprep.subr.bf16.mxu0 %v5603
    %6250 = vmatpush1.bf16.msra.mxu0 %v5602
    %6251 = vmatprep.subr.bf16.mxu0 %v5609
    %6252 = vmatpush1.bf16.msra.mxu0 %v5608
    %6253 = vmatprep.mubr.bf16.mxu0 %v4327
    %6254 = vmatmul.mubr.bf16.gmra.mrb[0].mxu0 %v4326
    %v6255 = vpop.f32.mrb[0].mxu0
    %v6256 = vadd.f32 %v4633, %v6255
    %v6257 = vpop.f32.mrb[0].mxu0
    %v6258 = vadd.f32 %v4637, %v6257
    %v6259 = vpop.f32.mrb[0].mxu0
    %v6260 = vadd.f32 %v4633, %v6259
    %v6261 = vpop.f32.mrb[0].mxu0
    %v6262 = vadd.f32 %v4637, %v6261
    %6263 = vdwg.mxu0
    %6264 = vmatprep.subr.bf16.mxu0 %v5615
    %6265 = vmatpush1.bf16.msra.mxu0 %v5614
    %6266 = vmatprep.subr.bf16.mxu0 %v5621
    %6267 = vmatpush1.bf16.msra.mxu0 %v5620
    %6268 = vmatprep.subr.bf16.mxu0 %v5627
    %6269 = vmatpush1.bf16.msra.mxu0 %v5626
    %6270 = vmatprep.subr.bf16.mxu0 %v5633
    %6271 = vmatpush1.bf16.msra.mxu0 %v5632
    %6272 = vmatprep.subr.bf16.mxu0 %v5639
    %6273 = vmatpush1.bf16.msra.mxu0 %v5638
    %6274 = vmatprep.subr.bf16.mxu0 %v5645
    %6275 = vmatpush1.bf16.msra.mxu0 %v5644
    %6276 = vmatprep.subr.bf16.mxu0 %v5651
    %6277 = vmatpush1.bf16.msra.mxu0 %v5650
    %6278 = vmatprep.subr.bf16.mxu0 %v5657
    %6279 = vmatpush1.bf16.msra.mxu0 %v5656
    %6280 = vmatprep.subr.bf16.mxu0 %v5663
    %6281 = vmatpush1.bf16.msra.mxu0 %v5662
    %6282 = vmatprep.subr.bf16.mxu0 %v5669
    %6283 = vmatpush1.bf16.msra.mxu0 %v5668
    %6284 = vmatprep.subr.bf16.mxu0 %v5675
    %6285 = vmatpush1.bf16.msra.mxu0 %v5674
    %6286 = vmatprep.subr.bf16.mxu0 %v5681
    %6287 = vmatpush1.bf16.msra.mxu0 %v5680
    %6288 = vmatprep.subr.bf16.mxu0 %v5687
    %6289 = vmatpush1.bf16.msra.mxu0 %v5686
    %6290 = vmatprep.subr.bf16.mxu0 %v5693
    %6291 = vmatpush1.bf16.msra.mxu0 %v5692
    %6292 = vmatprep.subr.bf16.mxu0 %v5699
    %6293 = vmatpush1.bf16.msra.mxu0 %v5698
    %6294 = vmatprep.subr.bf16.mxu0 %v5705
    %6295 = vmatpush1.bf16.msra.mxu0 %v5704
    %6296 = vmatprep.mubr.bf16.mxu0 %v4329
    %6297 = vmatmul.mubr.bf16.gmra.mrb[0].mxu0 %v4328
    %v6298 = vpop.f32.mrb[0].mxu0
    %v6299 = vadd.f32 %v6256, %v6298
    %v6300 = vpop.f32.mrb[0].mxu0
    %v6301 = vadd.f32 %v6258, %v6300
    %v6302 = vpop.f32.mrb[0].mxu0
    %v6303 = vadd.f32 %v6260, %v6302
    %v6304 = vpop.f32.mrb[0].mxu0
    %v6305 = vadd.f32 %v6262, %v6304
    %6306 = vdwg.mxu0
    %6307 = vmatprep.subr.bf16.mxu0 %v5711
    %6308 = vmatpush1.bf16.msra.mxu0 %v5710
    %6309 = vmatprep.subr.bf16.mxu0 %v5717
    %6310 = vmatpush1.bf16.msra.mxu0 %v5716
    %6311 = vmatprep.subr.bf16.mxu0 %v5723
    %6312 = vmatpush1.bf16.msra.mxu0 %v5722
    %6313 = vmatprep.subr.bf16.mxu0 %v5729
    %6314 = vmatpush1.bf16.msra.mxu0 %v5728
    %6315 = vmatprep.subr.bf16.mxu0 %v5735
    %6316 = vmatpush1.bf16.msra.mxu0 %v5734
    %6317 = vmatprep.subr.bf16.mxu0 %v5741
    %6318 = vmatpush1.bf16.msra.mxu0 %v5740
    %6319 = vmatprep.subr.bf16.mxu0 %v5747
    %6320 = vmatpush1.bf16.msra.mxu0 %v5746
    %6321 = vmatprep.subr.bf16.mxu0 %v5753
    %6322 = vmatpush1.bf16.msra.mxu0 %v5752
    %6323 = vmatprep.subr.bf16.mxu0 %v5759
    %6324 = vmatpush1.bf16.msra.mxu0 %v5758
    %6325 = vmatprep.subr.bf16.mxu0 %v5765
    %6326 = vmatpush1.bf16.msra.mxu0 %v5764
    %6327 = vmatprep.subr.bf16.mxu0 %v5771
    %6328 = vmatpush1.bf16.msra.mxu0 %v5770
    %6329 = vmatprep.subr.bf16.mxu0 %v5777
    %6330 = vmatpush1.bf16.msra.mxu0 %v5776
    %6331 = vmatprep.subr.bf16.mxu0 %v5783
    %6332 = vmatpush1.bf16.msra.mxu0 %v5782
    %6333 = vmatprep.subr.bf16.mxu0 %v5789
    %6334 = vmatpush1.bf16.msra.mxu0 %v5788
    %6335 = vmatprep.subr.bf16.mxu0 %v5795
    %6336 = vmatpush1.bf16.msra.mxu0 %v5794
    %6337 = vmatprep.subr.bf16.mxu0 %v5801
    %6338 = vmatpush1.bf16.msra.mxu0 %v5800
    %6339 = vmatprep.mubr.bf16.mxu0 %v4331
    %6340 = vmatmul.mubr.bf16.gmra.mrb[0].mxu0 %v4330
    %v6341 = vpop.f32.mrb[0].mxu0
    %v6342 = vadd.f32 %v6299, %v6341
    %v6343 = vpop.f32.mrb[0].mxu0
    %v6344 = vadd.f32 %v6301, %v6343
    %v6345 = vpop.f32.mrb[0].mxu0
    %v6346 = vadd.f32 %v6303, %v6345
    %v6347 = vpop.f32.mrb[0].mxu0
    %v6348 = vadd.f32 %v6305, %v6347
    %6349 = vdwg.mxu0
    %6350 = vmatprep.subr.bf16.mxu0 %v5521
    %6351 = vmatpush1.bf16.msra.mxu0 %v5520
    %6352 = vmatprep.subr.bf16.mxu0 %v5527
    %6353 = vmatpush1.bf16.msra.mxu0 %v5526
    %6354 = vmatprep.subr.bf16.mxu0 %v5533
    %6355 = vmatpush1.bf16.msra.mxu0 %v5532
    %6356 = vmatprep.subr.bf16.mxu0 %v5539
    %6357 = vmatpush1.bf16.msra.mxu0 %v5538
    %6358 = vmatprep.subr.bf16.mxu0 %v5545
    %6359 = vmatpush1.bf16.msra.mxu0 %v5544
    %6360 = vmatprep.subr.bf16.mxu0 %v5551
    %6361 = vmatpush1.bf16.msra.mxu0 %v5550
    %6362 = vmatprep.subr.bf16.mxu0 %v5557
    %6363 = vmatpush1.bf16.msra.mxu0 %v5556
    %6364 = vmatprep.subr.bf16.mxu0 %v5563
    %6365 = vmatpush1.bf16.msra.mxu0 %v5562
    %6366 = vmatprep.subr.bf16.mxu0 %v5569
    %6367 = vmatpush1.bf16.msra.mxu0 %v5568
    %6368 = vmatprep.subr.bf16.mxu0 %v5575
    %6369 = vmatpush1.bf16.msra.mxu0 %v5574
    %6370 = vmatprep.subr.bf16.mxu0 %v5581
    %6371 = vmatpush1.bf16.msra.mxu0 %v5580
    %6372 = vmatprep.subr.bf16.mxu0 %v5587
    %6373 = vmatpush1.bf16.msra.mxu0 %v5586
    %6374 = vmatprep.subr.bf16.mxu0 %v5593
    %6375 = vmatpush1.bf16.msra.mxu0 %v5592
    %6376 = vmatprep.subr.bf16.mxu0 %v5599
    %6377 = vmatpush1.bf16.msra.mxu0 %v5598
    %6378 = vmatprep.subr.bf16.mxu0 %v5605
    %6379 = vmatpush1.bf16.msra.mxu0 %v5604
    %6380 = vmatprep.subr.bf16.mxu0 %v5611
    %6381 = vmatpush1.bf16.msra.mxu0 %v5610
    %6382 = vmatprep.mubr.bf16.mxu0 %v4327
    %6383 = vmatmul.mubr.bf16.gmra.mrb[0].mxu0 %v4326
    %v6384 = vpop.f32.mrb[0].mxu0
    %v6385 = vadd.f32 %v4641, %v6384
    %v6386 = vpop.f32.mrb[0].mxu0
    %v6387 = vadd.f32 %v4645, %v6386
    %v6388 = vpop.f32.mrb[0].mxu0
    %v6389 = vadd.f32 %v4641, %v6388
    %v6390 = vpop.f32.mrb[0].mxu0
    %v6391 = vadd.f32 %v4645, %v6390
    %6392 = vdwg.mxu0
    %6393 = vmatprep.subr.bf16.mxu0 %v5617
    %6394 = vmatpush1.bf16.msra.mxu0 %v5616
    %6395 = vmatprep.subr.bf16.mxu0 %v5623
    %6396 = vmatpush1.bf16.msra.mxu0 %v5622
    %6397 = vmatprep.subr.bf16.mxu0 %v5629
    %6398 = vmatpush1.bf16.msra.mxu0 %v5628
    %6399 = vmatprep.subr.bf16.mxu0 %v5635
    %6400 = vmatpush1.bf16.msra.mxu0 %v5634
    %6401 = vmatprep.subr.bf16.mxu0 %v5641
    %6402 = vmatpush1.bf16.msra.mxu0 %v5640
    %6403 = vmatprep.subr.bf16.mxu0 %v5647
    %6404 = vmatpush1.bf16.msra.mxu0 %v5646
    %6405 = vmatprep.subr.bf16.mxu0 %v5653
    %6406 = vmatpush1.bf16.msra.mxu0 %v5652
    %6407 = vmatprep.subr.bf16.mxu0 %v5659
    %6408 = vmatpush1.bf16.msra.mxu0 %v5658
    %6409 = vmatprep.subr.bf16.mxu0 %v5665
    %6410 = vmatpush1.bf16.msra.mxu0 %v5664
    %6411 = vmatprep.subr.bf16.mxu0 %v5671
    %6412 = vmatpush1.bf16.msra.mxu0 %v5670
    %6413 = vmatprep.subr.bf16.mxu0 %v5677
    %6414 = vmatpush1.bf16.msra.mxu0 %v5676
    %6415 = vmatprep.subr.bf16.mxu0 %v5683
    %6416 = vmatpush1.bf16.msra.mxu0 %v5682
    %6417 = vmatprep.subr.bf16.mxu0 %v5689
    %6418 = vmatpush1.bf16.msra.mxu0 %v5688
    %6419 = vmatprep.subr.bf16.mxu0 %v5695
    %6420 = vmatpush1.bf16.msra.mxu0 %v5694
    %6421 = vmatprep.subr.bf16.mxu0 %v5701
    %6422 = vmatpush1.bf16.msra.mxu0 %v5700
    %6423 = vmatprep.subr.bf16.mxu0 %v5707
    %6424 = vmatpush1.bf16.msra.mxu0 %v5706
    %6425 = vmatprep.mubr.bf16.mxu0 %v4329
    %6426 = vmatmul.mubr.bf16.gmra.mrb[0].mxu0 %v4328
    %v6427 = vpop.f32.mrb[0].mxu0
    %v6428 = vadd.f32 %v6385, %v6427
    %v6429 = vpop.f32.mrb[0].mxu0
    %v6430 = vadd.f32 %v6387, %v6429
    %v6431 = vpop.f32.mrb[0].mxu0
    %v6432 = vadd.f32 %v6389, %v6431
    %v6433 = vpop.f32.mrb[0].mxu0
    %v6434 = vadd.f32 %v6391, %v6433
    %6435 = vdwg.mxu0
    %6436 = vmatprep.subr.bf16.mxu0 %v5713
    %6437 = vmatpush1.bf16.msra.mxu0 %v5712
    %6438 = vmatprep.subr.bf16.mxu0 %v5719
    %6439 = vmatpush1.bf16.msra.mxu0 %v5718
    %6440 = vmatprep.subr.bf16.mxu0 %v5725
    %6441 = vmatpush1.bf16.msra.mxu0 %v5724
    %6442 = vmatprep.subr.bf16.mxu0 %v5731
    %6443 = vmatpush1.bf16.msra.mxu0 %v5730
    %6444 = vmatprep.subr.bf16.mxu0 %v5737
    %6445 = vmatpush1.bf16.msra.mxu0 %v5736
    %6446 = vmatprep.subr.bf16.mxu0 %v5743
    %6447 = vmatpush1.bf16.msra.mxu0 %v5742
    %6448 = vmatprep.subr.bf16.mxu0 %v5749
    %6449 = vmatpush1.bf16.msra.mxu0 %v5748
    %6450 = vmatprep.subr.bf16.mxu0 %v5755
    %6451 = vmatpush1.bf16.msra.mxu0 %v5754
    %6452 = vmatprep.subr.bf16.mxu0 %v5761
    %6453 = vmatpush1.bf16.msra.mxu0 %v5760
    %6454 = vmatprep.subr.bf16.mxu0 %v5767
    %6455 = vmatpush1.bf16.msra.mxu0 %v5766
    %6456 = vmatprep.subr.bf16.mxu0 %v5773
    %6457 = vmatpush1.bf16.msra.mxu0 %v5772
    %6458 = vmatprep.subr.bf16.mxu0 %v5779
    %6459 = vmatpush1.bf16.msra.mxu0 %v5778
    %6460 = vmatprep.subr.bf16.mxu0 %v5785
    %6461 = vmatpush1.bf16.msra.mxu0 %v5784
    %6462 = vmatprep.subr.bf16.mxu0 %v5791
    %6463 = vmatpush1.bf16.msra.mxu0 %v5790
    %6464 = vmatprep.subr.bf16.mxu0 %v5797
    %6465 = vmatpush1.bf16.msra.mxu0 %v5796
    %6466 = vmatprep.subr.bf16.mxu0 %v5803
    %6467 = vmatpush1.bf16.msra.mxu0 %v5802
    %6468 = vmatprep.mubr.bf16.mxu0 %v4331
    %6469 = vmatmul.mubr.bf16.gmra.mrb[0].mxu0 %v4330
    %v6470 = vpop.f32.mrb[0].mxu0
    %v6471 = vadd.f32 %v6428, %v6470
    %v6472 = vpop.f32.mrb[0].mxu0
    %v6473 = vadd.f32 %v6430, %v6472
    %v6474 = vpop.f32.mrb[0].mxu0
    %v6475 = vadd.f32 %v6432, %v6474
    %v6476 = vpop.f32.mrb[0].mxu0
    %v6477 = vadd.f32 %v6434, %v6476
    %6478 = vdwg.mxu0
    %v6479 = vmax.f32 %v6213, 0.0
    %v6480 = vmax.f32 %v6215, 0.0
    %v6481 = vmax.f32 %v6342, 0.0
    %v6482 = vmax.f32 %v6344, 0.0
    %v6483 = vmax.f32 %v6471, 0.0
    %v6484 = vmax.f32 %v6473, 0.0
    %v6485 = vmax.f32 %v6217, 0.0
    %v6486 = vmax.f32 %v6219, 0.0
    %v6487 = vmax.f32 %v6346, 0.0
    %v6488 = vmax.f32 %v6348, 0.0
    %v6489 = vmax.f32 %v6475, 0.0
    %v6490 = vmax.f32 %v6477, 0.0
    %v6491 = vpack.c.bf16 %v6485, %v6479
    %v6492 = vpack.c.bf16 %v6486, %v6480
    %v6493 = vpack.c.bf16 %v6487, %v6481
    %v6494 = vpack.c.bf16 %v6488, %v6482
    %v6495 = vpack.c.bf16 %v6489, %v6483
    %v6496 = vpack.c.bf16 %v6490, %v6484
    %v6497 = vld [vmem:[#allocation20] sm:$0xf]
    %v6498 = vld [vmem:[#allocation20 + $0x4] sm:$0xf]
    %v6499 = vld [vmem:[#allocation20 + $0x8] sm:$0xf]
    %v6500 = vld [vmem:[#allocation20 + $0xc] sm:$0xf]
    %v6501 = vld [vmem:[#allocation20 + $0x10] sm:$0xf]
    %v6502 = vld [vmem:[#allocation20 + $0x14] sm:$0xf]
    %v6503 = vld [vmem:[#allocation20 + $0x18] sm:$0xf]
    %v6504 = vld [vmem:[#allocation20 + $0x1c] sm:$0xf]
    %v6505 = vld [vmem:[#allocation20 + $0x20] sm:$0xf]
    %v6506 = vld [vmem:[#allocation20 + $0x24] sm:$0xf]
    %v6507 = vld [vmem:[#allocation20 + $0x28] sm:$0xf]
    %v6508 = vld [vmem:[#allocation20 + $0x2c] sm:$0xf]
    %v6509 = vld [vmem:[#allocation20 + $0x30] sm:$0xf]
    %v6510 = vld [vmem:[#allocation20 + $0x34] sm:$0xf]
    %v6511 = vld [vmem:[#allocation20 + $0x38] sm:$0xf]
    %v6512 = vld [vmem:[#allocation20 + $0x3c] sm:$0xf]
    %v6513 = vld [vmem:[#allocation20 + $0x40] sm:$0xf]
    %v6514 = vld [vmem:[#allocation20 + $0x44] sm:$0xf]
    %v6515 = vld [vmem:[#allocation20 + $0x48] sm:$0xf]
    %v6516 = vld [vmem:[#allocation20 + $0x4c] sm:$0xf]
    %v6517 = vld [vmem:[#allocation20 + $0x50] sm:$0xf]
    %v6518 = vld [vmem:[#allocation20 + $0x54] sm:$0xf]
    %v6519 = vld [vmem:[#allocation20 + $0x58] sm:$0xf]
    %v6520 = vld [vmem:[#allocation20 + $0x5c] sm:$0xf]
    %v6521 = vld [vmem:[#allocation20 + $0x60] sm:$0xf]
    %v6522 = vld [vmem:[#allocation20 + $0x64] sm:$0xf]
    %v6523 = vld [vmem:[#allocation20 + $0x68] sm:$0xf]
    %v6524 = vld [vmem:[#allocation20 + $0x6c] sm:$0xf]
    %v6525 = vld [vmem:[#allocation20 + $0x70] sm:$0xf]
    %v6526 = vld [vmem:[#allocation20 + $0x74] sm:$0xf]
    %v6527 = vld [vmem:[#allocation20 + $0x78] sm:$0xf]
    %v6528 = vld [vmem:[#allocation20 + $0x7c] sm:$0xf]
    %v6529 = vld [vmem:[#allocation20 + $0x80] sm:$0xf]
    %v6530 = vld [vmem:[#allocation20 + $0x84] sm:$0xf]
    %v6531 = vld [vmem:[#allocation20 + $0x88] sm:$0xf]
    %v6532 = vld [vmem:[#allocation20 + $0x8c] sm:$0xf]
    %v6533 = vld [vmem:[#allocation20 + $0x90] sm:$0xf]
    %v6534 = vld [vmem:[#allocation20 + $0x94] sm:$0xf]
    %v6535 = vld [vmem:[#allocation20 + $0x98] sm:$0xf]
    %v6536 = vld [vmem:[#allocation20 + $0x9c] sm:$0xf]
    %v6537 = vld [vmem:[#allocation20 + $0xa0] sm:$0xf]
    %v6538 = vld [vmem:[#allocation20 + $0xa4] sm:$0xf]
    %v6539 = vld [vmem:[#allocation20 + $0xa8] sm:$0xf]
    %v6540 = vld [vmem:[#allocation20 + $0xac] sm:$0xf]
    %v6541 = vld [vmem:[#allocation20 + $0xb0] sm:$0xf]
    %v6542 = vld [vmem:[#allocation20 + $0xb4] sm:$0xf]
    %v6543 = vld [vmem:[#allocation20 + $0xb8] sm:$0xf]
    %v6544 = vld [vmem:[#allocation20 + $0xbc] sm:$0xf]
    %v6545 = vld [vmem:[#allocation20 + $0xc0] sm:$0xf]
    %v6546 = vld [vmem:[#allocation20 + $0xc4] sm:$0xf]
    %v6547 = vld [vmem:[#allocation20 + $0xc8] sm:$0xf]
    %v6548 = vld [vmem:[#allocation20 + $0xcc] sm:$0xf]
    %v6549 = vld [vmem:[#allocation20 + $0xd0] sm:$0xf]
    %v6550 = vld [vmem:[#allocation20 + $0xd4] sm:$0xf]
    %v6551 = vld [vmem:[#allocation20 + $0xd8] sm:$0xf]
    %v6552 = vld [vmem:[#allocation20 + $0xdc] sm:$0xf]
    %v6553 = vld [vmem:[#allocation20 + $0xe0] sm:$0xf]
    %v6554 = vld [vmem:[#allocation20 + $0xe4] sm:$0xf]
    %v6555 = vld [vmem:[#allocation20 + $0xe8] sm:$0xf]
    %v6556 = vld [vmem:[#allocation20 + $0xec] sm:$0xf]
    %v6557 = vld [vmem:[#allocation20 + $0xf0] sm:$0xf]
    %v6558 = vld [vmem:[#allocation20 + $0xf4] sm:$0xf]
    %v6559 = vld [vmem:[#allocation20 + $0xf8] sm:$0xf]
    %v6560 = vld [vmem:[#allocation20 + $0xfc] sm:$0xf]
    %v6561 = vld [vmem:[#allocation20 + $0x100] sm:$0xf]
    %v6562 = vld [vmem:[#allocation20 + $0x104] sm:$0xf]
    %v6563 = vld [vmem:[#allocation20 + $0x108] sm:$0xf]
    %v6564 = vld [vmem:[#allocation20 + $0x10c] sm:$0xf]
    %v6565 = vld [vmem:[#allocation20 + $0x110] sm:$0xf]
    %v6566 = vld [vmem:[#allocation20 + $0x114] sm:$0xf]
    %v6567 = vld [vmem:[#allocation20 + $0x118] sm:$0xf]
    %v6568 = vld [vmem:[#allocation20 + $0x11c] sm:$0xf]
    %v6569 = vld [vmem:[#allocation20 + $0x120] sm:$0xf]
    %v6570 = vld [vmem:[#allocation20 + $0x124] sm:$0xf]
    %v6571 = vld [vmem:[#allocation20 + $0x128] sm:$0xf]
    %v6572 = vld [vmem:[#allocation20 + $0x12c] sm:$0xf]
    %v6573 = vld [vmem:[#allocation20 + $0x130] sm:$0xf]
    %v6574 = vld [vmem:[#allocation20 + $0x134] sm:$0xf]
    %v6575 = vld [vmem:[#allocation20 + $0x138] sm:$0xf]
    %v6576 = vld [vmem:[#allocation20 + $0x13c] sm:$0xf]
    %v6577 = vld [vmem:[#allocation20 + $0x140] sm:$0xf]
    %v6578 = vld [vmem:[#allocation20 + $0x144] sm:$0xf]
    %v6579 = vld [vmem:[#allocation20 + $0x148] sm:$0xf]
    %v6580 = vld [vmem:[#allocation20 + $0x14c] sm:$0xf]
    %v6581 = vld [vmem:[#allocation20 + $0x150] sm:$0xf]
    %v6582 = vld [vmem:[#allocation20 + $0x154] sm:$0xf]
    %v6583 = vld [vmem:[#allocation20 + $0x158] sm:$0xf]
    %v6584 = vld [vmem:[#allocation20 + $0x15c] sm:$0xf]
    %v6585 = vld [vmem:[#allocation20 + $0x160] sm:$0xf]
    %v6586 = vld [vmem:[#allocation20 + $0x164] sm:$0xf]
    %v6587 = vld [vmem:[#allocation20 + $0x168] sm:$0xf]
    %v6588 = vld [vmem:[#allocation20 + $0x16c] sm:$0xf]
    %v6589 = vld [vmem:[#allocation20 + $0x170] sm:$0xf]
    %v6590 = vld [vmem:[#allocation20 + $0x174] sm:$0xf]
    %v6591 = vld [vmem:[#allocation20 + $0x178] sm:$0xf]
    %v6592 = vld [vmem:[#allocation20 + $0x17c] sm:$0xf]
    %v6593 = vld [vmem:[#allocation22] sm:$0x1]
    %v6595 = vlaneseq
    %v6596 = vshrl.u32 %v6595, 7
    %v6597 = vsub.s32 0, %v6596
    %v6598 = vrot.slane %v6593, %v6597
    %v6696 = vunpack.c.l.b16 %v6497
    %v6697 = vunpack.c.l.b16 %v6498
    %v6698 = vunpack.c.l.b16 %v6499
    %v6699 = vunpack.c.l.b16 %v6500
    %v6700 = vunpack.c.l.b16 %v6501
    %v6701 = vunpack.c.l.b16 %v6502
    %v6702 = vunpack.c.l.b16 %v6503
    %v6703 = vunpack.c.l.b16 %v6504
    %v6704 = vunpack.c.l.b16 %v6505
    %v6705 = vunpack.c.l.b16 %v6506
    %v6706 = vunpack.c.l.b16 %v6507
    %v6707 = vunpack.c.l.b16 %v6508
    %v6708 = vunpack.c.l.b16 %v6509
    %v6709 = vunpack.c.l.b16 %v6510
    %v6710 = vunpack.c.l.b16 %v6511
    %v6711 = vunpack.c.l.b16 %v6512
    %v6712 = vunpack.c.l.b16 %v6513
    %v6713 = vunpack.c.l.b16 %v6514
    %v6714 = vunpack.c.l.b16 %v6515
    %v6715 = vunpack.c.l.b16 %v6516
    %v6716 = vunpack.c.l.b16 %v6517
    %v6717 = vunpack.c.l.b16 %v6518
    %v6718 = vunpack.c.l.b16 %v6519
    %v6719 = vunpack.c.l.b16 %v6520
    %v6720 = vunpack.c.l.b16 %v6521
    %v6721 = vunpack.c.l.b16 %v6522
    %v6722 = vunpack.c.l.b16 %v6523
    %v6723 = vunpack.c.l.b16 %v6524
    %v6724 = vunpack.c.l.b16 %v6525
    %v6725 = vunpack.c.l.b16 %v6526
    %v6726 = vunpack.c.l.b16 %v6527
    %v6727 = vunpack.c.l.b16 %v6528
    %v6728 = vunpack.c.l.b16 %v6529
    %v6729 = vunpack.c.l.b16 %v6530
    %v6730 = vunpack.c.l.b16 %v6531
    %v6731 = vunpack.c.l.b16 %v6532
    %v6732 = vunpack.c.l.b16 %v6533
    %v6733 = vunpack.c.l.b16 %v6534
    %v6734 = vunpack.c.l.b16 %v6535
    %v6735 = vunpack.c.l.b16 %v6536
    %v6736 = vunpack.c.l.b16 %v6537
    %v6737 = vunpack.c.l.b16 %v6538
    %v6738 = vunpack.c.l.b16 %v6539
    %v6739 = vunpack.c.l.b16 %v6540
    %v6740 = vunpack.c.l.b16 %v6541
    %v6741 = vunpack.c.l.b16 %v6542
    %v6742 = vunpack.c.l.b16 %v6543
    %v6743 = vunpack.c.l.b16 %v6544
    %v6744 = vunpack.c.l.b16 %v6545
    %v6745 = vunpack.c.l.b16 %v6546
    %v6746 = vunpack.c.l.b16 %v6547
    %v6747 = vunpack.c.l.b16 %v6548
    %v6748 = vunpack.c.l.b16 %v6549
    %v6749 = vunpack.c.l.b16 %v6550
    %v6750 = vunpack.c.l.b16 %v6551
    %v6751 = vunpack.c.l.b16 %v6552
    %v6752 = vunpack.c.l.b16 %v6553
    %v6753 = vunpack.c.l.b16 %v6554
    %v6754 = vunpack.c.l.b16 %v6555
    %v6755 = vunpack.c.l.b16 %v6556
    %v6756 = vunpack.c.l.b16 %v6557
    %v6757 = vunpack.c.l.b16 %v6558
    %v6758 = vunpack.c.l.b16 %v6559
    %v6759 = vunpack.c.l.b16 %v6560
    %v6760 = vunpack.c.l.b16 %v6561
    %v6761 = vunpack.c.l.b16 %v6562
    %v6762 = vunpack.c.l.b16 %v6563
    %v6763 = vunpack.c.l.b16 %v6564
    %v6764 = vunpack.c.l.b16 %v6565
    %v6765 = vunpack.c.l.b16 %v6566
    %v6766 = vunpack.c.l.b16 %v6567
    %v6767 = vunpack.c.l.b16 %v6568
    %v6768 = vunpack.c.l.b16 %v6569
    %v6769 = vunpack.c.l.b16 %v6570
    %v6770 = vunpack.c.l.b16 %v6571
    %v6771 = vunpack.c.l.b16 %v6572
    %v6772 = vunpack.c.l.b16 %v6573
    %v6773 = vunpack.c.l.b16 %v6574
    %v6774 = vunpack.c.l.b16 %v6575
    %v6775 = vunpack.c.l.b16 %v6576
    %v6776 = vunpack.c.l.b16 %v6577
    %v6777 = vunpack.c.l.b16 %v6578
    %v6778 = vunpack.c.l.b16 %v6579
    %v6779 = vunpack.c.l.b16 %v6580
    %v6780 = vunpack.c.l.b16 %v6581
    %v6781 = vunpack.c.l.b16 %v6582
    %v6782 = vunpack.c.l.b16 %v6583
    %v6783 = vunpack.c.l.b16 %v6584
    %v6784 = vunpack.c.l.b16 %v6585
    %v6785 = vunpack.c.l.b16 %v6586
    %v6786 = vunpack.c.l.b16 %v6587
    %v6787 = vunpack.c.l.b16 %v6588
    %v6788 = vunpack.c.l.b16 %v6589
    %v6789 = vunpack.c.l.b16 %v6590
    %v6790 = vunpack.c.l.b16 %v6591
    %v6791 = vunpack.c.l.b16 %v6592
    %v6792 = vpack.c.b16 %v6697, %v6696
    %v6793 = vpack.c.b16 %v6699, %v6698
    %v6794 = vpack.c.b16 %v6701, %v6700
    %v6795 = vpack.c.b16 %v6703, %v6702
    %v6796 = vpack.c.b16 %v6705, %v6704
    %v6797 = vpack.c.b16 %v6707, %v6706
    %v6798 = vpack.c.b16 %v6709, %v6708
    %v6799 = vpack.c.b16 %v6711, %v6710
    %v6800 = vpack.c.b16 %v6713, %v6712
    %v6801 = vpack.c.b16 %v6715, %v6714
    %v6802 = vpack.c.b16 %v6717, %v6716
    %v6803 = vpack.c.b16 %v6719, %v6718
    %v6804 = vpack.c.b16 %v6721, %v6720
    %v6805 = vpack.c.b16 %v6723, %v6722
    %v6806 = vpack.c.b16 %v6725, %v6724
    %v6807 = vpack.c.b16 %v6727, %v6726
    %v6808 = vpack.c.b16 %v6729, %v6728
    %v6809 = vpack.c.b16 %v6731, %v6730
    %v6810 = vpack.c.b16 %v6733, %v6732
    %v6811 = vpack.c.b16 %v6735, %v6734
    %v6812 = vpack.c.b16 %v6737, %v6736
    %v6813 = vpack.c.b16 %v6739, %v6738
    %v6814 = vpack.c.b16 %v6741, %v6740
    %v6815 = vpack.c.b16 %v6743, %v6742
    %v6816 = vpack.c.b16 %v6745, %v6744
    %v6817 = vpack.c.b16 %v6747, %v6746
    %v6818 = vpack.c.b16 %v6749, %v6748
    %v6819 = vpack.c.b16 %v6751, %v6750
    %v6820 = vpack.c.b16 %v6753, %v6752
    %v6821 = vpack.c.b16 %v6755, %v6754
    %v6822 = vpack.c.b16 %v6757, %v6756
    %v6823 = vpack.c.b16 %v6759, %v6758
    %v6824 = vpack.c.b16 %v6761, %v6760
    %v6825 = vpack.c.b16 %v6763, %v6762
    %v6826 = vpack.c.b16 %v6765, %v6764
    %v6827 = vpack.c.b16 %v6767, %v6766
    %v6828 = vpack.c.b16 %v6769, %v6768
    %v6829 = vpack.c.b16 %v6771, %v6770
    %v6830 = vpack.c.b16 %v6773, %v6772
    %v6831 = vpack.c.b16 %v6775, %v6774
    %v6832 = vpack.c.b16 %v6777, %v6776
    %v6833 = vpack.c.b16 %v6779, %v6778
    %v6834 = vpack.c.b16 %v6781, %v6780
    %v6835 = vpack.c.b16 %v6783, %v6782
    %v6836 = vpack.c.b16 %v6785, %v6784
    %v6837 = vpack.c.b16 %v6787, %v6786
    %v6838 = vpack.c.b16 %v6789, %v6788
    %v6839 = vpack.c.b16 %v6791, %v6790
    %6888 = vmatprep.subr.bf16.mxu0 0
    %6889 = vmatpush1.bf16.msra.mxu0 %v6792
    %6890 = vmatprep.subr.bf16.mxu0 0
    %6891 = vmatpush1.bf16.msra.mxu0 %v6793
    %6892 = vmatprep.subr.bf16.mxu0 0
    %6893 = vmatpush1.bf16.msra.mxu0 %v6794
    %6894 = vmatprep.subr.bf16.mxu0 0
    %6895 = vmatpush1.bf16.msra.mxu0 %v6795
    %6896 = vmatprep.subr.bf16.mxu0 0
    %6897 = vmatpush1.bf16.msra.mxu0 %v6796
    %6898 = vmatprep.subr.bf16.mxu0 0
    %6899 = vmatpush1.bf16.msra.mxu0 %v6797
    %6900 = vmatprep.subr.bf16.mxu0 0
    %6901 = vmatpush1.bf16.msra.mxu0 %v6798
    %6902 = vmatprep.subr.bf16.mxu0 0
    %6903 = vmatpush1.bf16.msra.mxu0 %v6799
    %6904 = vmatprep.subr.bf16.mxu0 0
    %6905 = vmatpush1.bf16.msra.mxu0 %v6800
    %6906 = vmatprep.subr.bf16.mxu0 0
    %6907 = vmatpush1.bf16.msra.mxu0 %v6801
    %6908 = vmatprep.subr.bf16.mxu0 0
    %6909 = vmatpush1.bf16.msra.mxu0 %v6802
    %6910 = vmatprep.subr.bf16.mxu0 0
    %6911 = vmatpush1.bf16.msra.mxu0 %v6803
    %6912 = vmatprep.subr.bf16.mxu0 0
    %6913 = vmatpush1.bf16.msra.mxu0 %v6804
    %6914 = vmatprep.subr.bf16.mxu0 0
    %6915 = vmatpush1.bf16.msra.mxu0 %v6805
    %6916 = vmatprep.subr.bf16.mxu0 0
    %6917 = vmatpush1.bf16.msra.mxu0 %v6806
    %6918 = vmatprep.subr.bf16.mxu0 0
    %6919 = vmatpush1.bf16.msra.mxu0 %v6807
    %6920 = vmatprep.mubr.bf16.mxu0 %v6492
    %6921 = vmatmul.mubr.bf16.gmra.mrb[0].mxu0 %v6491
    %v6922 = vpop.f32.mrb[0].mxu0
    %v6923 = vadd.f32 %v6598, %v6922
    %v6924 = vpop.f32.mrb[0].mxu0
    %v6925 = vpop.f32.mrb[0].mxu0
    %v6926 = vadd.f32 %v6598, %v6925
    %v6927 = vpop.f32.mrb[0].mxu0
    %6928 = vdwg.mxu0
    %6929 = vmatprep.subr.bf16.mxu0 0
    %6930 = vmatpush1.bf16.msra.mxu0 %v6808
    %6931 = vmatprep.subr.bf16.mxu0 0
    %6932 = vmatpush1.bf16.msra.mxu0 %v6809
    %6933 = vmatprep.subr.bf16.mxu0 0
    %6934 = vmatpush1.bf16.msra.mxu0 %v6810
    %6935 = vmatprep.subr.bf16.mxu0 0
    %6936 = vmatpush1.bf16.msra.mxu0 %v6811
    %6937 = vmatprep.subr.bf16.mxu0 0
    %6938 = vmatpush1.bf16.msra.mxu0 %v6812
    %6939 = vmatprep.subr.bf16.mxu0 0
    %6940 = vmatpush1.bf16.msra.mxu0 %v6813
    %6941 = vmatprep.subr.bf16.mxu0 0
    %6942 = vmatpush1.bf16.msra.mxu0 %v6814
    %6943 = vmatprep.subr.bf16.mxu0 0
    %6944 = vmatpush1.bf16.msra.mxu0 %v6815
    %6945 = vmatprep.subr.bf16.mxu0 0
    %6946 = vmatpush1.bf16.msra.mxu0 %v6816
    %6947 = vmatprep.subr.bf16.mxu0 0
    %6948 = vmatpush1.bf16.msra.mxu0 %v6817
    %6949 = vmatprep.subr.bf16.mxu0 0
    %6950 = vmatpush1.bf16.msra.mxu0 %v6818
    %6951 = vmatprep.subr.bf16.mxu0 0
    %6952 = vmatpush1.bf16.msra.mxu0 %v6819
    %6953 = vmatprep.subr.bf16.mxu0 0
    %6954 = vmatpush1.bf16.msra.mxu0 %v6820
    %6955 = vmatprep.subr.bf16.mxu0 0
    %6956 = vmatpush1.bf16.msra.mxu0 %v6821
    %6957 = vmatprep.subr.bf16.mxu0 0
    %6958 = vmatpush1.bf16.msra.mxu0 %v6822
    %6959 = vmatprep.subr.bf16.mxu0 0
    %6960 = vmatpush1.bf16.msra.mxu0 %v6823
    %6961 = vmatprep.mubr.bf16.mxu0 %v6494
    %6962 = vmatmul.mubr.bf16.gmra.mrb[0].mxu0 %v6493
    %v6963 = vpop.f32.mrb[0].mxu0
    %v6964 = vadd.f32 %v6923, %v6963
    %v6965 = vpop.f32.mrb[0].mxu0
    %v6966 = vpop.f32.mrb[0].mxu0
    %v6967 = vadd.f32 %v6926, %v6966
    %v6968 = vpop.f32.mrb[0].mxu0
    %6969 = vdwg.mxu0
    %6970 = vmatprep.subr.bf16.mxu0 0
    %6971 = vmatpush1.bf16.msra.mxu0 %v6824
    %6972 = vmatprep.subr.bf16.mxu0 0
    %6973 = vmatpush1.bf16.msra.mxu0 %v6825
    %6974 = vmatprep.subr.bf16.mxu0 0
    %6975 = vmatpush1.bf16.msra.mxu0 %v6826
    %6976 = vmatprep.subr.bf16.mxu0 0
    %6977 = vmatpush1.bf16.msra.mxu0 %v6827
    %6978 = vmatprep.subr.bf16.mxu0 0
    %6979 = vmatpush1.bf16.msra.mxu0 %v6828
    %6980 = vmatprep.subr.bf16.mxu0 0
    %6981 = vmatpush1.bf16.msra.mxu0 %v6829
    %6982 = vmatprep.subr.bf16.mxu0 0
    %6983 = vmatpush1.bf16.msra.mxu0 %v6830
    %6984 = vmatprep.subr.bf16.mxu0 0
    %6985 = vmatpush1.bf16.msra.mxu0 %v6831
    %6986 = vmatprep.subr.bf16.mxu0 0
    %6987 = vmatpush1.bf16.msra.mxu0 %v6832
    %6988 = vmatprep.subr.bf16.mxu0 0
    %6989 = vmatpush1.bf16.msra.mxu0 %v6833
    %6990 = vmatprep.subr.bf16.mxu0 0
    %6991 = vmatpush1.bf16.msra.mxu0 %v6834
    %6992 = vmatprep.subr.bf16.mxu0 0
    %6993 = vmatpush1.bf16.msra.mxu0 %v6835
    %6994 = vmatprep.subr.bf16.mxu0 0
    %6995 = vmatpush1.bf16.msra.mxu0 %v6836
    %6996 = vmatprep.subr.bf16.mxu0 0
    %6997 = vmatpush1.bf16.msra.mxu0 %v6837
    %6998 = vmatprep.subr.bf16.mxu0 0
    %6999 = vmatpush1.bf16.msra.mxu0 %v6838
    %7000 = vmatprep.subr.bf16.mxu0 0
    %7001 = vmatpush1.bf16.msra.mxu0 %v6839
    %7002 = vmatprep.mubr.bf16.mxu0 %v6496
    %7003 = vmatmul.mubr.bf16.gmra.mrb[0].mxu0 %v6495
    %v7004 = vpop.f32.mrb[0].mxu0
    %v7005 = vadd.f32 %v6964, %v7004
    %v7006 = vpop.f32.mrb[0].mxu0
    %v7007 = vpop.f32.mrb[0].mxu0
    %v7008 = vadd.f32 %v6967, %v7007
    %v7009 = vpop.f32.mrb[0].mxu0
    %7010 = vdwg.mxu0
    %v7011 = vtanh.pop %v7005
    %v7012 = vtanh.pop %v7008
    %7013 = vst [vmem:[#allocation23] sm:$0xff] %v7011
    %7014 = vst [vmem:[#allocation23 + $0x18] sm:$0xff] %v7012
    %7015 = vst [vmem:[#allocation23 + $0x8] sm:$0xff] %v3556
    %7016 = vst [vmem:[#allocation23 + $0x20] sm:$0xff] %v3560
    %7017 = vst [vmem:[#allocation23 + $0x10] sm:$0xff] %v3569
    %7018 = vst [vmem:[#allocation23 + $0x28] sm:$0xff] %v3571
    // Predicated region
    $region106: #{tpu_custom_call.1} parent=1 // pred_check
      _
    $region107: #{tpu_custom_call.1} parent=1 // pred_check_branch
      %7020 = sbr.rel (0) target = $region109
    $region108: #{tpu_custom_call.1} parent=1 // pred_region
      %s7022 = ssub.s32 768, 768
      %7023 = vsyncadd [#allocation4], %s7022
      %s7024 = sshll.u32 [#allocation23], 4
      %s7025 = int_to_ptr.vmem [resolvable:$true] %s7024
      %7030 = dma.vmem_to_hbm [thread:$0]  %s7025, 768, %s13, [#allocation4], 384, 384, 24
    $region109: #{tpu_custom_call.1} parent=1 // pred_fallthru
      _
    // Predicated region
    $region110: #{tpu_custom_call.1} parent=1 // pred_check
      _
    $region111: #{tpu_custom_call.1} parent=1 // pred_check_branch
      %7032 = sbr.rel (0) target = $region113
    $region112: #{tpu_custom_call.1} parent=1 // pred_region
      %7033 = dma.done [#allocation4], 768
    $region113: #{tpu_custom_call.1} parent=1 // pred_fallthru
      _
    %7034 = vsyncpa [#allocation3], 1
    %7035 = vsyncpa [#allocation6], 1
    %7036 = vsyncpa [#allocation9], 1
    %7037 = vsyncpa [#allocation12], 1
    %7038 = vsyncpa [#allocation15], 1
    %7039 = vsyncpa [#allocation18], 1
    %7040 = vsyncpa [#allocation21], 1
    %7041 = vsyncpa [#allocation4], 1

</llo_original>
